<compile_context>
chip_gen: v7x
topology: tpu7x:2x2x1
jax: 0.10.0
libtpu: 0.0.40
codegen_flags: <defaults>
</compile_context>

<pallas_src>
import numpy as np

import jax
import jax.numpy as jnp
from jax.experimental import pallas as pl
from jax.experimental.pallas import tpu as pltpu


# ----------------------------- fused Pallas kernel ---------------------------

def _conv_block(x, w_ref, a_ref):
    """One encoder block: 3x3/s2/p1 conv -> bias -> LeakyReLU(0.2) -> folded BN.

    x      : (H, W, B, Cin) f32 value.  Spatial dims are the *outermost* value
             dims, so padding / tap slicing / stride-2 picks are leading-dim
             ops (no lane or sublane relayout).
    w_ref  : (9*Cin, Cout) bf16 conv weights, rows ordered (tap, cin) with
             tap = kh*3 + kw — matches the tap concatenation below.
    a_ref  : (3, Cout) f32 packed [bias; bn_scale; bn_shift].
    returns (Ho, Wo, B, Cout) f32.
    """
    h, w, b, cin = x.shape
    assert h % 2 == 0 and w % 2 == 0, "stride-2/pad-1 blocks assume even H, W"
    ho, wo = h // 2, w // 2
    cout = w_ref.shape[1]

    # pad = 1 on both spatial dims via zero concatenation (leading dims only).
    zr = jnp.zeros((1, w, b, cin), x.dtype)
    xp = jnp.concatenate([zr, x, zr], axis=0)                  # (H+2, W, B, Cin)
    zc = jnp.zeros((h + 2, 1, b, cin), x.dtype)
    xp = jnp.concatenate([zc, xp, zc], axis=1)                 # (H+2, W+2, B, Cin)

    # Direct strided-window "im2col": tap (kh, kw) of the stride-2 conv reads
    # padded coords (kh + 2*oh, kw + 2*ow).  The stride-2 pick is a split of a
    # leading dim into (Ho, 2) / (Wo, 2) followed by a static index.
    taps = []
    for kh in range(3):
        rows = xp[kh:kh + 2 * ho]                              # (2Ho, W+2, B, Cin)
        rows = rows.reshape(ho, 2, w + 2, b, cin)[:, 0]        # (Ho,  W+2, B, Cin)
        for kw in range(3):
            t = rows[:, kw:kw + 2 * wo]                        # (Ho, 2Wo, B, Cin)
            taps.append(t.reshape(ho, wo, 2, b, cin)[:, :, 0])  # (Ho, Wo, B, Cin)

    # Single large-K matmul per block: K = 9*Cin, M = Ho*Wo*B (one MXU pass).
    patches = jnp.concatenate(taps, axis=-1)                   # (Ho, Wo, B, 9*Cin)
    patches = patches.reshape(ho * wo * b, 9 * cin)
    y = jnp.dot(patches.astype(jnp.bfloat16), w_ref[...],
                preferred_element_type=jnp.float32)            # (M, Cout) f32

    y = y + a_ref[0:1, :]                                      # conv bias
    y = jnp.maximum(y, 0.2 * y)                                # LeakyReLU(0.2)
    y = y * a_ref[1:2, :] + a_ref[2:3, :]                      # folded inference BN
    return y.reshape(ho, wo, b, cout)


def encoder_kernel(x_ref, *rest):
    """refs = [x, (w, a) * 4, fc_w, fc_b, out]."""
    o_ref = rest[-1]
    fcw_ref, fcb_ref = rest[-3], rest[-2]
    blk_refs = rest[:-3]
    n_blocks = len(blk_refs) // 2

    y = x_ref[0].astype(jnp.float32)                           # (H, W, B_TILE, Cin)
    for i in range(n_blocks):
        y = _conv_block(y, blk_refs[2 * i], blk_refs[2 * i + 1])

    hf, wf, bt, cf = y.shape
    latent = fcw_ref.shape[1]
    if hf * wf == 1:
        # img_size = 16 path: Linear + Tanh head as a single (B, C) x (C, L) dot.
        feat = y.reshape(bt, cf).astype(jnp.bfloat16)
        logits = jnp.dot(feat, fcw_ref[...], preferred_element_type=jnp.float32)
    else:
        # TODO(synk): for img_size > 16 present the features as one (B, P*C)
        # slab (single fc dot) instead of per-position accumulation.
        y2 = y.reshape(hf * wf, bt, cf)
        logits = jnp.zeros((bt, latent), jnp.float32)
        for p in range(hf * wf):
            logits = logits + jnp.dot(y2[p].astype(jnp.bfloat16),
                                      fcw_ref[p * cf:(p + 1) * cf, :],
                                      preferred_element_type=jnp.float32)
    o_ref[0] = jnp.tanh(logits + fcb_ref[...])


# ------------------------------ kernel wrapper -------------------------------

def _const_map(ndim):
    zeros = (0,) * ndim
    return lambda i: zeros


def _pick_batch_tile(n, max_tile=8):
    """Largest divisor of n (<= max_tile); prefer >= 2 grid steps so v7x's two
    TensorCores both get work under dimension_semantics=('parallel',)."""
    divs = [d for d in range(1, min(n, max_tile) + 1) if n % d == 0]
    two_step = [d for d in divs if n // d >= 2]
    return max(two_step) if two_step else max(divs)


@jax.jit
def encoder_forward(img_nchw, params):
    n, c, h, w = img_nchw.shape
    bt = _pick_batch_tile(n)
    num_tiles = n // bt
    latent = params["fc_b"].shape[-1]

    # NCHW -> (tiles, H, W, B_TILE, C): spatial dims outermost so the in-kernel
    # conv gather is all leading-dim ops; channels on lanes so the fused
    # K = 9*Cin contraction is lane-contiguous.  bf16 halves the input DMA.
    x = jnp.transpose(img_nchw, (2, 3, 0, 1))                  # (H, W, N, C)
    x = x.reshape(h, w, num_tiles, bt, c)
    x = jnp.transpose(x, (2, 0, 1, 3, 4)).astype(jnp.bfloat16)

    consts = []
    for blk in params["blocks"]:
        consts += [blk["w"], blk["a"]]
    consts += [params["fc_w"], params["fc_b"]]

    args = [x] + consts
    in_specs = [pl.BlockSpec((1, h, w, bt, c), lambda i: (i, 0, 0, 0, 0))]
    in_specs += [pl.BlockSpec(a.shape, _const_map(a.ndim)) for a in consts]

    # VMEM budget derived from the real footprint (constants total ~0.2 MB now
    # that the quadratic gather matrices are gone, so default double-buffering
    # of the never-changing constant blocks is harmless).
    block_bytes = x.dtype.itemsize * h * w * bt * c
    block_bytes += sum(a.size * a.dtype.itemsize for a in consts)
    block_bytes += 4 * bt * latent
    vmem_limit = int(max(16 * 1024 * 1024, 2 * block_bytes + 8 * 1024 * 1024))

    out = pl.pallas_call(
        encoder_kernel,
        out_shape=jax.ShapeDtypeStruct((num_tiles, bt, latent), jnp.float32),
        grid=(num_tiles,),
        in_specs=in_specs,
        out_specs=pl.BlockSpec((1, bt, latent), lambda i: (i, 0, 0)),
        compiler_params=pltpu.CompilerParams(
            dimension_semantics=("parallel",),      # batch tiles across TCs (v7x)
            vmem_limit_bytes=vmem_limit,
        ),
    )(*args)
    # TODO(synk): latent=32 < 128 lanes -> masked output stores; flatten the
    # per-step result to a 128-lane row once B_TILE*latent >= 128 matters.
    return out.reshape(n, latent)


# ------------------------------- parameters ----------------------------------

def init_params(key, channels, img_size, latent_dim):
    assert img_size % 16 == 0, "four stride-2 blocks need img_size % 16 == 0"
    chans = [channels, 16, 32, 64, 128]
    has_bn = [False, True, True, True]
    eps = 0.8  # nn.BatchNorm2d(out_filters, 0.8) -> eps = 0.8
    blocks = []
    for i in range(4):
        cin, cout = chans[i], chans[i + 1]
        key, kw_, kb, kg, kbe, km, kv = jax.random.split(key, 7)
        wgt = jax.random.normal(kw_, (3, 3, cin, cout), jnp.float32) * 0.1
        b = jax.random.normal(kb, (cout,), jnp.float32) * 0.05
        if has_bn[i]:
            gamma = 1.0 + 0.1 * jax.random.normal(kg, (cout,), jnp.float32)
            beta = 0.1 * jax.random.normal(kbe, (cout,), jnp.float32)
            mean = 0.1 * jax.random.normal(km, (cout,), jnp.float32)
            var = 0.5 + jnp.abs(jax.random.normal(kv, (cout,), jnp.float32))
            scale = gamma / jnp.sqrt(var + eps)
            shift = beta - mean * scale
        else:
            scale = jnp.ones((cout,), jnp.float32)
            shift = jnp.zeros((cout,), jnp.float32)
        blocks.append(dict(
            # rows ordered (tap=kh*3+kw, cin) -> matches the kernel's tap concat.
            w=wgt.reshape(9 * cin, cout).astype(jnp.bfloat16),
            a=jnp.stack([b, scale, shift], axis=0),            # (3, Cout) f32
        ))
    ds = img_size // 2 ** 4
    key, kfw, kfb = jax.random.split(key, 3)
    # fc weights stored in (h, w, c)-flatten order (matches the kernel / NHWC
    # reference); permute when importing real torch weights with ds > 1.
    fc_w = jax.random.normal(kfw, (ds * ds, 128, latent_dim), jnp.float32) * 0.1
    fc_b = jax.random.normal(kfb, (1, latent_dim), jnp.float32) * 0.05
    return dict(blocks=blocks,
                fc_w=fc_w.reshape(ds * ds * 128, latent_dim).astype(jnp.bfloat16),
                fc_b=fc_b)


# --------------------------- pure-JAX reference (f32) ------------------------

def reference_forward(img_nchw, params):
    x = jnp.transpose(img_nchw, (0, 2, 3, 1)).astype(jnp.float32)   # NHWC
    for blk in params["blocks"]:
        w = blk["w"].astype(jnp.float32)                     # (9*Cin, Cout)
        cout = w.shape[1]
        cin = w.shape[0] // 9
        w_hwio = w.reshape(3, 3, cin, cout)
        y = jax.lax.conv_general_dilated(
            x, w_hwio, window_strides=(2, 2), padding=((1, 1), (1, 1)),
            dimension_numbers=("NHWC", "HWIO", "NHWC"))
        a = blk["a"]
        y = y + a[0]
        y = jnp.maximum(y, 0.2 * y)
        x = y * a[1] + a[2]
    n = x.shape[0]
    feats = x.reshape(n, -1)                                  # (h, w, c) order
    logits = feats @ params["fc_w"].astype(jnp.float32)
    return jnp.tanh(logits + params["fc_b"])


# ---------------------------------- main --------------------------------------

if __name__ == "__main__":
    batch, channels, img_size, latent_dim = 2, 4, 16, 32

    key = jax.random.PRNGKey(0)
    k_img, k_par = jax.random.split(key)
    img = jax.random.normal(k_img, (batch, channels, img_size, img_size), jnp.float32)
    params = init_params(k_par, channels, img_size, latent_dim)

    out = encoder_forward(img, params)
    jax.block_until_ready(out)
    assert out.shape == (batch, latent_dim)
    assert bool(jnp.all(jnp.isfinite(out)))

    ref = reference_forward(img, params)
    max_err = float(jnp.max(jnp.abs(out - ref)))
    assert max_err < 5e-2, f"kernel/reference mismatch: {max_err}"

    print("KERNEL_OK")
</pallas_src>

<mosaic_0001>
module attributes {stable_mosaic.version = 11 : i64} {
  func.func @encoder_kernel(%arg0: i32, %arg1: memref<1x16x16x1x4xbf16, #tpu.memory_space<vmem>>, %arg2: memref<36x16xbf16, #tpu.memory_space<vmem>>, %arg3: memref<3x16xf32, #tpu.memory_space<vmem>>, %arg4: memref<144x32xbf16, #tpu.memory_space<vmem>>, %arg5: memref<3x32xf32, #tpu.memory_space<vmem>>, %arg6: memref<288x64xbf16, #tpu.memory_space<vmem>>, %arg7: memref<3x64xf32, #tpu.memory_space<vmem>>, %arg8: memref<576x128xbf16, #tpu.memory_space<vmem>>, %arg9: memref<3x128xf32, #tpu.memory_space<vmem>>, %arg10: memref<128x32xbf16, #tpu.memory_space<vmem>>, %arg11: memref<1x32xf32, #tpu.memory_space<vmem>>, %arg12: memref<1x1x32xf32, #tpu.memory_space<vmem>>) attributes {dimension_semantics = [#tpu.dimension_semantics<parallel>], iteration_bounds = array<i64: 2>, scalar_prefetch = 0 : i64, scratch_operands = 0 : i64, tpu.core_type = #tpu.core_type<tc>, window_params = [{transform_indices = @transform_0, window_bounds = array<i64: 1, 16, 16, 1, 4>}, {pipeline_mode = #tpu.pipeline_mode<synchronous>, transform_indices = @transform_1, window_bounds = array<i64: 36, 16>}, {pipeline_mode = #tpu.pipeline_mode<synchronous>, transform_indices = @transform_2, window_bounds = array<i64: 3, 16>}, {pipeline_mode = #tpu.pipeline_mode<synchronous>, transform_indices = @transform_3, window_bounds = array<i64: 144, 32>}, {pipeline_mode = #tpu.pipeline_mode<synchronous>, transform_indices = @transform_4, window_bounds = array<i64: 3, 32>}, {pipeline_mode = #tpu.pipeline_mode<synchronous>, transform_indices = @transform_5, window_bounds = array<i64: 288, 64>}, {pipeline_mode = #tpu.pipeline_mode<synchronous>, transform_indices = @transform_6, window_bounds = array<i64: 3, 64>}, {pipeline_mode = #tpu.pipeline_mode<synchronous>, transform_indices = @transform_7, window_bounds = array<i64: 576, 128>}, {pipeline_mode = #tpu.pipeline_mode<synchronous>, transform_indices = @transform_8, window_bounds = array<i64: 3, 128>}, {pipeline_mode = #tpu.pipeline_mode<synchronous>, transform_indices = @transform_9, window_bounds = array<i64: 128, 32>}, {pipeline_mode = #tpu.pipeline_mode<synchronous>, transform_indices = @transform_10, window_bounds = array<i64: 1, 32>}, {transform_indices = @transform_11, window_bounds = array<i64: 1, 1, 32>}]} {
    %c0 = arith.constant 0 : index
    %c0_0 = arith.constant 0 : index
    %c0_1 = arith.constant 0 : index
    %c0_2 = arith.constant 0 : index
    %c0_3 = arith.constant 0 : index
    %0 = vector.load %arg1[%c0, %c0_0, %c0_1, %c0_2, %c0_3] : memref<1x16x16x1x4xbf16, #tpu.memory_space<vmem>>, vector<1x16x16x1x4xbf16>
    %1 = vector.shape_cast %0 : vector<1x16x16x1x4xbf16> to vector<16x16x1x4xbf16>
    %2 = arith.extf %1 : vector<16x16x1x4xbf16> to vector<16x16x1x4xf32>
    %cst = arith.constant 0.000000e+00 : f32
    %3 = vector.broadcast %cst : f32 to vector<1x16x1x4xf32>
    %4 = tpu.concatenate %3, %2, %3 in 0 : vector<1x16x1x4xf32>, vector<16x16x1x4xf32>, vector<1x16x1x4xf32> -> vector<18x16x1x4xf32>
    %cst_4 = arith.constant 0.000000e+00 : f32
    %5 = vector.broadcast %cst_4 : f32 to vector<18x1x1x4xf32>
    %6 = tpu.concatenate %5, %4, %5 in 1 : vector<18x1x1x4xf32>, vector<18x16x1x4xf32>, vector<18x1x1x4xf32> -> vector<18x18x1x4xf32>
    %7 = vector.extract_strided_slice %6 {offsets = [0, 0, 0, 0], sizes = [16, 18, 1, 4], strides = [1, 1, 1, 1]} : vector<18x18x1x4xf32> to vector<16x18x1x4xf32>
    %8 = vector.shape_cast %7 : vector<16x18x1x4xf32> to vector<8x2x18x1x4xf32>
    %9 = vector.extract_strided_slice %8 {offsets = [0, 0, 0, 0, 0], sizes = [8, 1, 18, 1, 4], strides = [1, 1, 1, 1, 1]} : vector<8x2x18x1x4xf32> to vector<8x1x18x1x4xf32>
    %10 = vector.shape_cast %9 : vector<8x1x18x1x4xf32> to vector<8x18x1x4xf32>
    %11 = vector.extract_strided_slice %10 {offsets = [0, 0, 0, 0], sizes = [8, 16, 1, 4], strides = [1, 1, 1, 1]} : vector<8x18x1x4xf32> to vector<8x16x1x4xf32>
    %12 = vector.shape_cast %11 : vector<8x16x1x4xf32> to vector<8x8x2x1x4xf32>
    %13 = vector.extract_strided_slice %12 {offsets = [0, 0, 0, 0, 0], sizes = [8, 8, 1, 1, 4], strides = [1, 1, 1, 1, 1]} : vector<8x8x2x1x4xf32> to vector<8x8x1x1x4xf32>
    %14 = vector.shape_cast %13 : vector<8x8x1x1x4xf32> to vector<8x8x1x4xf32>
    %15 = vector.extract_strided_slice %10 {offsets = [0, 1, 0, 0], sizes = [8, 16, 1, 4], strides = [1, 1, 1, 1]} : vector<8x18x1x4xf32> to vector<8x16x1x4xf32>
    %16 = vector.shape_cast %15 : vector<8x16x1x4xf32> to vector<8x8x2x1x4xf32>
    %17 = vector.extract_strided_slice %16 {offsets = [0, 0, 0, 0, 0], sizes = [8, 8, 1, 1, 4], strides = [1, 1, 1, 1, 1]} : vector<8x8x2x1x4xf32> to vector<8x8x1x1x4xf32>
    %18 = vector.shape_cast %17 : vector<8x8x1x1x4xf32> to vector<8x8x1x4xf32>
    %19 = vector.extract_strided_slice %10 {offsets = [0, 2, 0, 0], sizes = [8, 16, 1, 4], strides = [1, 1, 1, 1]} : vector<8x18x1x4xf32> to vector<8x16x1x4xf32>
    %20 = vector.shape_cast %19 : vector<8x16x1x4xf32> to vector<8x8x2x1x4xf32>
    %21 = vector.extract_strided_slice %20 {offsets = [0, 0, 0, 0, 0], sizes = [8, 8, 1, 1, 4], strides = [1, 1, 1, 1, 1]} : vector<8x8x2x1x4xf32> to vector<8x8x1x1x4xf32>
    %22 = vector.shape_cast %21 : vector<8x8x1x1x4xf32> to vector<8x8x1x4xf32>
    %23 = vector.extract_strided_slice %6 {offsets = [1, 0, 0, 0], sizes = [16, 18, 1, 4], strides = [1, 1, 1, 1]} : vector<18x18x1x4xf32> to vector<16x18x1x4xf32>
    %24 = vector.shape_cast %23 : vector<16x18x1x4xf32> to vector<8x2x18x1x4xf32>
    %25 = vector.extract_strided_slice %24 {offsets = [0, 0, 0, 0, 0], sizes = [8, 1, 18, 1, 4], strides = [1, 1, 1, 1, 1]} : vector<8x2x18x1x4xf32> to vector<8x1x18x1x4xf32>
    %26 = vector.shape_cast %25 : vector<8x1x18x1x4xf32> to vector<8x18x1x4xf32>
    %27 = vector.extract_strided_slice %26 {offsets = [0, 0, 0, 0], sizes = [8, 16, 1, 4], strides = [1, 1, 1, 1]} : vector<8x18x1x4xf32> to vector<8x16x1x4xf32>
    %28 = vector.shape_cast %27 : vector<8x16x1x4xf32> to vector<8x8x2x1x4xf32>
    %29 = vector.extract_strided_slice %28 {offsets = [0, 0, 0, 0, 0], sizes = [8, 8, 1, 1, 4], strides = [1, 1, 1, 1, 1]} : vector<8x8x2x1x4xf32> to vector<8x8x1x1x4xf32>
    %30 = vector.shape_cast %29 : vector<8x8x1x1x4xf32> to vector<8x8x1x4xf32>
    %31 = vector.extract_strided_slice %26 {offsets = [0, 1, 0, 0], sizes = [8, 16, 1, 4], strides = [1, 1, 1, 1]} : vector<8x18x1x4xf32> to vector<8x16x1x4xf32>
    %32 = vector.shape_cast %31 : vector<8x16x1x4xf32> to vector<8x8x2x1x4xf32>
    %33 = vector.extract_strided_slice %32 {offsets = [0, 0, 0, 0, 0], sizes = [8, 8, 1, 1, 4], strides = [1, 1, 1, 1, 1]} : vector<8x8x2x1x4xf32> to vector<8x8x1x1x4xf32>
    %34 = vector.shape_cast %33 : vector<8x8x1x1x4xf32> to vector<8x8x1x4xf32>
    %35 = vector.extract_strided_slice %26 {offsets = [0, 2, 0, 0], sizes = [8, 16, 1, 4], strides = [1, 1, 1, 1]} : vector<8x18x1x4xf32> to vector<8x16x1x4xf32>
    %36 = vector.shape_cast %35 : vector<8x16x1x4xf32> to vector<8x8x2x1x4xf32>
    %37 = vector.extract_strided_slice %36 {offsets = [0, 0, 0, 0, 0], sizes = [8, 8, 1, 1, 4], strides = [1, 1, 1, 1, 1]} : vector<8x8x2x1x4xf32> to vector<8x8x1x1x4xf32>
    %38 = vector.shape_cast %37 : vector<8x8x1x1x4xf32> to vector<8x8x1x4xf32>
    %39 = vector.extract_strided_slice %6 {offsets = [2, 0, 0, 0], sizes = [16, 18, 1, 4], strides = [1, 1, 1, 1]} : vector<18x18x1x4xf32> to vector<16x18x1x4xf32>
    %40 = vector.shape_cast %39 : vector<16x18x1x4xf32> to vector<8x2x18x1x4xf32>
    %41 = vector.extract_strided_slice %40 {offsets = [0, 0, 0, 0, 0], sizes = [8, 1, 18, 1, 4], strides = [1, 1, 1, 1, 1]} : vector<8x2x18x1x4xf32> to vector<8x1x18x1x4xf32>
    %42 = vector.shape_cast %41 : vector<8x1x18x1x4xf32> to vector<8x18x1x4xf32>
    %43 = vector.extract_strided_slice %42 {offsets = [0, 0, 0, 0], sizes = [8, 16, 1, 4], strides = [1, 1, 1, 1]} : vector<8x18x1x4xf32> to vector<8x16x1x4xf32>
    %44 = vector.shape_cast %43 : vector<8x16x1x4xf32> to vector<8x8x2x1x4xf32>
    %45 = vector.extract_strided_slice %44 {offsets = [0, 0, 0, 0, 0], sizes = [8, 8, 1, 1, 4], strides = [1, 1, 1, 1, 1]} : vector<8x8x2x1x4xf32> to vector<8x8x1x1x4xf32>
    %46 = vector.shape_cast %45 : vector<8x8x1x1x4xf32> to vector<8x8x1x4xf32>
    %47 = vector.extract_strided_slice %42 {offsets = [0, 1, 0, 0], sizes = [8, 16, 1, 4], strides = [1, 1, 1, 1]} : vector<8x18x1x4xf32> to vector<8x16x1x4xf32>
    %48 = vector.shape_cast %47 : vector<8x16x1x4xf32> to vector<8x8x2x1x4xf32>
    %49 = vector.extract_strided_slice %48 {offsets = [0, 0, 0, 0, 0], sizes = [8, 8, 1, 1, 4], strides = [1, 1, 1, 1, 1]} : vector<8x8x2x1x4xf32> to vector<8x8x1x1x4xf32>
    %50 = vector.shape_cast %49 : vector<8x8x1x1x4xf32> to vector<8x8x1x4xf32>
    %51 = vector.extract_strided_slice %42 {offsets = [0, 2, 0, 0], sizes = [8, 16, 1, 4], strides = [1, 1, 1, 1]} : vector<8x18x1x4xf32> to vector<8x16x1x4xf32>
    %52 = vector.shape_cast %51 : vector<8x16x1x4xf32> to vector<8x8x2x1x4xf32>
    %53 = vector.extract_strided_slice %52 {offsets = [0, 0, 0, 0, 0], sizes = [8, 8, 1, 1, 4], strides = [1, 1, 1, 1, 1]} : vector<8x8x2x1x4xf32> to vector<8x8x1x1x4xf32>
    %54 = vector.shape_cast %53 : vector<8x8x1x1x4xf32> to vector<8x8x1x4xf32>
    %55 = tpu.concatenate %14, %18, %22, %30, %34, %38, %46, %50, %54 in 3 : vector<8x8x1x4xf32>, vector<8x8x1x4xf32>, vector<8x8x1x4xf32>, vector<8x8x1x4xf32>, vector<8x8x1x4xf32>, vector<8x8x1x4xf32>, vector<8x8x1x4xf32>, vector<8x8x1x4xf32>, vector<8x8x1x4xf32> -> vector<8x8x1x36xf32>
    %56 = vector.shape_cast %55 : vector<8x8x1x36xf32> to vector<64x36xf32>
    %57 = arith.truncf %56 : vector<64x36xf32> to vector<64x36xbf16>
    %c0_5 = arith.constant 0 : index
    %c0_6 = arith.constant 0 : index
    %58 = vector.load %arg2[%c0_5, %c0_6] : memref<36x16xbf16, #tpu.memory_space<vmem>>, vector<36x16xbf16>
    %cst_7 = arith.constant dense<0.000000e+00> : vector<64x16xf32>
    %59 = tpu.matmul %57, %58, %cst_7 {dimension_numbers = #tpu.dot_dimension_numbers<[1], [0], [0], [1], [0, 0, 1, 1], [], []>} : vector<64x36xbf16>, vector<36x16xbf16>, vector<64x16xf32> -> vector<64x16xf32>
    %c0_8 = arith.constant 0 : index
    %c0_9 = arith.constant 0 : index
    %60 = vector.load %arg3[%c0_8, %c0_9] : memref<3x16xf32, #tpu.memory_space<vmem>>, vector<1x16xf32>
    %61 = vector.broadcast %60 : vector<1x16xf32> to vector<64x16xf32>
    %62 = arith.addf %59, %61 : vector<64x16xf32>
    %cst_10 = arith.constant 2.000000e-01 : f32
    %63 = vector.broadcast %cst_10 : f32 to vector<64x16xf32>
    %64 = arith.mulf %63, %62 : vector<64x16xf32>
    %65 = arith.maximumf %62, %64 : vector<64x16xf32>
    %c1 = arith.constant 1 : index
    %c0_11 = arith.constant 0 : index
    %66 = vector.load %arg3[%c1, %c0_11] : memref<3x16xf32, #tpu.memory_space<vmem>>, vector<1x16xf32>
    %67 = vector.broadcast %66 : vector<1x16xf32> to vector<64x16xf32>
    %68 = arith.mulf %65, %67 : vector<64x16xf32>
    %c2 = arith.constant 2 : index
    %c0_12 = arith.constant 0 : index
    %69 = vector.load %arg3[%c2, %c0_12] : memref<3x16xf32, #tpu.memory_space<vmem>>, vector<1x16xf32>
    %70 = vector.broadcast %69 : vector<1x16xf32> to vector<64x16xf32>
    %71 = arith.addf %68, %70 : vector<64x16xf32>
    %72 = vector.shape_cast %71 : vector<64x16xf32> to vector<8x8x1x16xf32>
    %cst_13 = arith.constant 0.000000e+00 : f32
    %73 = vector.broadcast %cst_13 : f32 to vector<1x8x1x16xf32>
    %74 = tpu.concatenate %73, %72, %73 in 0 : vector<1x8x1x16xf32>, vector<8x8x1x16xf32>, vector<1x8x1x16xf32> -> vector<10x8x1x16xf32>
    %cst_14 = arith.constant 0.000000e+00 : f32
    %75 = vector.broadcast %cst_14 : f32 to vector<10x1x1x16xf32>
    %76 = tpu.concatenate %75, %74, %75 in 1 : vector<10x1x1x16xf32>, vector<10x8x1x16xf32>, vector<10x1x1x16xf32> -> vector<10x10x1x16xf32>
    %77 = vector.extract_strided_slice %76 {offsets = [0, 0, 0, 0], sizes = [8, 10, 1, 16], strides = [1, 1, 1, 1]} : vector<10x10x1x16xf32> to vector<8x10x1x16xf32>
    %78 = vector.shape_cast %77 : vector<8x10x1x16xf32> to vector<4x2x10x1x16xf32>
    %79 = vector.extract_strided_slice %78 {offsets = [0, 0, 0, 0, 0], sizes = [4, 1, 10, 1, 16], strides = [1, 1, 1, 1, 1]} : vector<4x2x10x1x16xf32> to vector<4x1x10x1x16xf32>
    %80 = vector.shape_cast %79 : vector<4x1x10x1x16xf32> to vector<4x10x1x16xf32>
    %81 = vector.extract_strided_slice %80 {offsets = [0, 0, 0, 0], sizes = [4, 8, 1, 16], strides = [1, 1, 1, 1]} : vector<4x10x1x16xf32> to vector<4x8x1x16xf32>
    %82 = vector.shape_cast %81 : vector<4x8x1x16xf32> to vector<4x4x2x1x16xf32>
    %83 = vector.extract_strided_slice %82 {offsets = [0, 0, 0, 0, 0], sizes = [4, 4, 1, 1, 16], strides = [1, 1, 1, 1, 1]} : vector<4x4x2x1x16xf32> to vector<4x4x1x1x16xf32>
    %84 = vector.shape_cast %83 : vector<4x4x1x1x16xf32> to vector<4x4x1x16xf32>
    %85 = vector.extract_strided_slice %80 {offsets = [0, 1, 0, 0], sizes = [4, 8, 1, 16], strides = [1, 1, 1, 1]} : vector<4x10x1x16xf32> to vector<4x8x1x16xf32>
    %86 = vector.shape_cast %85 : vector<4x8x1x16xf32> to vector<4x4x2x1x16xf32>
    %87 = vector.extract_strided_slice %86 {offsets = [0, 0, 0, 0, 0], sizes = [4, 4, 1, 1, 16], strides = [1, 1, 1, 1, 1]} : vector<4x4x2x1x16xf32> to vector<4x4x1x1x16xf32>
    %88 = vector.shape_cast %87 : vector<4x4x1x1x16xf32> to vector<4x4x1x16xf32>
    %89 = vector.extract_strided_slice %80 {offsets = [0, 2, 0, 0], sizes = [4, 8, 1, 16], strides = [1, 1, 1, 1]} : vector<4x10x1x16xf32> to vector<4x8x1x16xf32>
    %90 = vector.shape_cast %89 : vector<4x8x1x16xf32> to vector<4x4x2x1x16xf32>
    %91 = vector.extract_strided_slice %90 {offsets = [0, 0, 0, 0, 0], sizes = [4, 4, 1, 1, 16], strides = [1, 1, 1, 1, 1]} : vector<4x4x2x1x16xf32> to vector<4x4x1x1x16xf32>
    %92 = vector.shape_cast %91 : vector<4x4x1x1x16xf32> to vector<4x4x1x16xf32>
    %93 = vector.extract_strided_slice %76 {offsets = [1, 0, 0, 0], sizes = [8, 10, 1, 16], strides = [1, 1, 1, 1]} : vector<10x10x1x16xf32> to vector<8x10x1x16xf32>
    %94 = vector.shape_cast %93 : vector<8x10x1x16xf32> to vector<4x2x10x1x16xf32>
    %95 = vector.extract_strided_slice %94 {offsets = [0, 0, 0, 0, 0], sizes = [4, 1, 10, 1, 16], strides = [1, 1, 1, 1, 1]} : vector<4x2x10x1x16xf32> to vector<4x1x10x1x16xf32>
    %96 = vector.shape_cast %95 : vector<4x1x10x1x16xf32> to vector<4x10x1x16xf32>
    %97 = vector.extract_strided_slice %96 {offsets = [0, 0, 0, 0], sizes = [4, 8, 1, 16], strides = [1, 1, 1, 1]} : vector<4x10x1x16xf32> to vector<4x8x1x16xf32>
    %98 = vector.shape_cast %97 : vector<4x8x1x16xf32> to vector<4x4x2x1x16xf32>
    %99 = vector.extract_strided_slice %98 {offsets = [0, 0, 0, 0, 0], sizes = [4, 4, 1, 1, 16], strides = [1, 1, 1, 1, 1]} : vector<4x4x2x1x16xf32> to vector<4x4x1x1x16xf32>
    %100 = vector.shape_cast %99 : vector<4x4x1x1x16xf32> to vector<4x4x1x16xf32>
    %101 = vector.extract_strided_slice %96 {offsets = [0, 1, 0, 0], sizes = [4, 8, 1, 16], strides = [1, 1, 1, 1]} : vector<4x10x1x16xf32> to vector<4x8x1x16xf32>
    %102 = vector.shape_cast %101 : vector<4x8x1x16xf32> to vector<4x4x2x1x16xf32>
    %103 = vector.extract_strided_slice %102 {offsets = [0, 0, 0, 0, 0], sizes = [4, 4, 1, 1, 16], strides = [1, 1, 1, 1, 1]} : vector<4x4x2x1x16xf32> to vector<4x4x1x1x16xf32>
    %104 = vector.shape_cast %103 : vector<4x4x1x1x16xf32> to vector<4x4x1x16xf32>
    %105 = vector.extract_strided_slice %96 {offsets = [0, 2, 0, 0], sizes = [4, 8, 1, 16], strides = [1, 1, 1, 1]} : vector<4x10x1x16xf32> to vector<4x8x1x16xf32>
    %106 = vector.shape_cast %105 : vector<4x8x1x16xf32> to vector<4x4x2x1x16xf32>
    %107 = vector.extract_strided_slice %106 {offsets = [0, 0, 0, 0, 0], sizes = [4, 4, 1, 1, 16], strides = [1, 1, 1, 1, 1]} : vector<4x4x2x1x16xf32> to vector<4x4x1x1x16xf32>
    %108 = vector.shape_cast %107 : vector<4x4x1x1x16xf32> to vector<4x4x1x16xf32>
    %109 = vector.extract_strided_slice %76 {offsets = [2, 0, 0, 0], sizes = [8, 10, 1, 16], strides = [1, 1, 1, 1]} : vector<10x10x1x16xf32> to vector<8x10x1x16xf32>
    %110 = vector.shape_cast %109 : vector<8x10x1x16xf32> to vector<4x2x10x1x16xf32>
    %111 = vector.extract_strided_slice %110 {offsets = [0, 0, 0, 0, 0], sizes = [4, 1, 10, 1, 16], strides = [1, 1, 1, 1, 1]} : vector<4x2x10x1x16xf32> to vector<4x1x10x1x16xf32>
    %112 = vector.shape_cast %111 : vector<4x1x10x1x16xf32> to vector<4x10x1x16xf32>
    %113 = vector.extract_strided_slice %112 {offsets = [0, 0, 0, 0], sizes = [4, 8, 1, 16], strides = [1, 1, 1, 1]} : vector<4x10x1x16xf32> to vector<4x8x1x16xf32>
    %114 = vector.shape_cast %113 : vector<4x8x1x16xf32> to vector<4x4x2x1x16xf32>
    %115 = vector.extract_strided_slice %114 {offsets = [0, 0, 0, 0, 0], sizes = [4, 4, 1, 1, 16], strides = [1, 1, 1, 1, 1]} : vector<4x4x2x1x16xf32> to vector<4x4x1x1x16xf32>
    %116 = vector.shape_cast %115 : vector<4x4x1x1x16xf32> to vector<4x4x1x16xf32>
    %117 = vector.extract_strided_slice %112 {offsets = [0, 1, 0, 0], sizes = [4, 8, 1, 16], strides = [1, 1, 1, 1]} : vector<4x10x1x16xf32> to vector<4x8x1x16xf32>
    %118 = vector.shape_cast %117 : vector<4x8x1x16xf32> to vector<4x4x2x1x16xf32>
    %119 = vector.extract_strided_slice %118 {offsets = [0, 0, 0, 0, 0], sizes = [4, 4, 1, 1, 16], strides = [1, 1, 1, 1, 1]} : vector<4x4x2x1x16xf32> to vector<4x4x1x1x16xf32>
    %120 = vector.shape_cast %119 : vector<4x4x1x1x16xf32> to vector<4x4x1x16xf32>
    %121 = vector.extract_strided_slice %112 {offsets = [0, 2, 0, 0], sizes = [4, 8, 1, 16], strides = [1, 1, 1, 1]} : vector<4x10x1x16xf32> to vector<4x8x1x16xf32>
    %122 = vector.shape_cast %121 : vector<4x8x1x16xf32> to vector<4x4x2x1x16xf32>
    %123 = vector.extract_strided_slice %122 {offsets = [0, 0, 0, 0, 0], sizes = [4, 4, 1, 1, 16], strides = [1, 1, 1, 1, 1]} : vector<4x4x2x1x16xf32> to vector<4x4x1x1x16xf32>
    %124 = vector.shape_cast %123 : vector<4x4x1x1x16xf32> to vector<4x4x1x16xf32>
    %125 = tpu.concatenate %84, %88, %92, %100, %104, %108, %116, %120, %124 in 3 : vector<4x4x1x16xf32>, vector<4x4x1x16xf32>, vector<4x4x1x16xf32>, vector<4x4x1x16xf32>, vector<4x4x1x16xf32>, vector<4x4x1x16xf32>, vector<4x4x1x16xf32>, vector<4x4x1x16xf32>, vector<4x4x1x16xf32> -> vector<4x4x1x144xf32>
    %126 = vector.shape_cast %125 : vector<4x4x1x144xf32> to vector<16x144xf32>
    %127 = arith.truncf %126 : vector<16x144xf32> to vector<16x144xbf16>
    %c0_15 = arith.constant 0 : index
    %c0_16 = arith.constant 0 : index
    %128 = vector.load %arg4[%c0_15, %c0_16] : memref<144x32xbf16, #tpu.memory_space<vmem>>, vector<144x32xbf16>
    %cst_17 = arith.constant dense<0.000000e+00> : vector<16x32xf32>
    %129 = tpu.matmul %127, %128, %cst_17 {dimension_numbers = #tpu.dot_dimension_numbers<[1], [0], [0], [1], [0, 0, 1, 1], [], []>} : vector<16x144xbf16>, vector<144x32xbf16>, vector<16x32xf32> -> vector<16x32xf32>
    %c0_18 = arith.constant 0 : index
    %c0_19 = arith.constant 0 : index
    %130 = vector.load %arg5[%c0_18, %c0_19] : memref<3x32xf32, #tpu.memory_space<vmem>>, vector<1x32xf32>
    %131 = vector.broadcast %130 : vector<1x32xf32> to vector<16x32xf32>
    %132 = arith.addf %129, %131 : vector<16x32xf32>
    %cst_20 = arith.constant 2.000000e-01 : f32
    %133 = vector.broadcast %cst_20 : f32 to vector<16x32xf32>
    %134 = arith.mulf %133, %132 : vector<16x32xf32>
    %135 = arith.maximumf %132, %134 : vector<16x32xf32>
    %c1_21 = arith.constant 1 : index
    %c0_22 = arith.constant 0 : index
    %136 = vector.load %arg5[%c1_21, %c0_22] : memref<3x32xf32, #tpu.memory_space<vmem>>, vector<1x32xf32>
    %137 = vector.broadcast %136 : vector<1x32xf32> to vector<16x32xf32>
    %138 = arith.mulf %135, %137 : vector<16x32xf32>
    %c2_23 = arith.constant 2 : index
    %c0_24 = arith.constant 0 : index
    %139 = vector.load %arg5[%c2_23, %c0_24] : memref<3x32xf32, #tpu.memory_space<vmem>>, vector<1x32xf32>
    %140 = vector.broadcast %139 : vector<1x32xf32> to vector<16x32xf32>
    %141 = arith.addf %138, %140 : vector<16x32xf32>
    %142 = vector.shape_cast %141 : vector<16x32xf32> to vector<4x4x1x32xf32>
    %cst_25 = arith.constant 0.000000e+00 : f32
    %143 = vector.broadcast %cst_25 : f32 to vector<1x4x1x32xf32>
    %144 = tpu.concatenate %143, %142, %143 in 0 : vector<1x4x1x32xf32>, vector<4x4x1x32xf32>, vector<1x4x1x32xf32> -> vector<6x4x1x32xf32>
    %cst_26 = arith.constant 0.000000e+00 : f32
    %145 = vector.broadcast %cst_26 : f32 to vector<6x1x1x32xf32>
    %146 = tpu.concatenate %145, %144, %145 in 1 : vector<6x1x1x32xf32>, vector<6x4x1x32xf32>, vector<6x1x1x32xf32> -> vector<6x6x1x32xf32>
    %147 = vector.extract_strided_slice %146 {offsets = [0, 0, 0, 0], sizes = [4, 6, 1, 32], strides = [1, 1, 1, 1]} : vector<6x6x1x32xf32> to vector<4x6x1x32xf32>
    %148 = vector.shape_cast %147 : vector<4x6x1x32xf32> to vector<2x2x6x1x32xf32>
    %149 = vector.extract_strided_slice %148 {offsets = [0, 0, 0, 0, 0], sizes = [2, 1, 6, 1, 32], strides = [1, 1, 1, 1, 1]} : vector<2x2x6x1x32xf32> to vector<2x1x6x1x32xf32>
    %150 = vector.shape_cast %149 : vector<2x1x6x1x32xf32> to vector<2x6x1x32xf32>
    %151 = vector.extract_strided_slice %150 {offsets = [0, 0, 0, 0], sizes = [2, 4, 1, 32], strides = [1, 1, 1, 1]} : vector<2x6x1x32xf32> to vector<2x4x1x32xf32>
    %152 = vector.shape_cast %151 : vector<2x4x1x32xf32> to vector<2x2x2x1x32xf32>
    %153 = vector.extract_strided_slice %152 {offsets = [0, 0, 0, 0, 0], sizes = [2, 2, 1, 1, 32], strides = [1, 1, 1, 1, 1]} : vector<2x2x2x1x32xf32> to vector<2x2x1x1x32xf32>
    %154 = vector.shape_cast %153 : vector<2x2x1x1x32xf32> to vector<2x2x1x32xf32>
    %155 = vector.extract_strided_slice %150 {offsets = [0, 1, 0, 0], sizes = [2, 4, 1, 32], strides = [1, 1, 1, 1]} : vector<2x6x1x32xf32> to vector<2x4x1x32xf32>
    %156 = vector.shape_cast %155 : vector<2x4x1x32xf32> to vector<2x2x2x1x32xf32>
    %157 = vector.extract_strided_slice %156 {offsets = [0, 0, 0, 0, 0], sizes = [2, 2, 1, 1, 32], strides = [1, 1, 1, 1, 1]} : vector<2x2x2x1x32xf32> to vector<2x2x1x1x32xf32>
    %158 = vector.shape_cast %157 : vector<2x2x1x1x32xf32> to vector<2x2x1x32xf32>
    %159 = vector.extract_strided_slice %150 {offsets = [0, 2, 0, 0], sizes = [2, 4, 1, 32], strides = [1, 1, 1, 1]} : vector<2x6x1x32xf32> to vector<2x4x1x32xf32>
    %160 = vector.shape_cast %159 : vector<2x4x1x32xf32> to vector<2x2x2x1x32xf32>
    %161 = vector.extract_strided_slice %160 {offsets = [0, 0, 0, 0, 0], sizes = [2, 2, 1, 1, 32], strides = [1, 1, 1, 1, 1]} : vector<2x2x2x1x32xf32> to vector<2x2x1x1x32xf32>
    %162 = vector.shape_cast %161 : vector<2x2x1x1x32xf32> to vector<2x2x1x32xf32>
    %163 = vector.extract_strided_slice %146 {offsets = [1, 0, 0, 0], sizes = [4, 6, 1, 32], strides = [1, 1, 1, 1]} : vector<6x6x1x32xf32> to vector<4x6x1x32xf32>
    %164 = vector.shape_cast %163 : vector<4x6x1x32xf32> to vector<2x2x6x1x32xf32>
    %165 = vector.extract_strided_slice %164 {offsets = [0, 0, 0, 0, 0], sizes = [2, 1, 6, 1, 32], strides = [1, 1, 1, 1, 1]} : vector<2x2x6x1x32xf32> to vector<2x1x6x1x32xf32>
    %166 = vector.shape_cast %165 : vector<2x1x6x1x32xf32> to vector<2x6x1x32xf32>
    %167 = vector.extract_strided_slice %166 {offsets = [0, 0, 0, 0], sizes = [2, 4, 1, 32], strides = [1, 1, 1, 1]} : vector<2x6x1x32xf32> to vector<2x4x1x32xf32>
    %168 = vector.shape_cast %167 : vector<2x4x1x32xf32> to vector<2x2x2x1x32xf32>
    %169 = vector.extract_strided_slice %168 {offsets = [0, 0, 0, 0, 0], sizes = [2, 2, 1, 1, 32], strides = [1, 1, 1, 1, 1]} : vector<2x2x2x1x32xf32> to vector<2x2x1x1x32xf32>
    %170 = vector.shape_cast %169 : vector<2x2x1x1x32xf32> to vector<2x2x1x32xf32>
    %171 = vector.extract_strided_slice %166 {offsets = [0, 1, 0, 0], sizes = [2, 4, 1, 32], strides = [1, 1, 1, 1]} : vector<2x6x1x32xf32> to vector<2x4x1x32xf32>
    %172 = vector.shape_cast %171 : vector<2x4x1x32xf32> to vector<2x2x2x1x32xf32>
    %173 = vector.extract_strided_slice %172 {offsets = [0, 0, 0, 0, 0], sizes = [2, 2, 1, 1, 32], strides = [1, 1, 1, 1, 1]} : vector<2x2x2x1x32xf32> to vector<2x2x1x1x32xf32>
    %174 = vector.shape_cast %173 : vector<2x2x1x1x32xf32> to vector<2x2x1x32xf32>
    %175 = vector.extract_strided_slice %166 {offsets = [0, 2, 0, 0], sizes = [2, 4, 1, 32], strides = [1, 1, 1, 1]} : vector<2x6x1x32xf32> to vector<2x4x1x32xf32>
    %176 = vector.shape_cast %175 : vector<2x4x1x32xf32> to vector<2x2x2x1x32xf32>
    %177 = vector.extract_strided_slice %176 {offsets = [0, 0, 0, 0, 0], sizes = [2, 2, 1, 1, 32], strides = [1, 1, 1, 1, 1]} : vector<2x2x2x1x32xf32> to vector<2x2x1x1x32xf32>
    %178 = vector.shape_cast %177 : vector<2x2x1x1x32xf32> to vector<2x2x1x32xf32>
    %179 = vector.extract_strided_slice %146 {offsets = [2, 0, 0, 0], sizes = [4, 6, 1, 32], strides = [1, 1, 1, 1]} : vector<6x6x1x32xf32> to vector<4x6x1x32xf32>
    %180 = vector.shape_cast %179 : vector<4x6x1x32xf32> to vector<2x2x6x1x32xf32>
    %181 = vector.extract_strided_slice %180 {offsets = [0, 0, 0, 0, 0], sizes = [2, 1, 6, 1, 32], strides = [1, 1, 1, 1, 1]} : vector<2x2x6x1x32xf32> to vector<2x1x6x1x32xf32>
    %182 = vector.shape_cast %181 : vector<2x1x6x1x32xf32> to vector<2x6x1x32xf32>
    %183 = vector.extract_strided_slice %182 {offsets = [0, 0, 0, 0], sizes = [2, 4, 1, 32], strides = [1, 1, 1, 1]} : vector<2x6x1x32xf32> to vector<2x4x1x32xf32>
    %184 = vector.shape_cast %183 : vector<2x4x1x32xf32> to vector<2x2x2x1x32xf32>
    %185 = vector.extract_strided_slice %184 {offsets = [0, 0, 0, 0, 0], sizes = [2, 2, 1, 1, 32], strides = [1, 1, 1, 1, 1]} : vector<2x2x2x1x32xf32> to vector<2x2x1x1x32xf32>
    %186 = vector.shape_cast %185 : vector<2x2x1x1x32xf32> to vector<2x2x1x32xf32>
    %187 = vector.extract_strided_slice %182 {offsets = [0, 1, 0, 0], sizes = [2, 4, 1, 32], strides = [1, 1, 1, 1]} : vector<2x6x1x32xf32> to vector<2x4x1x32xf32>
    %188 = vector.shape_cast %187 : vector<2x4x1x32xf32> to vector<2x2x2x1x32xf32>
    %189 = vector.extract_strided_slice %188 {offsets = [0, 0, 0, 0, 0], sizes = [2, 2, 1, 1, 32], strides = [1, 1, 1, 1, 1]} : vector<2x2x2x1x32xf32> to vector<2x2x1x1x32xf32>
    %190 = vector.shape_cast %189 : vector<2x2x1x1x32xf32> to vector<2x2x1x32xf32>
    %191 = vector.extract_strided_slice %182 {offsets = [0, 2, 0, 0], sizes = [2, 4, 1, 32], strides = [1, 1, 1, 1]} : vector<2x6x1x32xf32> to vector<2x4x1x32xf32>
    %192 = vector.shape_cast %191 : vector<2x4x1x32xf32> to vector<2x2x2x1x32xf32>
    %193 = vector.extract_strided_slice %192 {offsets = [0, 0, 0, 0, 0], sizes = [2, 2, 1, 1, 32], strides = [1, 1, 1, 1, 1]} : vector<2x2x2x1x32xf32> to vector<2x2x1x1x32xf32>
    %194 = vector.shape_cast %193 : vector<2x2x1x1x32xf32> to vector<2x2x1x32xf32>
    %195 = tpu.concatenate %154, %158, %162, %170, %174, %178, %186, %190, %194 in 3 : vector<2x2x1x32xf32>, vector<2x2x1x32xf32>, vector<2x2x1x32xf32>, vector<2x2x1x32xf32>, vector<2x2x1x32xf32>, vector<2x2x1x32xf32>, vector<2x2x1x32xf32>, vector<2x2x1x32xf32>, vector<2x2x1x32xf32> -> vector<2x2x1x288xf32>
    %196 = vector.shape_cast %195 : vector<2x2x1x288xf32> to vector<4x288xf32>
    %197 = arith.truncf %196 : vector<4x288xf32> to vector<4x288xbf16>
    %c0_27 = arith.constant 0 : index
    %c0_28 = arith.constant 0 : index
    %198 = vector.load %arg6[%c0_27, %c0_28] : memref<288x64xbf16, #tpu.memory_space<vmem>>, vector<288x64xbf16>
    %cst_29 = arith.constant dense<0.000000e+00> : vector<4x64xf32>
    %199 = tpu.matmul %197, %198, %cst_29 {dimension_numbers = #tpu.dot_dimension_numbers<[1], [0], [0], [1], [0, 0, 1, 1], [], []>} : vector<4x288xbf16>, vector<288x64xbf16>, vector<4x64xf32> -> vector<4x64xf32>
    %c0_30 = arith.constant 0 : index
    %c0_31 = arith.constant 0 : index
    %200 = vector.load %arg7[%c0_30, %c0_31] : memref<3x64xf32, #tpu.memory_space<vmem>>, vector<1x64xf32>
    %201 = vector.broadcast %200 : vector<1x64xf32> to vector<4x64xf32>
    %202 = arith.addf %199, %201 : vector<4x64xf32>
    %cst_32 = arith.constant 2.000000e-01 : f32
    %203 = vector.broadcast %cst_32 : f32 to vector<4x64xf32>
    %204 = arith.mulf %203, %202 : vector<4x64xf32>
    %205 = arith.maximumf %202, %204 : vector<4x64xf32>
    %c1_33 = arith.constant 1 : index
    %c0_34 = arith.constant 0 : index
    %206 = vector.load %arg7[%c1_33, %c0_34] : memref<3x64xf32, #tpu.memory_space<vmem>>, vector<1x64xf32>
    %207 = vector.broadcast %206 : vector<1x64xf32> to vector<4x64xf32>
    %208 = arith.mulf %205, %207 : vector<4x64xf32>
    %c2_35 = arith.constant 2 : index
    %c0_36 = arith.constant 0 : index
    %209 = vector.load %arg7[%c2_35, %c0_36] : memref<3x64xf32, #tpu.memory_space<vmem>>, vector<1x64xf32>
    %210 = vector.broadcast %209 : vector<1x64xf32> to vector<4x64xf32>
    %211 = arith.addf %208, %210 : vector<4x64xf32>
    %212 = vector.shape_cast %211 : vector<4x64xf32> to vector<2x2x1x64xf32>
    %cst_37 = arith.constant 0.000000e+00 : f32
    %213 = vector.broadcast %cst_37 : f32 to vector<1x2x1x64xf32>
    %214 = tpu.concatenate %213, %212, %213 in 0 : vector<1x2x1x64xf32>, vector<2x2x1x64xf32>, vector<1x2x1x64xf32> -> vector<4x2x1x64xf32>
    %cst_38 = arith.constant 0.000000e+00 : f32
    %215 = vector.broadcast %cst_38 : f32 to vector<4x1x1x64xf32>
    %216 = tpu.concatenate %215, %214, %215 in 1 : vector<4x1x1x64xf32>, vector<4x2x1x64xf32>, vector<4x1x1x64xf32> -> vector<4x4x1x64xf32>
    %217 = vector.extract_strided_slice %216 {offsets = [0, 0, 0, 0], sizes = [2, 4, 1, 64], strides = [1, 1, 1, 1]} : vector<4x4x1x64xf32> to vector<2x4x1x64xf32>
    %218 = vector.shape_cast %217 : vector<2x4x1x64xf32> to vector<1x2x4x1x64xf32>
    %219 = vector.extract_strided_slice %218 {offsets = [0, 0, 0, 0, 0], sizes = [1, 1, 4, 1, 64], strides = [1, 1, 1, 1, 1]} : vector<1x2x4x1x64xf32> to vector<1x1x4x1x64xf32>
    %220 = vector.shape_cast %219 : vector<1x1x4x1x64xf32> to vector<1x4x1x64xf32>
    %221 = vector.extract_strided_slice %220 {offsets = [0, 0, 0, 0], sizes = [1, 2, 1, 64], strides = [1, 1, 1, 1]} : vector<1x4x1x64xf32> to vector<1x2x1x64xf32>
    %222 = vector.shape_cast %221 : vector<1x2x1x64xf32> to vector<1x1x2x1x64xf32>
    %223 = vector.extract_strided_slice %222 {offsets = [0, 0, 0, 0, 0], sizes = [1, 1, 1, 1, 64], strides = [1, 1, 1, 1, 1]} : vector<1x1x2x1x64xf32> to vector<1x1x1x1x64xf32>
    %224 = vector.shape_cast %223 : vector<1x1x1x1x64xf32> to vector<1x1x1x64xf32>
    %225 = vector.extract_strided_slice %220 {offsets = [0, 1, 0, 0], sizes = [1, 2, 1, 64], strides = [1, 1, 1, 1]} : vector<1x4x1x64xf32> to vector<1x2x1x64xf32>
    %226 = vector.shape_cast %225 : vector<1x2x1x64xf32> to vector<1x1x2x1x64xf32>
    %227 = vector.extract_strided_slice %226 {offsets = [0, 0, 0, 0, 0], sizes = [1, 1, 1, 1, 64], strides = [1, 1, 1, 1, 1]} : vector<1x1x2x1x64xf32> to vector<1x1x1x1x64xf32>
    %228 = vector.shape_cast %227 : vector<1x1x1x1x64xf32> to vector<1x1x1x64xf32>
    %229 = vector.extract_strided_slice %220 {offsets = [0, 2, 0, 0], sizes = [1, 2, 1, 64], strides = [1, 1, 1, 1]} : vector<1x4x1x64xf32> to vector<1x2x1x64xf32>
    %230 = vector.shape_cast %229 : vector<1x2x1x64xf32> to vector<1x1x2x1x64xf32>
    %231 = vector.extract_strided_slice %230 {offsets = [0, 0, 0, 0, 0], sizes = [1, 1, 1, 1, 64], strides = [1, 1, 1, 1, 1]} : vector<1x1x2x1x64xf32> to vector<1x1x1x1x64xf32>
    %232 = vector.shape_cast %231 : vector<1x1x1x1x64xf32> to vector<1x1x1x64xf32>
    %233 = vector.extract_strided_slice %216 {offsets = [1, 0, 0, 0], sizes = [2, 4, 1, 64], strides = [1, 1, 1, 1]} : vector<4x4x1x64xf32> to vector<2x4x1x64xf32>
    %234 = vector.shape_cast %233 : vector<2x4x1x64xf32> to vector<1x2x4x1x64xf32>
    %235 = vector.extract_strided_slice %234 {offsets = [0, 0, 0, 0, 0], sizes = [1, 1, 4, 1, 64], strides = [1, 1, 1, 1, 1]} : vector<1x2x4x1x64xf32> to vector<1x1x4x1x64xf32>
    %236 = vector.shape_cast %235 : vector<1x1x4x1x64xf32> to vector<1x4x1x64xf32>
    %237 = vector.extract_strided_slice %236 {offsets = [0, 0, 0, 0], sizes = [1, 2, 1, 64], strides = [1, 1, 1, 1]} : vector<1x4x1x64xf32> to vector<1x2x1x64xf32>
    %238 = vector.shape_cast %237 : vector<1x2x1x64xf32> to vector<1x1x2x1x64xf32>
    %239 = vector.extract_strided_slice %238 {offsets = [0, 0, 0, 0, 0], sizes = [1, 1, 1, 1, 64], strides = [1, 1, 1, 1, 1]} : vector<1x1x2x1x64xf32> to vector<1x1x1x1x64xf32>
    %240 = vector.shape_cast %239 : vector<1x1x1x1x64xf32> to vector<1x1x1x64xf32>
    %241 = vector.extract_strided_slice %236 {offsets = [0, 1, 0, 0], sizes = [1, 2, 1, 64], strides = [1, 1, 1, 1]} : vector<1x4x1x64xf32> to vector<1x2x1x64xf32>
    %242 = vector.shape_cast %241 : vector<1x2x1x64xf32> to vector<1x1x2x1x64xf32>
    %243 = vector.extract_strided_slice %242 {offsets = [0, 0, 0, 0, 0], sizes = [1, 1, 1, 1, 64], strides = [1, 1, 1, 1, 1]} : vector<1x1x2x1x64xf32> to vector<1x1x1x1x64xf32>
    %244 = vector.shape_cast %243 : vector<1x1x1x1x64xf32> to vector<1x1x1x64xf32>
    %245 = vector.extract_strided_slice %236 {offsets = [0, 2, 0, 0], sizes = [1, 2, 1, 64], strides = [1, 1, 1, 1]} : vector<1x4x1x64xf32> to vector<1x2x1x64xf32>
    %246 = vector.shape_cast %245 : vector<1x2x1x64xf32> to vector<1x1x2x1x64xf32>
    %247 = vector.extract_strided_slice %246 {offsets = [0, 0, 0, 0, 0], sizes = [1, 1, 1, 1, 64], strides = [1, 1, 1, 1, 1]} : vector<1x1x2x1x64xf32> to vector<1x1x1x1x64xf32>
    %248 = vector.shape_cast %247 : vector<1x1x1x1x64xf32> to vector<1x1x1x64xf32>
    %249 = vector.extract_strided_slice %216 {offsets = [2, 0, 0, 0], sizes = [2, 4, 1, 64], strides = [1, 1, 1, 1]} : vector<4x4x1x64xf32> to vector<2x4x1x64xf32>
    %250 = vector.shape_cast %249 : vector<2x4x1x64xf32> to vector<1x2x4x1x64xf32>
    %251 = vector.extract_strided_slice %250 {offsets = [0, 0, 0, 0, 0], sizes = [1, 1, 4, 1, 64], strides = [1, 1, 1, 1, 1]} : vector<1x2x4x1x64xf32> to vector<1x1x4x1x64xf32>
    %252 = vector.shape_cast %251 : vector<1x1x4x1x64xf32> to vector<1x4x1x64xf32>
    %253 = vector.extract_strided_slice %252 {offsets = [0, 0, 0, 0], sizes = [1, 2, 1, 64], strides = [1, 1, 1, 1]} : vector<1x4x1x64xf32> to vector<1x2x1x64xf32>
    %254 = vector.shape_cast %253 : vector<1x2x1x64xf32> to vector<1x1x2x1x64xf32>
    %255 = vector.extract_strided_slice %254 {offsets = [0, 0, 0, 0, 0], sizes = [1, 1, 1, 1, 64], strides = [1, 1, 1, 1, 1]} : vector<1x1x2x1x64xf32> to vector<1x1x1x1x64xf32>
    %256 = vector.shape_cast %255 : vector<1x1x1x1x64xf32> to vector<1x1x1x64xf32>
    %257 = vector.extract_strided_slice %252 {offsets = [0, 1, 0, 0], sizes = [1, 2, 1, 64], strides = [1, 1, 1, 1]} : vector<1x4x1x64xf32> to vector<1x2x1x64xf32>
    %258 = vector.shape_cast %257 : vector<1x2x1x64xf32> to vector<1x1x2x1x64xf32>
    %259 = vector.extract_strided_slice %258 {offsets = [0, 0, 0, 0, 0], sizes = [1, 1, 1, 1, 64], strides = [1, 1, 1, 1, 1]} : vector<1x1x2x1x64xf32> to vector<1x1x1x1x64xf32>
    %260 = vector.shape_cast %259 : vector<1x1x1x1x64xf32> to vector<1x1x1x64xf32>
    %261 = vector.extract_strided_slice %252 {offsets = [0, 2, 0, 0], sizes = [1, 2, 1, 64], strides = [1, 1, 1, 1]} : vector<1x4x1x64xf32> to vector<1x2x1x64xf32>
    %262 = vector.shape_cast %261 : vector<1x2x1x64xf32> to vector<1x1x2x1x64xf32>
    %263 = vector.extract_strided_slice %262 {offsets = [0, 0, 0, 0, 0], sizes = [1, 1, 1, 1, 64], strides = [1, 1, 1, 1, 1]} : vector<1x1x2x1x64xf32> to vector<1x1x1x1x64xf32>
    %264 = vector.shape_cast %263 : vector<1x1x1x1x64xf32> to vector<1x1x1x64xf32>
    %265 = tpu.concatenate %224, %228, %232, %240, %244, %248, %256, %260, %264 in 3 : vector<1x1x1x64xf32>, vector<1x1x1x64xf32>, vector<1x1x1x64xf32>, vector<1x1x1x64xf32>, vector<1x1x1x64xf32>, vector<1x1x1x64xf32>, vector<1x1x1x64xf32>, vector<1x1x1x64xf32>, vector<1x1x1x64xf32> -> vector<1x1x1x576xf32>
    %266 = vector.shape_cast %265 : vector<1x1x1x576xf32> to vector<1x576xf32>
    %267 = arith.truncf %266 : vector<1x576xf32> to vector<1x576xbf16>
    %c0_39 = arith.constant 0 : index
    %c0_40 = arith.constant 0 : index
    %268 = vector.load %arg8[%c0_39, %c0_40] : memref<576x128xbf16, #tpu.memory_space<vmem>>, vector<576x128xbf16>
    %cst_41 = arith.constant dense<0.000000e+00> : vector<1x128xf32>
    %269 = tpu.matmul %267, %268, %cst_41 {dimension_numbers = #tpu.dot_dimension_numbers<[1], [0], [0], [1], [0, 0, 1, 1], [], []>} : vector<1x576xbf16>, vector<576x128xbf16>, vector<1x128xf32> -> vector<1x128xf32>
    %c0_42 = arith.constant 0 : index
    %c0_43 = arith.constant 0 : index
    %270 = vector.load %arg9[%c0_42, %c0_43] : memref<3x128xf32, #tpu.memory_space<vmem>>, vector<1x128xf32>
    %271 = arith.addf %269, %270 : vector<1x128xf32>
    %cst_44 = arith.constant 2.000000e-01 : f32
    %272 = vector.broadcast %cst_44 : f32 to vector<1x128xf32>
    %273 = arith.mulf %272, %271 : vector<1x128xf32>
    %274 = arith.maximumf %271, %273 : vector<1x128xf32>
    %c1_45 = arith.constant 1 : index
    %c0_46 = arith.constant 0 : index
    %275 = vector.load %arg9[%c1_45, %c0_46] : memref<3x128xf32, #tpu.memory_space<vmem>>, vector<1x128xf32>
    %276 = arith.mulf %274, %275 : vector<1x128xf32>
    %c2_47 = arith.constant 2 : index
    %c0_48 = arith.constant 0 : index
    %277 = vector.load %arg9[%c2_47, %c0_48] : memref<3x128xf32, #tpu.memory_space<vmem>>, vector<1x128xf32>
    %278 = arith.addf %276, %277 : vector<1x128xf32>
    %279 = vector.shape_cast %278 : vector<1x128xf32> to vector<1x1x1x128xf32>
    %280 = vector.shape_cast %279 : vector<1x1x1x128xf32> to vector<1x128xf32>
    %281 = arith.truncf %280 : vector<1x128xf32> to vector<1x128xbf16>
    %c0_49 = arith.constant 0 : index
    %c0_50 = arith.constant 0 : index
    %282 = vector.load %arg10[%c0_49, %c0_50] : memref<128x32xbf16, #tpu.memory_space<vmem>>, vector<128x32xbf16>
    %cst_51 = arith.constant dense<0.000000e+00> : vector<1x32xf32>
    %283 = tpu.matmul %281, %282, %cst_51 {dimension_numbers = #tpu.dot_dimension_numbers<[1], [0], [0], [1], [0, 0, 1, 1], [], []>} : vector<1x128xbf16>, vector<128x32xbf16>, vector<1x32xf32> -> vector<1x32xf32>
    %c0_52 = arith.constant 0 : index
    %c0_53 = arith.constant 0 : index
    %284 = vector.load %arg11[%c0_52, %c0_53] : memref<1x32xf32, #tpu.memory_space<vmem>>, vector<1x32xf32>
    %285 = arith.addf %283, %284 : vector<1x32xf32>
    %286 = math.tanh %285 : vector<1x32xf32>
    %c0_54 = arith.constant 0 : index
    %c0_55 = arith.constant 0 : index
    %c0_56 = arith.constant 0 : index
    %287 = vector.load %arg12[%c0_54, %c0_55, %c0_56] : memref<1x1x32xf32, #tpu.memory_space<vmem>>, vector<1x1x32xf32>
    %288 = vector.shape_cast %287 : vector<1x1x32xf32> to vector<1x32xf32>
    %289 = vector.shape_cast %286 : vector<1x32xf32> to vector<1x1x32xf32>
    tpu.vector_store %arg12[%c0_54, %c0_55, %c0_56], %289 {strides = array<i32>} : memref<1x1x32xf32, #tpu.memory_space<vmem>>, vector<1x1x32xf32>,
    return
  }
  func.func @transform_0(%arg0: i32) -> (i32, i32, i32, i32, i32) {
    %c0_i32 = arith.constant 0 : i32
    %c0_i32_0 = arith.constant 0 : i32
    %c0_i32_1 = arith.constant 0 : i32
    %c0_i32_2 = arith.constant 0 : i32
    %c0_i32_3 = arith.constant 0 : i32
    return %arg0, %c0_i32, %c0_i32_0, %c0_i32_1, %c0_i32_2 : i32, i32, i32, i32, i32
  }
  func.func @transform_1(%arg0: i32) -> (i32, i32) {
    %c0_i32 = arith.constant 0 : i32
    %c0_i32_0 = arith.constant 0 : i32
    %c0_i32_1 = arith.constant 0 : i32
    return %c0_i32, %c0_i32_0 : i32, i32
  }
  func.func @transform_2(%arg0: i32) -> (i32, i32) {
    %c0_i32 = arith.constant 0 : i32
    %c0_i32_0 = arith.constant 0 : i32
    %c0_i32_1 = arith.constant 0 : i32
    return %c0_i32, %c0_i32_0 : i32, i32
  }
  func.func @transform_3(%arg0: i32) -> (i32, i32) {
    %c0_i32 = arith.constant 0 : i32
    %c0_i32_0 = arith.constant 0 : i32
    %c0_i32_1 = arith.constant 0 : i32
    return %c0_i32, %c0_i32_0 : i32, i32
  }
  func.func @transform_4(%arg0: i32) -> (i32, i32) {
    %c0_i32 = arith.constant 0 : i32
    %c0_i32_0 = arith.constant 0 : i32
    %c0_i32_1 = arith.constant 0 : i32
    return %c0_i32, %c0_i32_0 : i32, i32
  }
  func.func @transform_5(%arg0: i32) -> (i32, i32) {
    %c0_i32 = arith.constant 0 : i32
    %c0_i32_0 = arith.constant 0 : i32
    %c0_i32_1 = arith.constant 0 : i32
    return %c0_i32, %c0_i32_0 : i32, i32
  }
  func.func @transform_6(%arg0: i32) -> (i32, i32) {
    %c0_i32 = arith.constant 0 : i32
    %c0_i32_0 = arith.constant 0 : i32
    %c0_i32_1 = arith.constant 0 : i32
    return %c0_i32, %c0_i32_0 : i32, i32
  }
  func.func @transform_7(%arg0: i32) -> (i32, i32) {
    %c0_i32 = arith.constant 0 : i32
    %c0_i32_0 = arith.constant 0 : i32
    %c0_i32_1 = arith.constant 0 : i32
    return %c0_i32, %c0_i32_0 : i32, i32
  }
  func.func @transform_8(%arg0: i32) -> (i32, i32) {
    %c0_i32 = arith.constant 0 : i32
    %c0_i32_0 = arith.constant 0 : i32
    %c0_i32_1 = arith.constant 0 : i32
    return %c0_i32, %c0_i32_0 : i32, i32
  }
  func.func @transform_9(%arg0: i32) -> (i32, i32) {
    %c0_i32 = arith.constant 0 : i32
    %c0_i32_0 = arith.constant 0 : i32
    %c0_i32_1 = arith.constant 0 : i32
    return %c0_i32, %c0_i32_0 : i32, i32
  }
  func.func @transform_10(%arg0: i32) -> (i32, i32) {
    %c0_i32 = arith.constant 0 : i32
    %c0_i32_0 = arith.constant 0 : i32
    %c0_i32_1 = arith.constant 0 : i32
    return %c0_i32, %c0_i32_0 : i32, i32
  }
  func.func @transform_11(%arg0: i32) -> (i32, i32, i32) {
    %c0_i32 = arith.constant 0 : i32
    %c0_i32_0 = arith.constant 0 : i32
    %c0_i32_1 = arith.constant 0 : i32
    return %arg0, %c0_i32, %c0_i32_0 : i32, i32, i32
  }
}

</mosaic_0001>

<llo_original>
// kernel: encoder_forward.1
$region0: #{encoder_forward.1}
  #allocation0 [shape = 'u32[]', space=smem, size = 0x4, offset = 0x4, fixed_abs, tag = 'smem constant byte address 0x4 - core index']
  #allocation1 [shape = 'u32[144,128]{1,0:T(1,128)}', space=vmem, size = 0x12000, scoped, tag = 'internal scratch']
  %s0 = inlined_call_operand.vmem [shape: bf16[2,16,16,1,4], index: 0, kind: input, shape index: {}]
  %s1 = inlined_call_operand.vmem [shape: bf16[36,16], index: 1, kind: input, shape index: {}]
  %s2 = inlined_call_operand.vmem [shape: f32[3,16], index: 2, kind: input, shape index: {}]
  %s3 = inlined_call_operand.vmem [shape: bf16[144,32], index: 3, kind: input, shape index: {}]
  %s4 = inlined_call_operand.vmem [shape: f32[3,32], index: 4, kind: input, shape index: {}]
  %s5 = inlined_call_operand.vmem [shape: bf16[288,64], index: 5, kind: input, shape index: {}]
  %s6 = inlined_call_operand.vmem [shape: f32[3,64], index: 6, kind: input, shape index: {}]
  %s7 = inlined_call_operand.vmem [shape: bf16[576,128], index: 7, kind: input, shape index: {}]
  %s8 = inlined_call_operand.vmem [shape: f32[3,128], index: 8, kind: input, shape index: {}]
  %s9 = inlined_call_operand.vmem [shape: bf16[128,32], index: 9, kind: input, shape index: {}]
  %s10 = inlined_call_operand.vmem [shape: f32[1,32], index: 10, kind: input, shape index: {}]
  %s11 = inlined_call_operand.hbm [shape: f32[2,1,32], index: 11, kind: output, shape index: {}]
  %s12 = sld [smem:[#allocation0]]
  $region77: #{encoder_forward.1} parent=0
    _
  %s14 = ssub.s32 1, %s12
  %s15 = scalar_select 0, %s14, %s12
  $region1: #{encoder_forward.1} parent=0
    #allocation2 [shape = 'u8[1024]{0}', space=vmem, size = 0x400, scoped, tag = 'output window, operand 0']
    #allocation3 [shape = 's32[2]{0}', space=sflag, size = 0x8, scoped, tag = 'scoped memory for encoder_forward.1']
    %16 = vsyncpa [#allocation3], 0
    %s17 = scalar_lea.sflag [#allocation3], 1
    %18 = vsyncpa %s17, 0
    loop: start=0, step=1, limit=4
    $region2: #{encoder_forward.1} parent=1 // loop_pre_header
      _
    $region3: #{encoder_forward.1} parent=1 // loop_header
      %s20 = sphi 0, %s24
      %p21 = scmp.ge.s32.totalorder %s20, 4
      %s30 = sphi 0, %s32
      %s33 = sphi 0, %s30
      %s34 = sphi 0, %s33
      %s50 = sphi 0, %s34
      %s54 = sphi 0, %s54
      %s56 = sphi 0, %s54
      %s57 = sphi 0, %s56
      %s71 = sphi 0, %s57
      %s75 = sphi 0, %s75
      %s77 = sphi 0, %s75
      %s78 = sphi 0, %s77
      %s92 = sphi 0, %s78
      %s96 = sphi 0, %s96
      %s98 = sphi 0, %s96
      %s99 = sphi 0, %s98
      %s113 = sphi 0, %s99
      %s117 = sphi 0, %s117
      %s119 = sphi 0, %s117
      %s120 = sphi 0, %s119
      %s134 = sphi 0, %s120
      %s138 = sphi 0, %s138
      %s140 = sphi 0, %s138
      %s141 = sphi 0, %s140
      %s155 = sphi 0, %s141
      %s159 = sphi 0, %s159
      %s161 = sphi 0, %s159
      %s162 = sphi 0, %s161
      %s176 = sphi 0, %s162
      %s180 = sphi 0, %s180
      %s182 = sphi 0, %s180
      %s183 = sphi 0, %s182
      %s197 = sphi 0, %s183
      %s201 = sphi 0, %s201
      %s203 = sphi 0, %s201
      %s204 = sphi 0, %s203
      %s218 = sphi 0, %s204
      %s222 = sphi 0, %s222
      %s224 = sphi 0, %s222
      %s225 = sphi 0, %s224
      %s239 = sphi 0, %s225
      %s243 = sphi 0, %s243
      %s245 = sphi 0, %s243
      %s246 = sphi 0, %s245
      %s260 = sphi 0, %s246
      %s266 = sphi 0, %s268
      %s269 = sphi 0, %s266
      %s270 = sphi 0, %s269
      %s286 = sphi 0, %s270
    $region4: #{encoder_forward.1} parent=1 // loop_header_branch
      %23 = sbr.rel (%p21) target = $region8
    $region5: #{encoder_forward.1} parent=1 // loop_body
      %s25 = ssub.s32 %s20, 1
      %s26 = ssub.s32 %s20, 2
      %s27 = sadd.s32 %s20, 1
      %s28 = ssub.s32 %s20, %s27
      %p29 = scmp.eq.s32.totalorder %s28, 0
      %s31 = sadd.s32 %s30, 1
      %s32 = scalar_select %p29, %s30, %s31
      %p35 = pneg %p29
      %p36 = scmp.eq.s32.totalorder %s20, 1
      %p37 = por %p35, %p36
      %p38 = scmp.ne.s32.totalorder %s30, %s33
      %p39 = scmp.eq.s32.totalorder %s20, 0
      %p40 = por %p38, %p39
      %p41 = scmp.ne.s32.totalorder %s30, %s33
      %p42 = scmp.eq.s32.totalorder %s25, 1
      %p43 = por %p41, %p42
      %p44 = scmp.ne.s32.totalorder %s33, %s34
      %p45 = scmp.eq.s32.totalorder %s25, 0
      %p46 = por %p44, %p45
      %p47 = scmp.ne.s32.totalorder %s33, %s34
      %p48 = scmp.eq.s32.totalorder %s26, 1
      %p49 = por %p47, %p48
      %p51 = scmp.ne.s32.totalorder %s34, %s50
      %p52 = scmp.eq.s32.totalorder %s26, 0
      %p53 = por %p51, %p52
      %s55 = sadd.s32 %s54, 1
      %p58 = scmp.eq.s32.totalorder %s20, 1
      %p59 = scmp.ne.s32.totalorder %s54, %s56
      %p60 = scmp.eq.s32.totalorder %s20, 0
      %p61 = por %p59, %p60
      %p62 = scmp.ne.s32.totalorder %s54, %s56
      %p63 = scmp.eq.s32.totalorder %s25, 1
      %p64 = por %p62, %p63
      %p65 = scmp.ne.s32.totalorder %s56, %s57
      %p66 = scmp.eq.s32.totalorder %s25, 0
      %p67 = por %p65, %p66
      %p68 = scmp.ne.s32.totalorder %s56, %s57
      %p69 = scmp.eq.s32.totalorder %s26, 1
      %p70 = por %p68, %p69
      %p72 = scmp.ne.s32.totalorder %s57, %s71
      %p73 = scmp.eq.s32.totalorder %s26, 0
      %p74 = por %p72, %p73
      %s76 = sadd.s32 %s75, 1
      %p79 = scmp.eq.s32.totalorder %s20, 1
      %p80 = scmp.ne.s32.totalorder %s75, %s77
      %p81 = scmp.eq.s32.totalorder %s20, 0
      %p82 = por %p80, %p81
      %p83 = scmp.ne.s32.totalorder %s75, %s77
      %p84 = scmp.eq.s32.totalorder %s25, 1
      %p85 = por %p83, %p84
      %p86 = scmp.ne.s32.totalorder %s77, %s78
      %p87 = scmp.eq.s32.totalorder %s25, 0
      %p88 = por %p86, %p87
      %p89 = scmp.ne.s32.totalorder %s77, %s78
      %p90 = scmp.eq.s32.totalorder %s26, 1
      %p91 = por %p89, %p90
      %p93 = scmp.ne.s32.totalorder %s78, %s92
      %p94 = scmp.eq.s32.totalorder %s26, 0
      %p95 = por %p93, %p94
      %s97 = sadd.s32 %s96, 1
      %p100 = scmp.eq.s32.totalorder %s20, 1
      %p101 = scmp.ne.s32.totalorder %s96, %s98
      %p102 = scmp.eq.s32.totalorder %s20, 0
      %p103 = por %p101, %p102
      %p104 = scmp.ne.s32.totalorder %s96, %s98
      %p105 = scmp.eq.s32.totalorder %s25, 1
      %p106 = por %p104, %p105
      %p107 = scmp.ne.s32.totalorder %s98, %s99
      %p108 = scmp.eq.s32.totalorder %s25, 0
      %p109 = por %p107, %p108
      %p110 = scmp.ne.s32.totalorder %s98, %s99
      %p111 = scmp.eq.s32.totalorder %s26, 1
      %p112 = por %p110, %p111
      %p114 = scmp.ne.s32.totalorder %s99, %s113
      %p115 = scmp.eq.s32.totalorder %s26, 0
      %p116 = por %p114, %p115
      %s118 = sadd.s32 %s117, 1
      %p121 = scmp.eq.s32.totalorder %s20, 1
      %p122 = scmp.ne.s32.totalorder %s117, %s119
      %p123 = scmp.eq.s32.totalorder %s20, 0
      %p124 = por %p122, %p123
      %p125 = scmp.ne.s32.totalorder %s117, %s119
      %p126 = scmp.eq.s32.totalorder %s25, 1
      %p127 = por %p125, %p126
      %p128 = scmp.ne.s32.totalorder %s119, %s120
      %p129 = scmp.eq.s32.totalorder %s25, 0
      %p130 = por %p128, %p129
      %p131 = scmp.ne.s32.totalorder %s119, %s120
      %p132 = scmp.eq.s32.totalorder %s26, 1
      %p133 = por %p131, %p132
      %p135 = scmp.ne.s32.totalorder %s120, %s134
      %p136 = scmp.eq.s32.totalorder %s26, 0
      %p137 = por %p135, %p136
      %s139 = sadd.s32 %s138, 1
      %p142 = scmp.eq.s32.totalorder %s20, 1
      %p143 = scmp.ne.s32.totalorder %s138, %s140
      %p144 = scmp.eq.s32.totalorder %s20, 0
      %p145 = por %p143, %p144
      %p146 = scmp.ne.s32.totalorder %s138, %s140
      %p147 = scmp.eq.s32.totalorder %s25, 1
      %p148 = por %p146, %p147
      %p149 = scmp.ne.s32.totalorder %s140, %s141
      %p150 = scmp.eq.s32.totalorder %s25, 0
      %p151 = por %p149, %p150
      %p152 = scmp.ne.s32.totalorder %s140, %s141
      %p153 = scmp.eq.s32.totalorder %s26, 1
      %p154 = por %p152, %p153
      %p156 = scmp.ne.s32.totalorder %s141, %s155
      %p157 = scmp.eq.s32.totalorder %s26, 0
      %p158 = por %p156, %p157
      %s160 = sadd.s32 %s159, 1
      %p163 = scmp.eq.s32.totalorder %s20, 1
      %p164 = scmp.ne.s32.totalorder %s159, %s161
      %p165 = scmp.eq.s32.totalorder %s20, 0
      %p166 = por %p164, %p165
      %p167 = scmp.ne.s32.totalorder %s159, %s161
      %p168 = scmp.eq.s32.totalorder %s25, 1
      %p169 = por %p167, %p168
      %p170 = scmp.ne.s32.totalorder %s161, %s162
      %p171 = scmp.eq.s32.totalorder %s25, 0
      %p172 = por %p170, %p171
      %p173 = scmp.ne.s32.totalorder %s161, %s162
      %p174 = scmp.eq.s32.totalorder %s26, 1
      %p175 = por %p173, %p174
      %p177 = scmp.ne.s32.totalorder %s162, %s176
      %p178 = scmp.eq.s32.totalorder %s26, 0
      %p179 = por %p177, %p178
      %s181 = sadd.s32 %s180, 1
      %p184 = scmp.eq.s32.totalorder %s20, 1
      %p185 = scmp.ne.s32.totalorder %s180, %s182
      %p186 = scmp.eq.s32.totalorder %s20, 0
      %p187 = por %p185, %p186
      %p188 = scmp.ne.s32.totalorder %s180, %s182
      %p189 = scmp.eq.s32.totalorder %s25, 1
      %p190 = por %p188, %p189
      %p191 = scmp.ne.s32.totalorder %s182, %s183
      %p192 = scmp.eq.s32.totalorder %s25, 0
      %p193 = por %p191, %p192
      %p194 = scmp.ne.s32.totalorder %s182, %s183
      %p195 = scmp.eq.s32.totalorder %s26, 1
      %p196 = por %p194, %p195
      %p198 = scmp.ne.s32.totalorder %s183, %s197
      %p199 = scmp.eq.s32.totalorder %s26, 0
      %p200 = por %p198, %p199
      %s202 = sadd.s32 %s201, 1
      %p205 = scmp.eq.s32.totalorder %s20, 1
      %p206 = scmp.ne.s32.totalorder %s201, %s203
      %p207 = scmp.eq.s32.totalorder %s20, 0
      %p208 = por %p206, %p207
      %p209 = scmp.ne.s32.totalorder %s201, %s203
      %p210 = scmp.eq.s32.totalorder %s25, 1
      %p211 = por %p209, %p210
      %p212 = scmp.ne.s32.totalorder %s203, %s204
      %p213 = scmp.eq.s32.totalorder %s25, 0
      %p214 = por %p212, %p213
      %p215 = scmp.ne.s32.totalorder %s203, %s204
      %p216 = scmp.eq.s32.totalorder %s26, 1
      %p217 = por %p215, %p216
      %p219 = scmp.ne.s32.totalorder %s204, %s218
      %p220 = scmp.eq.s32.totalorder %s26, 0
      %p221 = por %p219, %p220
      %s223 = sadd.s32 %s222, 1
      %p226 = scmp.eq.s32.totalorder %s20, 1
      %p227 = scmp.ne.s32.totalorder %s222, %s224
      %p228 = scmp.eq.s32.totalorder %s20, 0
      %p229 = por %p227, %p228
      %p230 = scmp.ne.s32.totalorder %s222, %s224
      %p231 = scmp.eq.s32.totalorder %s25, 1
      %p232 = por %p230, %p231
      %p233 = scmp.ne.s32.totalorder %s224, %s225
      %p234 = scmp.eq.s32.totalorder %s25, 0
      %p235 = por %p233, %p234
      %p236 = scmp.ne.s32.totalorder %s224, %s225
      %p237 = scmp.eq.s32.totalorder %s26, 1
      %p238 = por %p236, %p237
      %p240 = scmp.ne.s32.totalorder %s225, %s239
      %p241 = scmp.eq.s32.totalorder %s26, 0
      %p242 = por %p240, %p241
      %s244 = sadd.s32 %s243, 1
      %p247 = scmp.eq.s32.totalorder %s20, 1
      %p248 = scmp.ne.s32.totalorder %s243, %s245
      %p249 = scmp.eq.s32.totalorder %s20, 0
      %p250 = por %p248, %p249
      %p251 = scmp.ne.s32.totalorder %s243, %s245
      %p252 = scmp.eq.s32.totalorder %s25, 1
      %p253 = por %p251, %p252
      %p254 = scmp.ne.s32.totalorder %s245, %s246
      %p255 = scmp.eq.s32.totalorder %s25, 0
      %p256 = por %p254, %p255
      %p257 = scmp.ne.s32.totalorder %s245, %s246
      %p258 = scmp.eq.s32.totalorder %s26, 1
      %p259 = por %p257, %p258
      %p261 = scmp.ne.s32.totalorder %s246, %s260
      %p262 = scmp.eq.s32.totalorder %s26, 0
      %p263 = por %p261, %p262
      %s264 = ssub.s32 %s20, %s27
      %p265 = scmp.eq.s32.totalorder %s264, 0
      %s267 = sadd.s32 %s266, 1
      %s268 = scalar_select %p265, %s266, %s267
      %p271 = pneg %p265
      %p272 = scmp.eq.s32.totalorder %s20, 1
      %p273 = por %p271, %p272
      %p274 = scmp.ne.s32.totalorder %s266, %s269
      %p275 = scmp.eq.s32.totalorder %s20, 0
      %p276 = por %p274, %p275
      %p277 = scmp.ne.s32.totalorder %s266, %s269
      %p278 = scmp.eq.s32.totalorder %s25, 1
      %p279 = por %p277, %p278
      %p280 = scmp.ne.s32.totalorder %s269, %s270
      %p281 = scmp.eq.s32.totalorder %s25, 0
      %p282 = por %p280, %p281
      %p283 = scmp.ne.s32.totalorder %s269, %s270
      %p284 = scmp.eq.s32.totalorder %s26, 1
      %p285 = por %p283, %p284
      %p287 = scmp.ne.s32.totalorder %s270, %s286
      %p288 = scmp.eq.s32.totalorder %s26, 0
      %p289 = por %p287, %p288
      %p290 = scmp.le.s32.totalorder 1, %s20
      %p291 = scmp.lt.s32.totalorder %s20, 3
      %p292 = pnand %p290, %p291
      %p293 = pneg %p292
      // Predicated region
      $region9: #{encoder_forward.1} parent=5 // pred_check
        _
      $region10: #{encoder_forward.1} parent=5 // pred_check_branch
        %295 = sbr.rel (%p292) target = $region12
      $region11: #{encoder_forward.1} parent=5 // pred_region
        %s296 = ssub.s32 %s20, 1
        // Predicated region
        $region13: #{encoder_forward.1} parent=11 // pred_check
          %p297 = pneg %p67
        $region14: #{encoder_forward.1} parent=11 // pred_check_branch
          %299 = sbr.rel (%p297) target = $region16
        $region15: #{encoder_forward.1} parent=11 // pred_region
          _
        $region16: #{encoder_forward.1} parent=11 // pred_fallthru
          _
        // Predicated region
        $region17: #{encoder_forward.1} parent=11 // pred_check
          %p300 = pneg %p88
        $region18: #{encoder_forward.1} parent=11 // pred_check_branch
          %302 = sbr.rel (%p300) target = $region20
        $region19: #{encoder_forward.1} parent=11 // pred_region
          _
        $region20: #{encoder_forward.1} parent=11 // pred_fallthru
          _
        // Predicated region
        $region21: #{encoder_forward.1} parent=11 // pred_check
          %p303 = pneg %p109
        $region22: #{encoder_forward.1} parent=11 // pred_check_branch
          %305 = sbr.rel (%p303) target = $region24
        $region23: #{encoder_forward.1} parent=11 // pred_region
          _
        $region24: #{encoder_forward.1} parent=11 // pred_fallthru
          _
        // Predicated region
        $region25: #{encoder_forward.1} parent=11 // pred_check
          %p306 = pneg %p130
        $region26: #{encoder_forward.1} parent=11 // pred_check_branch
          %308 = sbr.rel (%p306) target = $region28
        $region27: #{encoder_forward.1} parent=11 // pred_region
          _
        $region28: #{encoder_forward.1} parent=11 // pred_fallthru
          _
        // Predicated region
        $region29: #{encoder_forward.1} parent=11 // pred_check
          %p309 = pneg %p151
        $region30: #{encoder_forward.1} parent=11 // pred_check_branch
          %311 = sbr.rel (%p309) target = $region32
        $region31: #{encoder_forward.1} parent=11 // pred_region
          _
        $region32: #{encoder_forward.1} parent=11 // pred_fallthru
          _
        // Predicated region
        $region33: #{encoder_forward.1} parent=11 // pred_check
          %p312 = pneg %p172
        $region34: #{encoder_forward.1} parent=11 // pred_check_branch
          %314 = sbr.rel (%p312) target = $region36
        $region35: #{encoder_forward.1} parent=11 // pred_region
          _
        $region36: #{encoder_forward.1} parent=11 // pred_fallthru
          _
        // Predicated region
        $region37: #{encoder_forward.1} parent=11 // pred_check
          %p315 = pneg %p193
        $region38: #{encoder_forward.1} parent=11 // pred_check_branch
          %317 = sbr.rel (%p315) target = $region40
        $region39: #{encoder_forward.1} parent=11 // pred_region
          _
        $region40: #{encoder_forward.1} parent=11 // pred_fallthru
          _
        // Predicated region
        $region41: #{encoder_forward.1} parent=11 // pred_check
          %p318 = pneg %p214
        $region42: #{encoder_forward.1} parent=11 // pred_check_branch
          %320 = sbr.rel (%p318) target = $region44
        $region43: #{encoder_forward.1} parent=11 // pred_region
          _
        $region44: #{encoder_forward.1} parent=11 // pred_fallthru
          _
        // Predicated region
        $region45: #{encoder_forward.1} parent=11 // pred_check
          %p321 = pneg %p235
        $region46: #{encoder_forward.1} parent=11 // pred_check_branch
          %323 = sbr.rel (%p321) target = $region48
        $region47: #{encoder_forward.1} parent=11 // pred_region
          _
        $region48: #{encoder_forward.1} parent=11 // pred_fallthru
          _
        // Predicated region
        $region49: #{encoder_forward.1} parent=11 // pred_check
          %p324 = pneg %p256
        $region50: #{encoder_forward.1} parent=11 // pred_check_branch
          %326 = sbr.rel (%p324) target = $region52
        $region51: #{encoder_forward.1} parent=11 // pred_region
          _
        $region52: #{encoder_forward.1} parent=11 // pred_fallthru
          _
      $region12: #{encoder_forward.1} parent=5 // pred_fallthru
        _
      %p327 = scmp.lt.s32.totalorder %s20, 2
      // Predicated region
      $region53: #{encoder_forward.1} parent=5 // pred_check
        %p328 = pneg %p327
      $region54: #{encoder_forward.1} parent=5 // pred_check_branch
        %330 = sbr.rel (%p328) target = $region56
      $region55: #{encoder_forward.1} parent=5 // pred_region
        // Predicated region
        $region57: #{encoder_forward.1} parent=55 // pred_check
          %p331 = pneg %p40
        $region58: #{encoder_forward.1} parent=55 // pred_check_branch
          %333 = sbr.rel (%p331) target = $region60
        $region59: #{encoder_forward.1} parent=55 // pred_region
          %p334 = scmp.lt.s32.totalorder %s20, 1
          %s335 = scalar_select %p334, %s20, 1
          %s336 = smul.addr %s335, 256
          %s337 = scalar_lea.vmem %s0, %s336
        $region60: #{encoder_forward.1} parent=55 // pred_fallthru
          _
      $region56: #{encoder_forward.1} parent=5 // pred_fallthru
        _
      %p338 = scmp.le.s32.totalorder 1, %s20
      %p339 = scmp.lt.s32.totalorder %s20, 3
      %p340 = pnand %p338, %p339
      %p341 = pneg %p340
      // Predicated region
      $region61: #{encoder_forward.1} parent=5 // pred_check
        _
      $region62: #{encoder_forward.1} parent=5 // pred_check_branch
        %343 = sbr.rel (%p340) target = $region64
      $region63: #{encoder_forward.1} parent=5 // pred_region
        %s344 = ssub.s32 %s20, 1
        %p345 = scmp.lt.s32.totalorder %s25, 1
        %s346 = scalar_select %p345, %s25, 1
        %s347 = smul.addr %s346, 256
        %s348 = scalar_lea.vmem %s0, %s347
        %p349 = pneg %p46
        %p350 = pneg %p43
        %p351 = pneg %p67
        %p352 = pneg %p64
        %p353 = pneg %p88
        %p354 = pneg %p85
        %p355 = pneg %p109
        %p356 = pneg %p106
        %p357 = pneg %p130
        %p358 = pneg %p127
        %p359 = pneg %p151
        %p360 = pneg %p148
        %p361 = pneg %p172
        %p362 = pneg %p169
        %p363 = pneg %p193
        %p364 = pneg %p190
        %p365 = pneg %p214
        %p366 = pneg %p211
        %p367 = pneg %p235
        %p368 = pneg %p232
        %p369 = pneg %p256
        %p370 = pneg %p253
        %p371 = pneg %p282
        %p372 = pneg %p279
        %s373 = sand.u32 %s269, 1
        %s374 = scalar_lea.sflag [#allocation3], %s373
        %s375 = sand.u32 %s269, 1
        %s376 = scalar_lea.vmem [#allocation2], %s375
        %p377 = scmp.lt.s32.totalorder %s25, 1
        %s378 = scalar_select %p377, %s25, 1
        %s379 = smul.addr %s378, 256
        %s380 = scalar_lea.vmem %s0, %s379
        %v382 = vld [vmem:[%s380] sm:$0x1]
        %v383 = vld [vmem:[%s380 + $0x1] sm:$0x1]
        %v384 = vld [vmem:[%s380 + $0x2] sm:$0x1]
        %v385 = vld [vmem:[%s380 + $0x3] sm:$0x1]
        %v386 = vld [vmem:[%s380 + $0x4] sm:$0x1]
        %v387 = vld [vmem:[%s380 + $0x5] sm:$0x1]
        %v388 = vld [vmem:[%s380 + $0x6] sm:$0x1]
        %v389 = vld [vmem:[%s380 + $0x7] sm:$0x1]
        %v390 = vld [vmem:[%s380 + $0x8] sm:$0x1]
        %v391 = vld [vmem:[%s380 + $0x9] sm:$0x1]
        %v392 = vld [vmem:[%s380 + $0xa] sm:$0x1]
        %v393 = vld [vmem:[%s380 + $0xb] sm:$0x1]
        %v394 = vld [vmem:[%s380 + $0xc] sm:$0x1]
        %v395 = vld [vmem:[%s380 + $0xd] sm:$0x1]
        %v396 = vld [vmem:[%s380 + $0xe] sm:$0x1]
        %v397 = vld [vmem:[%s380 + $0xf] sm:$0x1]
        %v398 = vld [vmem:[%s380 + $0x10] sm:$0x1]
        %v399 = vld [vmem:[%s380 + $0x11] sm:$0x1]
        %v400 = vld [vmem:[%s380 + $0x12] sm:$0x1]
        %v401 = vld [vmem:[%s380 + $0x13] sm:$0x1]
        %v402 = vld [vmem:[%s380 + $0x14] sm:$0x1]
        %v403 = vld [vmem:[%s380 + $0x15] sm:$0x1]
        %v404 = vld [vmem:[%s380 + $0x16] sm:$0x1]
        %v405 = vld [vmem:[%s380 + $0x17] sm:$0x1]
        %v406 = vld [vmem:[%s380 + $0x18] sm:$0x1]
        %v407 = vld [vmem:[%s380 + $0x19] sm:$0x1]
        %v408 = vld [vmem:[%s380 + $0x1a] sm:$0x1]
        %v409 = vld [vmem:[%s380 + $0x1b] sm:$0x1]
        %v410 = vld [vmem:[%s380 + $0x1c] sm:$0x1]
        %v411 = vld [vmem:[%s380 + $0x1d] sm:$0x1]
        %v412 = vld [vmem:[%s380 + $0x1e] sm:$0x1]
        %v413 = vld [vmem:[%s380 + $0x1f] sm:$0x1]
        %v414 = vld [vmem:[%s380 + $0x20] sm:$0x1]
        %v415 = vld [vmem:[%s380 + $0x21] sm:$0x1]
        %v416 = vld [vmem:[%s380 + $0x22] sm:$0x1]
        %v417 = vld [vmem:[%s380 + $0x23] sm:$0x1]
        %v418 = vld [vmem:[%s380 + $0x24] sm:$0x1]
        %v419 = vld [vmem:[%s380 + $0x25] sm:$0x1]
        %v420 = vld [vmem:[%s380 + $0x26] sm:$0x1]
        %v421 = vld [vmem:[%s380 + $0x27] sm:$0x1]
        %v422 = vld [vmem:[%s380 + $0x28] sm:$0x1]
        %v423 = vld [vmem:[%s380 + $0x29] sm:$0x1]
        %v424 = vld [vmem:[%s380 + $0x2a] sm:$0x1]
        %v425 = vld [vmem:[%s380 + $0x2b] sm:$0x1]
        %v426 = vld [vmem:[%s380 + $0x2c] sm:$0x1]
        %v427 = vld [vmem:[%s380 + $0x2d] sm:$0x1]
        %v428 = vld [vmem:[%s380 + $0x2e] sm:$0x1]
        %v429 = vld [vmem:[%s380 + $0x2f] sm:$0x1]
        %v430 = vld [vmem:[%s380 + $0x30] sm:$0x1]
        %v431 = vld [vmem:[%s380 + $0x31] sm:$0x1]
        %v432 = vld [vmem:[%s380 + $0x32] sm:$0x1]
        %v433 = vld [vmem:[%s380 + $0x33] sm:$0x1]
        %v434 = vld [vmem:[%s380 + $0x34] sm:$0x1]
        %v435 = vld [vmem:[%s380 + $0x35] sm:$0x1]
        %v436 = vld [vmem:[%s380 + $0x36] sm:$0x1]
        %v437 = vld [vmem:[%s380 + $0x37] sm:$0x1]
        %v438 = vld [vmem:[%s380 + $0x38] sm:$0x1]
        %v439 = vld [vmem:[%s380 + $0x39] sm:$0x1]
        %v440 = vld [vmem:[%s380 + $0x3a] sm:$0x1]
        %v441 = vld [vmem:[%s380 + $0x3b] sm:$0x1]
        %v442 = vld [vmem:[%s380 + $0x3c] sm:$0x1]
        %v443 = vld [vmem:[%s380 + $0x3d] sm:$0x1]
        %v444 = vld [vmem:[%s380 + $0x3e] sm:$0x1]
        %v445 = vld [vmem:[%s380 + $0x3f] sm:$0x1]
        %v446 = vld [vmem:[%s380 + $0x40] sm:$0x1]
        %v447 = vld [vmem:[%s380 + $0x41] sm:$0x1]
        %v448 = vld [vmem:[%s380 + $0x42] sm:$0x1]
        %v449 = vld [vmem:[%s380 + $0x43] sm:$0x1]
        %v450 = vld [vmem:[%s380 + $0x44] sm:$0x1]
        %v451 = vld [vmem:[%s380 + $0x45] sm:$0x1]
        %v452 = vld [vmem:[%s380 + $0x46] sm:$0x1]
        %v453 = vld [vmem:[%s380 + $0x47] sm:$0x1]
        %v454 = vld [vmem:[%s380 + $0x48] sm:$0x1]
        %v455 = vld [vmem:[%s380 + $0x49] sm:$0x1]
        %v456 = vld [vmem:[%s380 + $0x4a] sm:$0x1]
        %v457 = vld [vmem:[%s380 + $0x4b] sm:$0x1]
        %v458 = vld [vmem:[%s380 + $0x4c] sm:$0x1]
        %v459 = vld [vmem:[%s380 + $0x4d] sm:$0x1]
        %v460 = vld [vmem:[%s380 + $0x4e] sm:$0x1]
        %v461 = vld [vmem:[%s380 + $0x4f] sm:$0x1]
        %v462 = vld [vmem:[%s380 + $0x50] sm:$0x1]
        %v463 = vld [vmem:[%s380 + $0x51] sm:$0x1]
        %v464 = vld [vmem:[%s380 + $0x52] sm:$0x1]
        %v465 = vld [vmem:[%s380 + $0x53] sm:$0x1]
        %v466 = vld [vmem:[%s380 + $0x54] sm:$0x1]
        %v467 = vld [vmem:[%s380 + $0x55] sm:$0x1]
        %v468 = vld [vmem:[%s380 + $0x56] sm:$0x1]
        %v469 = vld [vmem:[%s380 + $0x57] sm:$0x1]
        %v470 = vld [vmem:[%s380 + $0x58] sm:$0x1]
        %v471 = vld [vmem:[%s380 + $0x59] sm:$0x1]
        %v472 = vld [vmem:[%s380 + $0x5a] sm:$0x1]
        %v473 = vld [vmem:[%s380 + $0x5b] sm:$0x1]
        %v474 = vld [vmem:[%s380 + $0x5c] sm:$0x1]
        %v475 = vld [vmem:[%s380 + $0x5d] sm:$0x1]
        %v476 = vld [vmem:[%s380 + $0x5e] sm:$0x1]
        %v477 = vld [vmem:[%s380 + $0x5f] sm:$0x1]
        %v478 = vld [vmem:[%s380 + $0x60] sm:$0x1]
        %v479 = vld [vmem:[%s380 + $0x61] sm:$0x1]
        %v480 = vld [vmem:[%s380 + $0x62] sm:$0x1]
        %v481 = vld [vmem:[%s380 + $0x63] sm:$0x1]
        %v482 = vld [vmem:[%s380 + $0x64] sm:$0x1]
        %v483 = vld [vmem:[%s380 + $0x65] sm:$0x1]
        %v484 = vld [vmem:[%s380 + $0x66] sm:$0x1]
        %v485 = vld [vmem:[%s380 + $0x67] sm:$0x1]
        %v486 = vld [vmem:[%s380 + $0x68] sm:$0x1]
        %v487 = vld [vmem:[%s380 + $0x69] sm:$0x1]
        %v488 = vld [vmem:[%s380 + $0x6a] sm:$0x1]
        %v489 = vld [vmem:[%s380 + $0x6b] sm:$0x1]
        %v490 = vld [vmem:[%s380 + $0x6c] sm:$0x1]
        %v491 = vld [vmem:[%s380 + $0x6d] sm:$0x1]
        %v492 = vld [vmem:[%s380 + $0x6e] sm:$0x1]
        %v493 = vld [vmem:[%s380 + $0x6f] sm:$0x1]
        %v494 = vld [vmem:[%s380 + $0x70] sm:$0x1]
        %v495 = vld [vmem:[%s380 + $0x71] sm:$0x1]
        %v496 = vld [vmem:[%s380 + $0x72] sm:$0x1]
        %v497 = vld [vmem:[%s380 + $0x73] sm:$0x1]
        %v498 = vld [vmem:[%s380 + $0x74] sm:$0x1]
        %v499 = vld [vmem:[%s380 + $0x75] sm:$0x1]
        %v500 = vld [vmem:[%s380 + $0x76] sm:$0x1]
        %v501 = vld [vmem:[%s380 + $0x77] sm:$0x1]
        %v502 = vld [vmem:[%s380 + $0x78] sm:$0x1]
        %v503 = vld [vmem:[%s380 + $0x79] sm:$0x1]
        %v504 = vld [vmem:[%s380 + $0x7a] sm:$0x1]
        %v505 = vld [vmem:[%s380 + $0x7b] sm:$0x1]
        %v506 = vld [vmem:[%s380 + $0x7c] sm:$0x1]
        %v507 = vld [vmem:[%s380 + $0x7d] sm:$0x1]
        %v508 = vld [vmem:[%s380 + $0x7e] sm:$0x1]
        %v509 = vld [vmem:[%s380 + $0x7f] sm:$0x1]
        %v510 = vld [vmem:[%s380 + $0x80] sm:$0x1]
        %v511 = vld [vmem:[%s380 + $0x81] sm:$0x1]
        %v512 = vld [vmem:[%s380 + $0x82] sm:$0x1]
        %v513 = vld [vmem:[%s380 + $0x83] sm:$0x1]
        %v514 = vld [vmem:[%s380 + $0x84] sm:$0x1]
        %v515 = vld [vmem:[%s380 + $0x85] sm:$0x1]
        %v516 = vld [vmem:[%s380 + $0x86] sm:$0x1]
        %v517 = vld [vmem:[%s380 + $0x87] sm:$0x1]
        %v518 = vld [vmem:[%s380 + $0x88] sm:$0x1]
        %v519 = vld [vmem:[%s380 + $0x89] sm:$0x1]
        %v520 = vld [vmem:[%s380 + $0x8a] sm:$0x1]
        %v521 = vld [vmem:[%s380 + $0x8b] sm:$0x1]
        %v522 = vld [vmem:[%s380 + $0x8c] sm:$0x1]
        %v523 = vld [vmem:[%s380 + $0x8d] sm:$0x1]
        %v524 = vld [vmem:[%s380 + $0x8e] sm:$0x1]
        %v525 = vld [vmem:[%s380 + $0x8f] sm:$0x1]
        %v526 = vld [vmem:[%s380 + $0x90] sm:$0x1]
        %v527 = vld [vmem:[%s380 + $0x91] sm:$0x1]
        %v528 = vld [vmem:[%s380 + $0x92] sm:$0x1]
        %v529 = vld [vmem:[%s380 + $0x93] sm:$0x1]
        %v530 = vld [vmem:[%s380 + $0x94] sm:$0x1]
        %v531 = vld [vmem:[%s380 + $0x95] sm:$0x1]
        %v532 = vld [vmem:[%s380 + $0x96] sm:$0x1]
        %v533 = vld [vmem:[%s380 + $0x97] sm:$0x1]
        %v534 = vld [vmem:[%s380 + $0x98] sm:$0x1]
        %v535 = vld [vmem:[%s380 + $0x99] sm:$0x1]
        %v536 = vld [vmem:[%s380 + $0x9a] sm:$0x1]
        %v537 = vld [vmem:[%s380 + $0x9b] sm:$0x1]
        %v538 = vld [vmem:[%s380 + $0x9c] sm:$0x1]
        %v539 = vld [vmem:[%s380 + $0x9d] sm:$0x1]
        %v540 = vld [vmem:[%s380 + $0x9e] sm:$0x1]
        %v541 = vld [vmem:[%s380 + $0x9f] sm:$0x1]
        %v542 = vld [vmem:[%s380 + $0xa0] sm:$0x1]
        %v543 = vld [vmem:[%s380 + $0xa1] sm:$0x1]
        %v544 = vld [vmem:[%s380 + $0xa2] sm:$0x1]
        %v545 = vld [vmem:[%s380 + $0xa3] sm:$0x1]
        %v546 = vld [vmem:[%s380 + $0xa4] sm:$0x1]
        %v547 = vld [vmem:[%s380 + $0xa5] sm:$0x1]
        %v548 = vld [vmem:[%s380 + $0xa6] sm:$0x1]
        %v549 = vld [vmem:[%s380 + $0xa7] sm:$0x1]
        %v550 = vld [vmem:[%s380 + $0xa8] sm:$0x1]
        %v551 = vld [vmem:[%s380 + $0xa9] sm:$0x1]
        %v552 = vld [vmem:[%s380 + $0xaa] sm:$0x1]
        %v553 = vld [vmem:[%s380 + $0xab] sm:$0x1]
        %v554 = vld [vmem:[%s380 + $0xac] sm:$0x1]
        %v555 = vld [vmem:[%s380 + $0xad] sm:$0x1]
        %v556 = vld [vmem:[%s380 + $0xae] sm:$0x1]
        %v557 = vld [vmem:[%s380 + $0xaf] sm:$0x1]
        %v558 = vld [vmem:[%s380 + $0xb0] sm:$0x1]
        %v559 = vld [vmem:[%s380 + $0xb1] sm:$0x1]
        %v560 = vld [vmem:[%s380 + $0xb2] sm:$0x1]
        %v561 = vld [vmem:[%s380 + $0xb3] sm:$0x1]
        %v562 = vld [vmem:[%s380 + $0xb4] sm:$0x1]
        %v563 = vld [vmem:[%s380 + $0xb5] sm:$0x1]
        %v564 = vld [vmem:[%s380 + $0xb6] sm:$0x1]
        %v565 = vld [vmem:[%s380 + $0xb7] sm:$0x1]
        %v566 = vld [vmem:[%s380 + $0xb8] sm:$0x1]
        %v567 = vld [vmem:[%s380 + $0xb9] sm:$0x1]
        %v568 = vld [vmem:[%s380 + $0xba] sm:$0x1]
        %v569 = vld [vmem:[%s380 + $0xbb] sm:$0x1]
        %v570 = vld [vmem:[%s380 + $0xbc] sm:$0x1]
        %v571 = vld [vmem:[%s380 + $0xbd] sm:$0x1]
        %v572 = vld [vmem:[%s380 + $0xbe] sm:$0x1]
        %v573 = vld [vmem:[%s380 + $0xbf] sm:$0x1]
        %v574 = vld [vmem:[%s380 + $0xc0] sm:$0x1]
        %v575 = vld [vmem:[%s380 + $0xc1] sm:$0x1]
        %v576 = vld [vmem:[%s380 + $0xc2] sm:$0x1]
        %v577 = vld [vmem:[%s380 + $0xc3] sm:$0x1]
        %v578 = vld [vmem:[%s380 + $0xc4] sm:$0x1]
        %v579 = vld [vmem:[%s380 + $0xc5] sm:$0x1]
        %v580 = vld [vmem:[%s380 + $0xc6] sm:$0x1]
        %v581 = vld [vmem:[%s380 + $0xc7] sm:$0x1]
        %v582 = vld [vmem:[%s380 + $0xc8] sm:$0x1]
        %v583 = vld [vmem:[%s380 + $0xc9] sm:$0x1]
        %v584 = vld [vmem:[%s380 + $0xca] sm:$0x1]
        %v585 = vld [vmem:[%s380 + $0xcb] sm:$0x1]
        %v586 = vld [vmem:[%s380 + $0xcc] sm:$0x1]
        %v587 = vld [vmem:[%s380 + $0xcd] sm:$0x1]
        %v588 = vld [vmem:[%s380 + $0xce] sm:$0x1]
        %v589 = vld [vmem:[%s380 + $0xcf] sm:$0x1]
        %v590 = vld [vmem:[%s380 + $0xd0] sm:$0x1]
        %v591 = vld [vmem:[%s380 + $0xd1] sm:$0x1]
        %v592 = vld [vmem:[%s380 + $0xd2] sm:$0x1]
        %v593 = vld [vmem:[%s380 + $0xd3] sm:$0x1]
        %v594 = vld [vmem:[%s380 + $0xd4] sm:$0x1]
        %v595 = vld [vmem:[%s380 + $0xd5] sm:$0x1]
        %v596 = vld [vmem:[%s380 + $0xd6] sm:$0x1]
        %v597 = vld [vmem:[%s380 + $0xd7] sm:$0x1]
        %v598 = vld [vmem:[%s380 + $0xd8] sm:$0x1]
        %v599 = vld [vmem:[%s380 + $0xd9] sm:$0x1]
        %v600 = vld [vmem:[%s380 + $0xda] sm:$0x1]
        %v601 = vld [vmem:[%s380 + $0xdb] sm:$0x1]
        %v602 = vld [vmem:[%s380 + $0xdc] sm:$0x1]
        %v603 = vld [vmem:[%s380 + $0xdd] sm:$0x1]
        %v604 = vld [vmem:[%s380 + $0xde] sm:$0x1]
        %v605 = vld [vmem:[%s380 + $0xdf] sm:$0x1]
        %v606 = vld [vmem:[%s380 + $0xe0] sm:$0x1]
        %v607 = vld [vmem:[%s380 + $0xe1] sm:$0x1]
        %v608 = vld [vmem:[%s380 + $0xe2] sm:$0x1]
        %v609 = vld [vmem:[%s380 + $0xe3] sm:$0x1]
        %v610 = vld [vmem:[%s380 + $0xe4] sm:$0x1]
        %v611 = vld [vmem:[%s380 + $0xe5] sm:$0x1]
        %v612 = vld [vmem:[%s380 + $0xe6] sm:$0x1]
        %v613 = vld [vmem:[%s380 + $0xe7] sm:$0x1]
        %v614 = vld [vmem:[%s380 + $0xe8] sm:$0x1]
        %v615 = vld [vmem:[%s380 + $0xe9] sm:$0x1]
        %v616 = vld [vmem:[%s380 + $0xea] sm:$0x1]
        %v617 = vld [vmem:[%s380 + $0xeb] sm:$0x1]
        %v618 = vld [vmem:[%s380 + $0xec] sm:$0x1]
        %v619 = vld [vmem:[%s380 + $0xed] sm:$0x1]
        %v620 = vld [vmem:[%s380 + $0xee] sm:$0x1]
        %v621 = vld [vmem:[%s380 + $0xef] sm:$0x1]
        %v622 = vld [vmem:[%s380 + $0xf0] sm:$0x1]
        %v623 = vld [vmem:[%s380 + $0xf1] sm:$0x1]
        %v624 = vld [vmem:[%s380 + $0xf2] sm:$0x1]
        %v625 = vld [vmem:[%s380 + $0xf3] sm:$0x1]
        %v626 = vld [vmem:[%s380 + $0xf4] sm:$0x1]
        %v627 = vld [vmem:[%s380 + $0xf5] sm:$0x1]
        %v628 = vld [vmem:[%s380 + $0xf6] sm:$0x1]
        %v629 = vld [vmem:[%s380 + $0xf7] sm:$0x1]
        %v630 = vld [vmem:[%s380 + $0xf8] sm:$0x1]
        %v631 = vld [vmem:[%s380 + $0xf9] sm:$0x1]
        %v632 = vld [vmem:[%s380 + $0xfa] sm:$0x1]
        %v633 = vld [vmem:[%s380 + $0xfb] sm:$0x1]
        %v634 = vld [vmem:[%s380 + $0xfc] sm:$0x1]
        %v635 = vld [vmem:[%s380 + $0xfd] sm:$0x1]
        %v636 = vld [vmem:[%s380 + $0xfe] sm:$0x1]
        %v637 = vld [vmem:[%s380 + $0xff] sm:$0x1]
        %v638 = vunpack.c.l.bf16 %v382
        %v639 = vunpack.c.l.bf16 %v383
        %v640 = vunpack.c.l.bf16 %v384
        %v641 = vunpack.c.l.bf16 %v385
        %v642 = vunpack.c.l.bf16 %v386
        %v643 = vunpack.c.l.bf16 %v387
        %v644 = vunpack.c.l.bf16 %v388
        %v645 = vunpack.c.l.bf16 %v389
        %v646 = vunpack.c.l.bf16 %v390
        %v647 = vunpack.c.l.bf16 %v391
        %v648 = vunpack.c.l.bf16 %v392
        %v649 = vunpack.c.l.bf16 %v393
        %v650 = vunpack.c.l.bf16 %v394
        %v651 = vunpack.c.l.bf16 %v395
        %v652 = vunpack.c.l.bf16 %v396
        %v653 = vunpack.c.l.bf16 %v397
        %v654 = vunpack.c.l.bf16 %v398
        %v655 = vunpack.c.l.bf16 %v399
        %v656 = vunpack.c.l.bf16 %v400
        %v657 = vunpack.c.l.bf16 %v401
        %v658 = vunpack.c.l.bf16 %v402
        %v659 = vunpack.c.l.bf16 %v403
        %v660 = vunpack.c.l.bf16 %v404
        %v661 = vunpack.c.l.bf16 %v405
        %v662 = vunpack.c.l.bf16 %v406
        %v663 = vunpack.c.l.bf16 %v407
        %v664 = vunpack.c.l.bf16 %v408
        %v665 = vunpack.c.l.bf16 %v409
        %v666 = vunpack.c.l.bf16 %v410
        %v667 = vunpack.c.l.bf16 %v411
        %v668 = vunpack.c.l.bf16 %v412
        %v669 = vunpack.c.l.bf16 %v413
        %v670 = vunpack.c.l.bf16 %v414
        %v671 = vunpack.c.l.bf16 %v415
        %v672 = vunpack.c.l.bf16 %v416
        %v673 = vunpack.c.l.bf16 %v417
        %v674 = vunpack.c.l.bf16 %v418
        %v675 = vunpack.c.l.bf16 %v419
        %v676 = vunpack.c.l.bf16 %v420
        %v677 = vunpack.c.l.bf16 %v421
        %v678 = vunpack.c.l.bf16 %v422
        %v679 = vunpack.c.l.bf16 %v423
        %v680 = vunpack.c.l.bf16 %v424
        %v681 = vunpack.c.l.bf16 %v425
        %v682 = vunpack.c.l.bf16 %v426
        %v683 = vunpack.c.l.bf16 %v427
        %v684 = vunpack.c.l.bf16 %v428
        %v685 = vunpack.c.l.bf16 %v429
        %v686 = vunpack.c.l.bf16 %v430
        %v687 = vunpack.c.l.bf16 %v431
        %v688 = vunpack.c.l.bf16 %v432
        %v689 = vunpack.c.l.bf16 %v433
        %v690 = vunpack.c.l.bf16 %v434
        %v691 = vunpack.c.l.bf16 %v435
        %v692 = vunpack.c.l.bf16 %v436
        %v693 = vunpack.c.l.bf16 %v437
        %v694 = vunpack.c.l.bf16 %v438
        %v695 = vunpack.c.l.bf16 %v439
        %v696 = vunpack.c.l.bf16 %v440
        %v697 = vunpack.c.l.bf16 %v441
        %v698 = vunpack.c.l.bf16 %v442
        %v699 = vunpack.c.l.bf16 %v443
        %v700 = vunpack.c.l.bf16 %v444
        %v701 = vunpack.c.l.bf16 %v445
        %v702 = vunpack.c.l.bf16 %v446
        %v703 = vunpack.c.l.bf16 %v447
        %v704 = vunpack.c.l.bf16 %v448
        %v705 = vunpack.c.l.bf16 %v449
        %v706 = vunpack.c.l.bf16 %v450
        %v707 = vunpack.c.l.bf16 %v451
        %v708 = vunpack.c.l.bf16 %v452
        %v709 = vunpack.c.l.bf16 %v453
        %v710 = vunpack.c.l.bf16 %v454
        %v711 = vunpack.c.l.bf16 %v455
        %v712 = vunpack.c.l.bf16 %v456
        %v713 = vunpack.c.l.bf16 %v457
        %v714 = vunpack.c.l.bf16 %v458
        %v715 = vunpack.c.l.bf16 %v459
        %v716 = vunpack.c.l.bf16 %v460
        %v717 = vunpack.c.l.bf16 %v461
        %v718 = vunpack.c.l.bf16 %v462
        %v719 = vunpack.c.l.bf16 %v463
        %v720 = vunpack.c.l.bf16 %v464
        %v721 = vunpack.c.l.bf16 %v465
        %v722 = vunpack.c.l.bf16 %v466
        %v723 = vunpack.c.l.bf16 %v467
        %v724 = vunpack.c.l.bf16 %v468
        %v725 = vunpack.c.l.bf16 %v469
        %v726 = vunpack.c.l.bf16 %v470
        %v727 = vunpack.c.l.bf16 %v471
        %v728 = vunpack.c.l.bf16 %v472
        %v729 = vunpack.c.l.bf16 %v473
        %v730 = vunpack.c.l.bf16 %v474
        %v731 = vunpack.c.l.bf16 %v475
        %v732 = vunpack.c.l.bf16 %v476
        %v733 = vunpack.c.l.bf16 %v477
        %v734 = vunpack.c.l.bf16 %v478
        %v735 = vunpack.c.l.bf16 %v479
        %v736 = vunpack.c.l.bf16 %v480
        %v737 = vunpack.c.l.bf16 %v481
        %v738 = vunpack.c.l.bf16 %v482
        %v739 = vunpack.c.l.bf16 %v483
        %v740 = vunpack.c.l.bf16 %v484
        %v741 = vunpack.c.l.bf16 %v485
        %v742 = vunpack.c.l.bf16 %v486
        %v743 = vunpack.c.l.bf16 %v487
        %v744 = vunpack.c.l.bf16 %v488
        %v745 = vunpack.c.l.bf16 %v489
        %v746 = vunpack.c.l.bf16 %v490
        %v747 = vunpack.c.l.bf16 %v491
        %v748 = vunpack.c.l.bf16 %v492
        %v749 = vunpack.c.l.bf16 %v493
        %v750 = vunpack.c.l.bf16 %v494
        %v751 = vunpack.c.l.bf16 %v495
        %v752 = vunpack.c.l.bf16 %v496
        %v753 = vunpack.c.l.bf16 %v497
        %v754 = vunpack.c.l.bf16 %v498
        %v755 = vunpack.c.l.bf16 %v499
        %v756 = vunpack.c.l.bf16 %v500
        %v757 = vunpack.c.l.bf16 %v501
        %v758 = vunpack.c.l.bf16 %v502
        %v759 = vunpack.c.l.bf16 %v503
        %v760 = vunpack.c.l.bf16 %v504
        %v761 = vunpack.c.l.bf16 %v505
        %v762 = vunpack.c.l.bf16 %v506
        %v763 = vunpack.c.l.bf16 %v507
        %v764 = vunpack.c.l.bf16 %v508
        %v765 = vunpack.c.l.bf16 %v509
        %v766 = vunpack.c.l.bf16 %v510
        %v767 = vunpack.c.l.bf16 %v511
        %v768 = vunpack.c.l.bf16 %v512
        %v769 = vunpack.c.l.bf16 %v513
        %v770 = vunpack.c.l.bf16 %v514
        %v771 = vunpack.c.l.bf16 %v515
        %v772 = vunpack.c.l.bf16 %v516
        %v773 = vunpack.c.l.bf16 %v517
        %v774 = vunpack.c.l.bf16 %v518
        %v775 = vunpack.c.l.bf16 %v519
        %v776 = vunpack.c.l.bf16 %v520
        %v777 = vunpack.c.l.bf16 %v521
        %v778 = vunpack.c.l.bf16 %v522
        %v779 = vunpack.c.l.bf16 %v523
        %v780 = vunpack.c.l.bf16 %v524
        %v781 = vunpack.c.l.bf16 %v525
        %v782 = vunpack.c.l.bf16 %v526
        %v783 = vunpack.c.l.bf16 %v527
        %v784 = vunpack.c.l.bf16 %v528
        %v785 = vunpack.c.l.bf16 %v529
        %v786 = vunpack.c.l.bf16 %v530
        %v787 = vunpack.c.l.bf16 %v531
        %v788 = vunpack.c.l.bf16 %v532
        %v789 = vunpack.c.l.bf16 %v533
        %v790 = vunpack.c.l.bf16 %v534
        %v791 = vunpack.c.l.bf16 %v535
        %v792 = vunpack.c.l.bf16 %v536
        %v793 = vunpack.c.l.bf16 %v537
        %v794 = vunpack.c.l.bf16 %v538
        %v795 = vunpack.c.l.bf16 %v539
        %v796 = vunpack.c.l.bf16 %v540
        %v797 = vunpack.c.l.bf16 %v541
        %v798 = vunpack.c.l.bf16 %v542
        %v799 = vunpack.c.l.bf16 %v543
        %v800 = vunpack.c.l.bf16 %v544
        %v801 = vunpack.c.l.bf16 %v545
        %v802 = vunpack.c.l.bf16 %v546
        %v803 = vunpack.c.l.bf16 %v547
        %v804 = vunpack.c.l.bf16 %v548
        %v805 = vunpack.c.l.bf16 %v549
        %v806 = vunpack.c.l.bf16 %v550
        %v807 = vunpack.c.l.bf16 %v551
        %v808 = vunpack.c.l.bf16 %v552
        %v809 = vunpack.c.l.bf16 %v553
        %v810 = vunpack.c.l.bf16 %v554
        %v811 = vunpack.c.l.bf16 %v555
        %v812 = vunpack.c.l.bf16 %v556
        %v813 = vunpack.c.l.bf16 %v557
        %v814 = vunpack.c.l.bf16 %v558
        %v815 = vunpack.c.l.bf16 %v559
        %v816 = vunpack.c.l.bf16 %v560
        %v817 = vunpack.c.l.bf16 %v561
        %v818 = vunpack.c.l.bf16 %v562
        %v819 = vunpack.c.l.bf16 %v563
        %v820 = vunpack.c.l.bf16 %v564
        %v821 = vunpack.c.l.bf16 %v565
        %v822 = vunpack.c.l.bf16 %v566
        %v823 = vunpack.c.l.bf16 %v567
        %v824 = vunpack.c.l.bf16 %v568
        %v825 = vunpack.c.l.bf16 %v569
        %v826 = vunpack.c.l.bf16 %v570
        %v827 = vunpack.c.l.bf16 %v571
        %v828 = vunpack.c.l.bf16 %v572
        %v829 = vunpack.c.l.bf16 %v573
        %v830 = vunpack.c.l.bf16 %v574
        %v831 = vunpack.c.l.bf16 %v575
        %v832 = vunpack.c.l.bf16 %v576
        %v833 = vunpack.c.l.bf16 %v577
        %v834 = vunpack.c.l.bf16 %v578
        %v835 = vunpack.c.l.bf16 %v579
        %v836 = vunpack.c.l.bf16 %v580
        %v837 = vunpack.c.l.bf16 %v581
        %v838 = vunpack.c.l.bf16 %v582
        %v839 = vunpack.c.l.bf16 %v583
        %v840 = vunpack.c.l.bf16 %v584
        %v841 = vunpack.c.l.bf16 %v585
        %v842 = vunpack.c.l.bf16 %v586
        %v843 = vunpack.c.l.bf16 %v587
        %v844 = vunpack.c.l.bf16 %v588
        %v845 = vunpack.c.l.bf16 %v589
        %v846 = vunpack.c.l.bf16 %v590
        %v847 = vunpack.c.l.bf16 %v591
        %v848 = vunpack.c.l.bf16 %v592
        %v849 = vunpack.c.l.bf16 %v593
        %v850 = vunpack.c.l.bf16 %v594
        %v851 = vunpack.c.l.bf16 %v595
        %v852 = vunpack.c.l.bf16 %v596
        %v853 = vunpack.c.l.bf16 %v597
        %v854 = vunpack.c.l.bf16 %v598
        %v855 = vunpack.c.l.bf16 %v599
        %v856 = vunpack.c.l.bf16 %v600
        %v857 = vunpack.c.l.bf16 %v601
        %v858 = vunpack.c.l.bf16 %v602
        %v859 = vunpack.c.l.bf16 %v603
        %v860 = vunpack.c.l.bf16 %v604
        %v861 = vunpack.c.l.bf16 %v605
        %v862 = vunpack.c.l.bf16 %v606
        %v863 = vunpack.c.l.bf16 %v607
        %v864 = vunpack.c.l.bf16 %v608
        %v865 = vunpack.c.l.bf16 %v609
        %v866 = vunpack.c.l.bf16 %v610
        %v867 = vunpack.c.l.bf16 %v611
        %v868 = vunpack.c.l.bf16 %v612
        %v869 = vunpack.c.l.bf16 %v613
        %v870 = vunpack.c.l.bf16 %v614
        %v871 = vunpack.c.l.bf16 %v615
        %v872 = vunpack.c.l.bf16 %v616
        %v873 = vunpack.c.l.bf16 %v617
        %v874 = vunpack.c.l.bf16 %v618
        %v875 = vunpack.c.l.bf16 %v619
        %v876 = vunpack.c.l.bf16 %v620
        %v877 = vunpack.c.l.bf16 %v621
        %v878 = vunpack.c.l.bf16 %v622
        %v879 = vunpack.c.l.bf16 %v623
        %v880 = vunpack.c.l.bf16 %v624
        %v881 = vunpack.c.l.bf16 %v625
        %v882 = vunpack.c.l.bf16 %v626
        %v883 = vunpack.c.l.bf16 %v627
        %v884 = vunpack.c.l.bf16 %v628
        %v885 = vunpack.c.l.bf16 %v629
        %v886 = vunpack.c.l.bf16 %v630
        %v887 = vunpack.c.l.bf16 %v631
        %v888 = vunpack.c.l.bf16 %v632
        %v889 = vunpack.c.l.bf16 %v633
        %v890 = vunpack.c.l.bf16 %v634
        %v891 = vunpack.c.l.bf16 %v635
        %v892 = vunpack.c.l.bf16 %v636
        %v893 = vunpack.c.l.bf16 %v637
        %951 = vrot.lane.b32.xlu0 0.0, 4
        %v952 = vpop.permute.xlu0 %951
        %953 = vrot.lane.b32.xlu0 %v654, 4
        %v954 = vpop.permute.xlu0 %953
        %955 = vrot.lane.b32.xlu0 %v656, 4
        %v956 = vpop.permute.xlu0 %955
        %957 = vrot.lane.b32.xlu0 %v658, 4
        %v958 = vpop.permute.xlu0 %957
        %959 = vrot.lane.b32.xlu0 %v660, 4
        %v960 = vpop.permute.xlu0 %959
        %961 = vrot.lane.b32.xlu0 %v662, 4
        %v962 = vpop.permute.xlu0 %961
        %963 = vrot.lane.b32.xlu0 %v664, 4
        %v964 = vpop.permute.xlu0 %963
        %965 = vrot.lane.b32.xlu0 %v666, 4
        %v966 = vpop.permute.xlu0 %965
        %967 = vrot.lane.b32.xlu0 %v668, 4
        %v968 = vpop.permute.xlu0 %967
        %969 = vrot.lane.b32.xlu0 %v686, 4
        %v970 = vpop.permute.xlu0 %969
        %971 = vrot.lane.b32.xlu0 %v688, 4
        %v972 = vpop.permute.xlu0 %971
        %973 = vrot.lane.b32.xlu0 %v690, 4
        %v974 = vpop.permute.xlu0 %973
        %975 = vrot.lane.b32.xlu0 %v692, 4
        %v976 = vpop.permute.xlu0 %975
        %977 = vrot.lane.b32.xlu0 %v694, 4
        %v978 = vpop.permute.xlu0 %977
        %979 = vrot.lane.b32.xlu0 %v696, 4
        %v980 = vpop.permute.xlu0 %979
        %981 = vrot.lane.b32.xlu0 %v698, 4
        %v982 = vpop.permute.xlu0 %981
        %983 = vrot.lane.b32.xlu0 %v700, 4
        %v984 = vpop.permute.xlu0 %983
        %985 = vrot.lane.b32.xlu0 %v718, 4
        %v986 = vpop.permute.xlu0 %985
        %987 = vrot.lane.b32.xlu0 %v720, 4
        %v988 = vpop.permute.xlu0 %987
        %989 = vrot.lane.b32.xlu0 %v722, 4
        %v990 = vpop.permute.xlu0 %989
        %991 = vrot.lane.b32.xlu0 %v724, 4
        %v992 = vpop.permute.xlu0 %991
        %993 = vrot.lane.b32.xlu0 %v726, 4
        %v994 = vpop.permute.xlu0 %993
        %995 = vrot.lane.b32.xlu0 %v728, 4
        %v996 = vpop.permute.xlu0 %995
        %997 = vrot.lane.b32.xlu0 %v730, 4
        %v998 = vpop.permute.xlu0 %997
        %999 = vrot.lane.b32.xlu0 %v732, 4
        %v1000 = vpop.permute.xlu0 %999
        %1001 = vrot.lane.b32.xlu0 %v750, 4
        %v1002 = vpop.permute.xlu0 %1001
        %1003 = vrot.lane.b32.xlu0 %v752, 4
        %v1004 = vpop.permute.xlu0 %1003
        %1005 = vrot.lane.b32.xlu0 %v754, 4
        %v1006 = vpop.permute.xlu0 %1005
        %1007 = vrot.lane.b32.xlu0 %v756, 4
        %v1008 = vpop.permute.xlu0 %1007
        %1009 = vrot.lane.b32.xlu0 %v758, 4
        %v1010 = vpop.permute.xlu0 %1009
        %1011 = vrot.lane.b32.xlu0 %v760, 4
        %v1012 = vpop.permute.xlu0 %1011
        %1013 = vrot.lane.b32.xlu0 %v762, 4
        %v1014 = vpop.permute.xlu0 %1013
        %1015 = vrot.lane.b32.xlu0 %v764, 4
        %v1016 = vpop.permute.xlu0 %1015
        %1017 = vrot.lane.b32.xlu0 %v782, 4
        %v1018 = vpop.permute.xlu0 %1017
        %1019 = vrot.lane.b32.xlu0 %v784, 4
        %v1020 = vpop.permute.xlu0 %1019
        %1021 = vrot.lane.b32.xlu0 %v786, 4
        %v1022 = vpop.permute.xlu0 %1021
        %1023 = vrot.lane.b32.xlu0 %v788, 4
        %v1024 = vpop.permute.xlu0 %1023
        %1025 = vrot.lane.b32.xlu0 %v790, 4
        %v1026 = vpop.permute.xlu0 %1025
        %1027 = vrot.lane.b32.xlu0 %v792, 4
        %v1028 = vpop.permute.xlu0 %1027
        %1029 = vrot.lane.b32.xlu0 %v794, 4
        %v1030 = vpop.permute.xlu0 %1029
        %1031 = vrot.lane.b32.xlu0 %v796, 4
        %v1032 = vpop.permute.xlu0 %1031
        %1033 = vrot.lane.b32.xlu0 %v814, 4
        %v1034 = vpop.permute.xlu0 %1033
        %1035 = vrot.lane.b32.xlu0 %v816, 4
        %v1036 = vpop.permute.xlu0 %1035
        %1037 = vrot.lane.b32.xlu0 %v818, 4
        %v1038 = vpop.permute.xlu0 %1037
        %1039 = vrot.lane.b32.xlu0 %v820, 4
        %v1040 = vpop.permute.xlu0 %1039
        %1041 = vrot.lane.b32.xlu0 %v822, 4
        %v1042 = vpop.permute.xlu0 %1041
        %1043 = vrot.lane.b32.xlu0 %v824, 4
        %v1044 = vpop.permute.xlu0 %1043
        %1045 = vrot.lane.b32.xlu0 %v826, 4
        %v1046 = vpop.permute.xlu0 %1045
        %1047 = vrot.lane.b32.xlu0 %v828, 4
        %v1048 = vpop.permute.xlu0 %1047
        %1049 = vrot.lane.b32.xlu0 %v846, 4
        %v1050 = vpop.permute.xlu0 %1049
        %1051 = vrot.lane.b32.xlu0 %v848, 4
        %v1052 = vpop.permute.xlu0 %1051
        %1053 = vrot.lane.b32.xlu0 %v850, 4
        %v1054 = vpop.permute.xlu0 %1053
        %1055 = vrot.lane.b32.xlu0 %v852, 4
        %v1056 = vpop.permute.xlu0 %1055
        %1057 = vrot.lane.b32.xlu0 %v854, 4
        %v1058 = vpop.permute.xlu0 %1057
        %1059 = vrot.lane.b32.xlu0 %v856, 4
        %v1060 = vpop.permute.xlu0 %1059
        %1061 = vrot.lane.b32.xlu0 %v858, 4
        %v1062 = vpop.permute.xlu0 %1061
        %1063 = vrot.lane.b32.xlu0 %v860, 4
        %v1064 = vpop.permute.xlu0 %1063
        %1178 = vrot.lane.b32.xlu0 0.0, 8
        %v1179 = vpop.permute.xlu0 %1178
        %1180 = vrot.lane.b32.xlu0 %v655, 8
        %v1181 = vpop.permute.xlu0 %1180
        %1182 = vrot.lane.b32.xlu0 %v657, 8
        %v1183 = vpop.permute.xlu0 %1182
        %1184 = vrot.lane.b32.xlu0 %v659, 8
        %v1185 = vpop.permute.xlu0 %1184
        %1186 = vrot.lane.b32.xlu0 %v661, 8
        %v1187 = vpop.permute.xlu0 %1186
        %1188 = vrot.lane.b32.xlu0 %v663, 8
        %v1189 = vpop.permute.xlu0 %1188
        %1190 = vrot.lane.b32.xlu0 %v665, 8
        %v1191 = vpop.permute.xlu0 %1190
        %1192 = vrot.lane.b32.xlu0 %v667, 8
        %v1193 = vpop.permute.xlu0 %1192
        %1194 = vrot.lane.b32.xlu0 %v669, 8
        %v1195 = vpop.permute.xlu0 %1194
        %1196 = vrot.lane.b32.xlu0 %v687, 8
        %v1197 = vpop.permute.xlu0 %1196
        %1198 = vrot.lane.b32.xlu0 %v689, 8
        %v1199 = vpop.permute.xlu0 %1198
        %1200 = vrot.lane.b32.xlu0 %v691, 8
        %v1201 = vpop.permute.xlu0 %1200
        %1202 = vrot.lane.b32.xlu0 %v693, 8
        %v1203 = vpop.permute.xlu0 %1202
        %1204 = vrot.lane.b32.xlu0 %v695, 8
        %v1205 = vpop.permute.xlu0 %1204
        %1206 = vrot.lane.b32.xlu0 %v697, 8
        %v1207 = vpop.permute.xlu0 %1206
        %1208 = vrot.lane.b32.xlu0 %v699, 8
        %v1209 = vpop.permute.xlu0 %1208
        %1210 = vrot.lane.b32.xlu0 %v701, 8
        %v1211 = vpop.permute.xlu0 %1210
        %1212 = vrot.lane.b32.xlu0 %v719, 8
        %v1213 = vpop.permute.xlu0 %1212
        %1214 = vrot.lane.b32.xlu0 %v721, 8
        %v1215 = vpop.permute.xlu0 %1214
        %1216 = vrot.lane.b32.xlu0 %v723, 8
        %v1217 = vpop.permute.xlu0 %1216
        %1218 = vrot.lane.b32.xlu0 %v725, 8
        %v1219 = vpop.permute.xlu0 %1218
        %1220 = vrot.lane.b32.xlu0 %v727, 8
        %v1221 = vpop.permute.xlu0 %1220
        %1222 = vrot.lane.b32.xlu0 %v729, 8
        %v1223 = vpop.permute.xlu0 %1222
        %1224 = vrot.lane.b32.xlu0 %v731, 8
        %v1225 = vpop.permute.xlu0 %1224
        %1226 = vrot.lane.b32.xlu0 %v733, 8
        %v1227 = vpop.permute.xlu0 %1226
        %1228 = vrot.lane.b32.xlu0 %v751, 8
        %v1229 = vpop.permute.xlu0 %1228
        %1230 = vrot.lane.b32.xlu0 %v753, 8
        %v1231 = vpop.permute.xlu0 %1230
        %1232 = vrot.lane.b32.xlu0 %v755, 8
        %v1233 = vpop.permute.xlu0 %1232
        %1234 = vrot.lane.b32.xlu0 %v757, 8
        %v1235 = vpop.permute.xlu0 %1234
        %1236 = vrot.lane.b32.xlu0 %v759, 8
        %v1237 = vpop.permute.xlu0 %1236
        %1238 = vrot.lane.b32.xlu0 %v761, 8
        %v1239 = vpop.permute.xlu0 %1238
        %1240 = vrot.lane.b32.xlu0 %v763, 8
        %v1241 = vpop.permute.xlu0 %1240
        %1242 = vrot.lane.b32.xlu0 %v765, 8
        %v1243 = vpop.permute.xlu0 %1242
        %1244 = vrot.lane.b32.xlu0 %v783, 8
        %v1245 = vpop.permute.xlu0 %1244
        %1246 = vrot.lane.b32.xlu0 %v785, 8
        %v1247 = vpop.permute.xlu0 %1246
        %1248 = vrot.lane.b32.xlu0 %v787, 8
        %v1249 = vpop.permute.xlu0 %1248
        %1250 = vrot.lane.b32.xlu0 %v789, 8
        %v1251 = vpop.permute.xlu0 %1250
        %1252 = vrot.lane.b32.xlu0 %v791, 8
        %v1253 = vpop.permute.xlu0 %1252
        %1254 = vrot.lane.b32.xlu0 %v793, 8
        %v1255 = vpop.permute.xlu0 %1254
        %1256 = vrot.lane.b32.xlu0 %v795, 8
        %v1257 = vpop.permute.xlu0 %1256
        %1258 = vrot.lane.b32.xlu0 %v797, 8
        %v1259 = vpop.permute.xlu0 %1258
        %1260 = vrot.lane.b32.xlu0 %v815, 8
        %v1261 = vpop.permute.xlu0 %1260
        %1262 = vrot.lane.b32.xlu0 %v817, 8
        %v1263 = vpop.permute.xlu0 %1262
        %1264 = vrot.lane.b32.xlu0 %v819, 8
        %v1265 = vpop.permute.xlu0 %1264
        %1266 = vrot.lane.b32.xlu0 %v821, 8
        %v1267 = vpop.permute.xlu0 %1266
        %1268 = vrot.lane.b32.xlu0 %v823, 8
        %v1269 = vpop.permute.xlu0 %1268
        %1270 = vrot.lane.b32.xlu0 %v825, 8
        %v1271 = vpop.permute.xlu0 %1270
        %1272 = vrot.lane.b32.xlu0 %v827, 8
        %v1273 = vpop.permute.xlu0 %1272
        %1274 = vrot.lane.b32.xlu0 %v829, 8
        %v1275 = vpop.permute.xlu0 %1274
        %1276 = vrot.lane.b32.xlu0 %v847, 8
        %v1277 = vpop.permute.xlu0 %1276
        %1278 = vrot.lane.b32.xlu0 %v849, 8
        %v1279 = vpop.permute.xlu0 %1278
        %1280 = vrot.lane.b32.xlu0 %v851, 8
        %v1281 = vpop.permute.xlu0 %1280
        %1282 = vrot.lane.b32.xlu0 %v853, 8
        %v1283 = vpop.permute.xlu0 %1282
        %1284 = vrot.lane.b32.xlu0 %v855, 8
        %v1285 = vpop.permute.xlu0 %1284
        %1286 = vrot.lane.b32.xlu0 %v857, 8
        %v1287 = vpop.permute.xlu0 %1286
        %1288 = vrot.lane.b32.xlu0 %v859, 8
        %v1289 = vpop.permute.xlu0 %1288
        %1290 = vrot.lane.b32.xlu0 %v861, 8
        %v1291 = vpop.permute.xlu0 %1290
        %1405 = vrot.lane.b32.xlu0 0.0, 12
        %v1406 = vpop.permute.xlu0 %1405
        %1407 = vrot.lane.b32.xlu0 %v639, 12
        %v1408 = vpop.permute.xlu0 %1407
        %1409 = vrot.lane.b32.xlu0 %v641, 12
        %v1410 = vpop.permute.xlu0 %1409
        %1411 = vrot.lane.b32.xlu0 %v643, 12
        %v1412 = vpop.permute.xlu0 %1411
        %1413 = vrot.lane.b32.xlu0 %v645, 12
        %v1414 = vpop.permute.xlu0 %1413
        %1415 = vrot.lane.b32.xlu0 %v647, 12
        %v1416 = vpop.permute.xlu0 %1415
        %1417 = vrot.lane.b32.xlu0 %v649, 12
        %v1418 = vpop.permute.xlu0 %1417
        %1419 = vrot.lane.b32.xlu0 %v651, 12
        %v1420 = vpop.permute.xlu0 %1419
        %1421 = vrot.lane.b32.xlu0 %v671, 12
        %v1422 = vpop.permute.xlu0 %1421
        %1423 = vrot.lane.b32.xlu0 %v673, 12
        %v1424 = vpop.permute.xlu0 %1423
        %1425 = vrot.lane.b32.xlu0 %v675, 12
        %v1426 = vpop.permute.xlu0 %1425
        %1427 = vrot.lane.b32.xlu0 %v677, 12
        %v1428 = vpop.permute.xlu0 %1427
        %1429 = vrot.lane.b32.xlu0 %v679, 12
        %v1430 = vpop.permute.xlu0 %1429
        %1431 = vrot.lane.b32.xlu0 %v681, 12
        %v1432 = vpop.permute.xlu0 %1431
        %1433 = vrot.lane.b32.xlu0 %v683, 12
        %v1434 = vpop.permute.xlu0 %1433
        %1435 = vrot.lane.b32.xlu0 %v703, 12
        %v1436 = vpop.permute.xlu0 %1435
        %1437 = vrot.lane.b32.xlu0 %v705, 12
        %v1438 = vpop.permute.xlu0 %1437
        %1439 = vrot.lane.b32.xlu0 %v707, 12
        %v1440 = vpop.permute.xlu0 %1439
        %1441 = vrot.lane.b32.xlu0 %v709, 12
        %v1442 = vpop.permute.xlu0 %1441
        %1443 = vrot.lane.b32.xlu0 %v711, 12
        %v1444 = vpop.permute.xlu0 %1443
        %1445 = vrot.lane.b32.xlu0 %v713, 12
        %v1446 = vpop.permute.xlu0 %1445
        %1447 = vrot.lane.b32.xlu0 %v715, 12
        %v1448 = vpop.permute.xlu0 %1447
        %1449 = vrot.lane.b32.xlu0 %v735, 12
        %v1450 = vpop.permute.xlu0 %1449
        %1451 = vrot.lane.b32.xlu0 %v737, 12
        %v1452 = vpop.permute.xlu0 %1451
        %1453 = vrot.lane.b32.xlu0 %v739, 12
        %v1454 = vpop.permute.xlu0 %1453
        %1455 = vrot.lane.b32.xlu0 %v741, 12
        %v1456 = vpop.permute.xlu0 %1455
        %1457 = vrot.lane.b32.xlu0 %v743, 12
        %v1458 = vpop.permute.xlu0 %1457
        %1459 = vrot.lane.b32.xlu0 %v745, 12
        %v1460 = vpop.permute.xlu0 %1459
        %1461 = vrot.lane.b32.xlu0 %v747, 12
        %v1462 = vpop.permute.xlu0 %1461
        %1463 = vrot.lane.b32.xlu0 %v767, 12
        %v1464 = vpop.permute.xlu0 %1463
        %1465 = vrot.lane.b32.xlu0 %v769, 12
        %v1466 = vpop.permute.xlu0 %1465
        %1467 = vrot.lane.b32.xlu0 %v771, 12
        %v1468 = vpop.permute.xlu0 %1467
        %1469 = vrot.lane.b32.xlu0 %v773, 12
        %v1470 = vpop.permute.xlu0 %1469
        %1471 = vrot.lane.b32.xlu0 %v775, 12
        %v1472 = vpop.permute.xlu0 %1471
        %1473 = vrot.lane.b32.xlu0 %v777, 12
        %v1474 = vpop.permute.xlu0 %1473
        %1475 = vrot.lane.b32.xlu0 %v779, 12
        %v1476 = vpop.permute.xlu0 %1475
        %1477 = vrot.lane.b32.xlu0 %v799, 12
        %v1478 = vpop.permute.xlu0 %1477
        %1479 = vrot.lane.b32.xlu0 %v801, 12
        %v1480 = vpop.permute.xlu0 %1479
        %1481 = vrot.lane.b32.xlu0 %v803, 12
        %v1482 = vpop.permute.xlu0 %1481
        %1483 = vrot.lane.b32.xlu0 %v805, 12
        %v1484 = vpop.permute.xlu0 %1483
        %1485 = vrot.lane.b32.xlu0 %v807, 12
        %v1486 = vpop.permute.xlu0 %1485
        %1487 = vrot.lane.b32.xlu0 %v809, 12
        %v1488 = vpop.permute.xlu0 %1487
        %1489 = vrot.lane.b32.xlu0 %v811, 12
        %v1490 = vpop.permute.xlu0 %1489
        %1491 = vrot.lane.b32.xlu0 %v831, 12
        %v1492 = vpop.permute.xlu0 %1491
        %1493 = vrot.lane.b32.xlu0 %v833, 12
        %v1494 = vpop.permute.xlu0 %1493
        %1495 = vrot.lane.b32.xlu0 %v835, 12
        %v1496 = vpop.permute.xlu0 %1495
        %1497 = vrot.lane.b32.xlu0 %v837, 12
        %v1498 = vpop.permute.xlu0 %1497
        %1499 = vrot.lane.b32.xlu0 %v839, 12
        %v1500 = vpop.permute.xlu0 %1499
        %1501 = vrot.lane.b32.xlu0 %v841, 12
        %v1502 = vpop.permute.xlu0 %1501
        %1503 = vrot.lane.b32.xlu0 %v843, 12
        %v1504 = vpop.permute.xlu0 %1503
        %1505 = vrot.lane.b32.xlu0 %v863, 12
        %v1506 = vpop.permute.xlu0 %1505
        %1507 = vrot.lane.b32.xlu0 %v865, 12
        %v1508 = vpop.permute.xlu0 %1507
        %1509 = vrot.lane.b32.xlu0 %v867, 12
        %v1510 = vpop.permute.xlu0 %1509
        %1511 = vrot.lane.b32.xlu0 %v869, 12
        %v1512 = vpop.permute.xlu0 %1511
        %1513 = vrot.lane.b32.xlu0 %v871, 12
        %v1514 = vpop.permute.xlu0 %1513
        %1515 = vrot.lane.b32.xlu0 %v873, 12
        %v1516 = vpop.permute.xlu0 %1515
        %1517 = vrot.lane.b32.xlu0 %v875, 12
        %v1518 = vpop.permute.xlu0 %1517
        %1640 = vrot.lane.b32.xlu0 %v638, 16
        %v1641 = vpop.permute.xlu0 %1640
        %1642 = vrot.lane.b32.xlu0 %v640, 16
        %v1643 = vpop.permute.xlu0 %1642
        %1644 = vrot.lane.b32.xlu0 %v642, 16
        %v1645 = vpop.permute.xlu0 %1644
        %1646 = vrot.lane.b32.xlu0 %v644, 16
        %v1647 = vpop.permute.xlu0 %1646
        %1648 = vrot.lane.b32.xlu0 %v646, 16
        %v1649 = vpop.permute.xlu0 %1648
        %1650 = vrot.lane.b32.xlu0 %v648, 16
        %v1651 = vpop.permute.xlu0 %1650
        %1652 = vrot.lane.b32.xlu0 %v650, 16
        %v1653 = vpop.permute.xlu0 %1652
        %1654 = vrot.lane.b32.xlu0 %v652, 16
        %v1655 = vpop.permute.xlu0 %1654
        %1656 = vrot.lane.b32.xlu0 %v670, 16
        %v1657 = vpop.permute.xlu0 %1656
        %1658 = vrot.lane.b32.xlu0 %v672, 16
        %v1659 = vpop.permute.xlu0 %1658
        %1660 = vrot.lane.b32.xlu0 %v674, 16
        %v1661 = vpop.permute.xlu0 %1660
        %1662 = vrot.lane.b32.xlu0 %v676, 16
        %v1663 = vpop.permute.xlu0 %1662
        %1664 = vrot.lane.b32.xlu0 %v678, 16
        %v1665 = vpop.permute.xlu0 %1664
        %1666 = vrot.lane.b32.xlu0 %v680, 16
        %v1667 = vpop.permute.xlu0 %1666
        %1668 = vrot.lane.b32.xlu0 %v682, 16
        %v1669 = vpop.permute.xlu0 %1668
        %1670 = vrot.lane.b32.xlu0 %v684, 16
        %v1671 = vpop.permute.xlu0 %1670
        %1672 = vrot.lane.b32.xlu0 %v702, 16
        %v1673 = vpop.permute.xlu0 %1672
        %1674 = vrot.lane.b32.xlu0 %v704, 16
        %v1675 = vpop.permute.xlu0 %1674
        %1676 = vrot.lane.b32.xlu0 %v706, 16
        %v1677 = vpop.permute.xlu0 %1676
        %1678 = vrot.lane.b32.xlu0 %v708, 16
        %v1679 = vpop.permute.xlu0 %1678
        %1680 = vrot.lane.b32.xlu0 %v710, 16
        %v1681 = vpop.permute.xlu0 %1680
        %1682 = vrot.lane.b32.xlu0 %v712, 16
        %v1683 = vpop.permute.xlu0 %1682
        %1684 = vrot.lane.b32.xlu0 %v714, 16
        %v1685 = vpop.permute.xlu0 %1684
        %1686 = vrot.lane.b32.xlu0 %v716, 16
        %v1687 = vpop.permute.xlu0 %1686
        %1688 = vrot.lane.b32.xlu0 %v734, 16
        %v1689 = vpop.permute.xlu0 %1688
        %1690 = vrot.lane.b32.xlu0 %v736, 16
        %v1691 = vpop.permute.xlu0 %1690
        %1692 = vrot.lane.b32.xlu0 %v738, 16
        %v1693 = vpop.permute.xlu0 %1692
        %1694 = vrot.lane.b32.xlu0 %v740, 16
        %v1695 = vpop.permute.xlu0 %1694
        %1696 = vrot.lane.b32.xlu0 %v742, 16
        %v1697 = vpop.permute.xlu0 %1696
        %1698 = vrot.lane.b32.xlu0 %v744, 16
        %v1699 = vpop.permute.xlu0 %1698
        %1700 = vrot.lane.b32.xlu0 %v746, 16
        %v1701 = vpop.permute.xlu0 %1700
        %1702 = vrot.lane.b32.xlu0 %v748, 16
        %v1703 = vpop.permute.xlu0 %1702
        %1704 = vrot.lane.b32.xlu0 %v766, 16
        %v1705 = vpop.permute.xlu0 %1704
        %1706 = vrot.lane.b32.xlu0 %v768, 16
        %v1707 = vpop.permute.xlu0 %1706
        %1708 = vrot.lane.b32.xlu0 %v770, 16
        %v1709 = vpop.permute.xlu0 %1708
        %1710 = vrot.lane.b32.xlu0 %v772, 16
        %v1711 = vpop.permute.xlu0 %1710
        %1712 = vrot.lane.b32.xlu0 %v774, 16
        %v1713 = vpop.permute.xlu0 %1712
        %1714 = vrot.lane.b32.xlu0 %v776, 16
        %v1715 = vpop.permute.xlu0 %1714
        %1716 = vrot.lane.b32.xlu0 %v778, 16
        %v1717 = vpop.permute.xlu0 %1716
        %1718 = vrot.lane.b32.xlu0 %v780, 16
        %v1719 = vpop.permute.xlu0 %1718
        %1720 = vrot.lane.b32.xlu0 %v798, 16
        %v1721 = vpop.permute.xlu0 %1720
        %1722 = vrot.lane.b32.xlu0 %v800, 16
        %v1723 = vpop.permute.xlu0 %1722
        %1724 = vrot.lane.b32.xlu0 %v802, 16
        %v1725 = vpop.permute.xlu0 %1724
        %1726 = vrot.lane.b32.xlu0 %v804, 16
        %v1727 = vpop.permute.xlu0 %1726
        %1728 = vrot.lane.b32.xlu0 %v806, 16
        %v1729 = vpop.permute.xlu0 %1728
        %1730 = vrot.lane.b32.xlu0 %v808, 16
        %v1731 = vpop.permute.xlu0 %1730
        %1732 = vrot.lane.b32.xlu0 %v810, 16
        %v1733 = vpop.permute.xlu0 %1732
        %1734 = vrot.lane.b32.xlu0 %v812, 16
        %v1735 = vpop.permute.xlu0 %1734
        %1736 = vrot.lane.b32.xlu0 %v830, 16
        %v1737 = vpop.permute.xlu0 %1736
        %1738 = vrot.lane.b32.xlu0 %v832, 16
        %v1739 = vpop.permute.xlu0 %1738
        %1740 = vrot.lane.b32.xlu0 %v834, 16
        %v1741 = vpop.permute.xlu0 %1740
        %1742 = vrot.lane.b32.xlu0 %v836, 16
        %v1743 = vpop.permute.xlu0 %1742
        %1744 = vrot.lane.b32.xlu0 %v838, 16
        %v1745 = vpop.permute.xlu0 %1744
        %1746 = vrot.lane.b32.xlu0 %v840, 16
        %v1747 = vpop.permute.xlu0 %1746
        %1748 = vrot.lane.b32.xlu0 %v842, 16
        %v1749 = vpop.permute.xlu0 %1748
        %1750 = vrot.lane.b32.xlu0 %v844, 16
        %v1751 = vpop.permute.xlu0 %1750
        %1752 = vrot.lane.b32.xlu0 %v862, 16
        %v1753 = vpop.permute.xlu0 %1752
        %1754 = vrot.lane.b32.xlu0 %v864, 16
        %v1755 = vpop.permute.xlu0 %1754
        %1756 = vrot.lane.b32.xlu0 %v866, 16
        %v1757 = vpop.permute.xlu0 %1756
        %1758 = vrot.lane.b32.xlu0 %v868, 16
        %v1759 = vpop.permute.xlu0 %1758
        %1760 = vrot.lane.b32.xlu0 %v870, 16
        %v1761 = vpop.permute.xlu0 %1760
        %1762 = vrot.lane.b32.xlu0 %v872, 16
        %v1763 = vpop.permute.xlu0 %1762
        %1764 = vrot.lane.b32.xlu0 %v874, 16
        %v1765 = vpop.permute.xlu0 %1764
        %1766 = vrot.lane.b32.xlu0 %v876, 16
        %v1767 = vpop.permute.xlu0 %1766
        %1840 = vrot.lane.b32.xlu0 %v639, 20
        %v1841 = vpop.permute.xlu0 %1840
        %1842 = vrot.lane.b32.xlu0 %v641, 20
        %v1843 = vpop.permute.xlu0 %1842
        %1844 = vrot.lane.b32.xlu0 %v643, 20
        %v1845 = vpop.permute.xlu0 %1844
        %1846 = vrot.lane.b32.xlu0 %v645, 20
        %v1847 = vpop.permute.xlu0 %1846
        %1848 = vrot.lane.b32.xlu0 %v647, 20
        %v1849 = vpop.permute.xlu0 %1848
        %1850 = vrot.lane.b32.xlu0 %v649, 20
        %v1851 = vpop.permute.xlu0 %1850
        %1852 = vrot.lane.b32.xlu0 %v651, 20
        %v1853 = vpop.permute.xlu0 %1852
        %1854 = vrot.lane.b32.xlu0 %v653, 20
        %v1855 = vpop.permute.xlu0 %1854
        %1856 = vrot.lane.b32.xlu0 %v671, 20
        %v1857 = vpop.permute.xlu0 %1856
        %1858 = vrot.lane.b32.xlu0 %v673, 20
        %v1859 = vpop.permute.xlu0 %1858
        %1860 = vrot.lane.b32.xlu0 %v675, 20
        %v1861 = vpop.permute.xlu0 %1860
        %1862 = vrot.lane.b32.xlu0 %v677, 20
        %v1863 = vpop.permute.xlu0 %1862
        %1864 = vrot.lane.b32.xlu0 %v679, 20
        %v1865 = vpop.permute.xlu0 %1864
        %1866 = vrot.lane.b32.xlu0 %v681, 20
        %v1867 = vpop.permute.xlu0 %1866
        %1868 = vrot.lane.b32.xlu0 %v683, 20
        %v1869 = vpop.permute.xlu0 %1868
        %1870 = vrot.lane.b32.xlu0 %v685, 20
        %v1871 = vpop.permute.xlu0 %1870
        %1872 = vrot.lane.b32.xlu0 %v703, 20
        %v1873 = vpop.permute.xlu0 %1872
        %1874 = vrot.lane.b32.xlu0 %v705, 20
        %v1875 = vpop.permute.xlu0 %1874
        %1876 = vrot.lane.b32.xlu0 %v707, 20
        %v1877 = vpop.permute.xlu0 %1876
        %1878 = vrot.lane.b32.xlu0 %v709, 20
        %v1879 = vpop.permute.xlu0 %1878
        %1880 = vrot.lane.b32.xlu0 %v711, 20
        %v1881 = vpop.permute.xlu0 %1880
        %1882 = vrot.lane.b32.xlu0 %v713, 20
        %v1883 = vpop.permute.xlu0 %1882
        %1884 = vrot.lane.b32.xlu0 %v715, 20
        %v1885 = vpop.permute.xlu0 %1884
        %1886 = vrot.lane.b32.xlu0 %v717, 20
        %v1887 = vpop.permute.xlu0 %1886
        %1888 = vrot.lane.b32.xlu0 %v735, 20
        %v1889 = vpop.permute.xlu0 %1888
        %1890 = vrot.lane.b32.xlu0 %v737, 20
        %v1891 = vpop.permute.xlu0 %1890
        %1892 = vrot.lane.b32.xlu0 %v739, 20
        %v1893 = vpop.permute.xlu0 %1892
        %1894 = vrot.lane.b32.xlu0 %v741, 20
        %v1895 = vpop.permute.xlu0 %1894
        %1896 = vrot.lane.b32.xlu0 %v743, 20
        %v1897 = vpop.permute.xlu0 %1896
        %1898 = vrot.lane.b32.xlu0 %v745, 20
        %v1899 = vpop.permute.xlu0 %1898
        %1900 = vrot.lane.b32.xlu0 %v747, 20
        %v1901 = vpop.permute.xlu0 %1900
        %1902 = vrot.lane.b32.xlu0 %v749, 20
        %v1903 = vpop.permute.xlu0 %1902
        %1904 = vrot.lane.b32.xlu0 %v767, 20
        %v1905 = vpop.permute.xlu0 %1904
        %1906 = vrot.lane.b32.xlu0 %v769, 20
        %v1907 = vpop.permute.xlu0 %1906
        %1908 = vrot.lane.b32.xlu0 %v771, 20
        %v1909 = vpop.permute.xlu0 %1908
        %1910 = vrot.lane.b32.xlu0 %v773, 20
        %v1911 = vpop.permute.xlu0 %1910
        %1912 = vrot.lane.b32.xlu0 %v775, 20
        %v1913 = vpop.permute.xlu0 %1912
        %1914 = vrot.lane.b32.xlu0 %v777, 20
        %v1915 = vpop.permute.xlu0 %1914
        %1916 = vrot.lane.b32.xlu0 %v779, 20
        %v1917 = vpop.permute.xlu0 %1916
        %1918 = vrot.lane.b32.xlu0 %v781, 20
        %v1919 = vpop.permute.xlu0 %1918
        %1920 = vrot.lane.b32.xlu0 %v799, 20
        %v1921 = vpop.permute.xlu0 %1920
        %1922 = vrot.lane.b32.xlu0 %v801, 20
        %v1923 = vpop.permute.xlu0 %1922
        %1924 = vrot.lane.b32.xlu0 %v803, 20
        %v1925 = vpop.permute.xlu0 %1924
        %1926 = vrot.lane.b32.xlu0 %v805, 20
        %v1927 = vpop.permute.xlu0 %1926
        %1928 = vrot.lane.b32.xlu0 %v807, 20
        %v1929 = vpop.permute.xlu0 %1928
        %1930 = vrot.lane.b32.xlu0 %v809, 20
        %v1931 = vpop.permute.xlu0 %1930
        %1932 = vrot.lane.b32.xlu0 %v811, 20
        %v1933 = vpop.permute.xlu0 %1932
        %1934 = vrot.lane.b32.xlu0 %v813, 20
        %v1935 = vpop.permute.xlu0 %1934
        %1936 = vrot.lane.b32.xlu0 %v831, 20
        %v1937 = vpop.permute.xlu0 %1936
        %1938 = vrot.lane.b32.xlu0 %v833, 20
        %v1939 = vpop.permute.xlu0 %1938
        %1940 = vrot.lane.b32.xlu0 %v835, 20
        %v1941 = vpop.permute.xlu0 %1940
        %1942 = vrot.lane.b32.xlu0 %v837, 20
        %v1943 = vpop.permute.xlu0 %1942
        %1944 = vrot.lane.b32.xlu0 %v839, 20
        %v1945 = vpop.permute.xlu0 %1944
        %1946 = vrot.lane.b32.xlu0 %v841, 20
        %v1947 = vpop.permute.xlu0 %1946
        %1948 = vrot.lane.b32.xlu0 %v843, 20
        %v1949 = vpop.permute.xlu0 %1948
        %1950 = vrot.lane.b32.xlu0 %v845, 20
        %v1951 = vpop.permute.xlu0 %1950
        %1952 = vrot.lane.b32.xlu0 %v863, 20
        %v1953 = vpop.permute.xlu0 %1952
        %1954 = vrot.lane.b32.xlu0 %v865, 20
        %v1955 = vpop.permute.xlu0 %1954
        %1956 = vrot.lane.b32.xlu0 %v867, 20
        %v1957 = vpop.permute.xlu0 %1956
        %1958 = vrot.lane.b32.xlu0 %v869, 20
        %v1959 = vpop.permute.xlu0 %1958
        %1960 = vrot.lane.b32.xlu0 %v871, 20
        %v1961 = vpop.permute.xlu0 %1960
        %1962 = vrot.lane.b32.xlu0 %v873, 20
        %v1963 = vpop.permute.xlu0 %1962
        %1964 = vrot.lane.b32.xlu0 %v875, 20
        %v1965 = vpop.permute.xlu0 %1964
        %1966 = vrot.lane.b32.xlu0 %v877, 20
        %v1967 = vpop.permute.xlu0 %1966
        %2039 = vrot.lane.b32.xlu0 0.0, 24
        %v2040 = vpop.permute.xlu0 %2039
        %2041 = vrot.lane.b32.xlu0 %v655, 24
        %v2042 = vpop.permute.xlu0 %2041
        %2043 = vrot.lane.b32.xlu0 %v657, 24
        %v2044 = vpop.permute.xlu0 %2043
        %2045 = vrot.lane.b32.xlu0 %v659, 24
        %v2046 = vpop.permute.xlu0 %2045
        %2047 = vrot.lane.b32.xlu0 %v661, 24
        %v2048 = vpop.permute.xlu0 %2047
        %2049 = vrot.lane.b32.xlu0 %v663, 24
        %v2050 = vpop.permute.xlu0 %2049
        %2051 = vrot.lane.b32.xlu0 %v665, 24
        %v2052 = vpop.permute.xlu0 %2051
        %2053 = vrot.lane.b32.xlu0 %v667, 24
        %v2054 = vpop.permute.xlu0 %2053
        %2055 = vrot.lane.b32.xlu0 %v687, 24
        %v2056 = vpop.permute.xlu0 %2055
        %2057 = vrot.lane.b32.xlu0 %v689, 24
        %v2058 = vpop.permute.xlu0 %2057
        %2059 = vrot.lane.b32.xlu0 %v691, 24
        %v2060 = vpop.permute.xlu0 %2059
        %2061 = vrot.lane.b32.xlu0 %v693, 24
        %v2062 = vpop.permute.xlu0 %2061
        %2063 = vrot.lane.b32.xlu0 %v695, 24
        %v2064 = vpop.permute.xlu0 %2063
        %2065 = vrot.lane.b32.xlu0 %v697, 24
        %v2066 = vpop.permute.xlu0 %2065
        %2067 = vrot.lane.b32.xlu0 %v699, 24
        %v2068 = vpop.permute.xlu0 %2067
        %2069 = vrot.lane.b32.xlu0 %v719, 24
        %v2070 = vpop.permute.xlu0 %2069
        %2071 = vrot.lane.b32.xlu0 %v721, 24
        %v2072 = vpop.permute.xlu0 %2071
        %2073 = vrot.lane.b32.xlu0 %v723, 24
        %v2074 = vpop.permute.xlu0 %2073
        %2075 = vrot.lane.b32.xlu0 %v725, 24
        %v2076 = vpop.permute.xlu0 %2075
        %2077 = vrot.lane.b32.xlu0 %v727, 24
        %v2078 = vpop.permute.xlu0 %2077
        %2079 = vrot.lane.b32.xlu0 %v729, 24
        %v2080 = vpop.permute.xlu0 %2079
        %2081 = vrot.lane.b32.xlu0 %v731, 24
        %v2082 = vpop.permute.xlu0 %2081
        %2083 = vrot.lane.b32.xlu0 %v751, 24
        %v2084 = vpop.permute.xlu0 %2083
        %2085 = vrot.lane.b32.xlu0 %v753, 24
        %v2086 = vpop.permute.xlu0 %2085
        %2087 = vrot.lane.b32.xlu0 %v755, 24
        %v2088 = vpop.permute.xlu0 %2087
        %2089 = vrot.lane.b32.xlu0 %v757, 24
        %v2090 = vpop.permute.xlu0 %2089
        %2091 = vrot.lane.b32.xlu0 %v759, 24
        %v2092 = vpop.permute.xlu0 %2091
        %2093 = vrot.lane.b32.xlu0 %v761, 24
        %v2094 = vpop.permute.xlu0 %2093
        %2095 = vrot.lane.b32.xlu0 %v763, 24
        %v2096 = vpop.permute.xlu0 %2095
        %2097 = vrot.lane.b32.xlu0 %v783, 24
        %v2098 = vpop.permute.xlu0 %2097
        %2099 = vrot.lane.b32.xlu0 %v785, 24
        %v2100 = vpop.permute.xlu0 %2099
        %2101 = vrot.lane.b32.xlu0 %v787, 24
        %v2102 = vpop.permute.xlu0 %2101
        %2103 = vrot.lane.b32.xlu0 %v789, 24
        %v2104 = vpop.permute.xlu0 %2103
        %2105 = vrot.lane.b32.xlu0 %v791, 24
        %v2106 = vpop.permute.xlu0 %2105
        %2107 = vrot.lane.b32.xlu0 %v793, 24
        %v2108 = vpop.permute.xlu0 %2107
        %2109 = vrot.lane.b32.xlu0 %v795, 24
        %v2110 = vpop.permute.xlu0 %2109
        %2111 = vrot.lane.b32.xlu0 %v815, 24
        %v2112 = vpop.permute.xlu0 %2111
        %2113 = vrot.lane.b32.xlu0 %v817, 24
        %v2114 = vpop.permute.xlu0 %2113
        %2115 = vrot.lane.b32.xlu0 %v819, 24
        %v2116 = vpop.permute.xlu0 %2115
        %2117 = vrot.lane.b32.xlu0 %v821, 24
        %v2118 = vpop.permute.xlu0 %2117
        %2119 = vrot.lane.b32.xlu0 %v823, 24
        %v2120 = vpop.permute.xlu0 %2119
        %2121 = vrot.lane.b32.xlu0 %v825, 24
        %v2122 = vpop.permute.xlu0 %2121
        %2123 = vrot.lane.b32.xlu0 %v827, 24
        %v2124 = vpop.permute.xlu0 %2123
        %2125 = vrot.lane.b32.xlu0 %v847, 24
        %v2126 = vpop.permute.xlu0 %2125
        %2127 = vrot.lane.b32.xlu0 %v849, 24
        %v2128 = vpop.permute.xlu0 %2127
        %2129 = vrot.lane.b32.xlu0 %v851, 24
        %v2130 = vpop.permute.xlu0 %2129
        %2131 = vrot.lane.b32.xlu0 %v853, 24
        %v2132 = vpop.permute.xlu0 %2131
        %2133 = vrot.lane.b32.xlu0 %v855, 24
        %v2134 = vpop.permute.xlu0 %2133
        %2135 = vrot.lane.b32.xlu0 %v857, 24
        %v2136 = vpop.permute.xlu0 %2135
        %2137 = vrot.lane.b32.xlu0 %v859, 24
        %v2138 = vpop.permute.xlu0 %2137
        %2139 = vrot.lane.b32.xlu0 %v879, 24
        %v2140 = vpop.permute.xlu0 %2139
        %2141 = vrot.lane.b32.xlu0 %v881, 24
        %v2142 = vpop.permute.xlu0 %2141
        %2143 = vrot.lane.b32.xlu0 %v883, 24
        %v2144 = vpop.permute.xlu0 %2143
        %2145 = vrot.lane.b32.xlu0 %v885, 24
        %v2146 = vpop.permute.xlu0 %2145
        %2147 = vrot.lane.b32.xlu0 %v887, 24
        %v2148 = vpop.permute.xlu0 %2147
        %2149 = vrot.lane.b32.xlu0 %v889, 24
        %v2150 = vpop.permute.xlu0 %2149
        %2151 = vrot.lane.b32.xlu0 %v891, 24
        %v2152 = vpop.permute.xlu0 %2151
        %2218 = vrot.lane.b32.xlu0 %v654, 28
        %v2219 = vpop.permute.xlu0 %2218
        %2220 = vrot.lane.b32.xlu0 %v656, 28
        %v2221 = vpop.permute.xlu0 %2220
        %2222 = vrot.lane.b32.xlu0 %v658, 28
        %v2223 = vpop.permute.xlu0 %2222
        %2224 = vrot.lane.b32.xlu0 %v660, 28
        %v2225 = vpop.permute.xlu0 %2224
        %2226 = vrot.lane.b32.xlu0 %v662, 28
        %v2227 = vpop.permute.xlu0 %2226
        %2228 = vrot.lane.b32.xlu0 %v664, 28
        %v2229 = vpop.permute.xlu0 %2228
        %2230 = vrot.lane.b32.xlu0 %v666, 28
        %v2231 = vpop.permute.xlu0 %2230
        %2232 = vrot.lane.b32.xlu0 %v668, 28
        %v2233 = vpop.permute.xlu0 %2232
        %2234 = vrot.lane.b32.xlu0 %v686, 28
        %v2235 = vpop.permute.xlu0 %2234
        %2236 = vrot.lane.b32.xlu0 %v688, 28
        %v2237 = vpop.permute.xlu0 %2236
        %2238 = vrot.lane.b32.xlu0 %v690, 28
        %v2239 = vpop.permute.xlu0 %2238
        %2240 = vrot.lane.b32.xlu0 %v692, 28
        %v2241 = vpop.permute.xlu0 %2240
        %2242 = vrot.lane.b32.xlu0 %v694, 28
        %v2243 = vpop.permute.xlu0 %2242
        %2244 = vrot.lane.b32.xlu0 %v696, 28
        %v2245 = vpop.permute.xlu0 %2244
        %2246 = vrot.lane.b32.xlu0 %v698, 28
        %v2247 = vpop.permute.xlu0 %2246
        %2248 = vrot.lane.b32.xlu0 %v700, 28
        %v2249 = vpop.permute.xlu0 %2248
        %2250 = vrot.lane.b32.xlu0 %v718, 28
        %v2251 = vpop.permute.xlu0 %2250
        %2252 = vrot.lane.b32.xlu0 %v720, 28
        %v2253 = vpop.permute.xlu0 %2252
        %2254 = vrot.lane.b32.xlu0 %v722, 28
        %v2255 = vpop.permute.xlu0 %2254
        %2256 = vrot.lane.b32.xlu0 %v724, 28
        %v2257 = vpop.permute.xlu0 %2256
        %2258 = vrot.lane.b32.xlu0 %v726, 28
        %v2259 = vpop.permute.xlu0 %2258
        %2260 = vrot.lane.b32.xlu0 %v728, 28
        %v2261 = vpop.permute.xlu0 %2260
        %2262 = vrot.lane.b32.xlu0 %v730, 28
        %v2263 = vpop.permute.xlu0 %2262
        %2264 = vrot.lane.b32.xlu0 %v732, 28
        %v2265 = vpop.permute.xlu0 %2264
        %2266 = vrot.lane.b32.xlu0 %v750, 28
        %v2267 = vpop.permute.xlu0 %2266
        %2268 = vrot.lane.b32.xlu0 %v752, 28
        %v2269 = vpop.permute.xlu0 %2268
        %2270 = vrot.lane.b32.xlu0 %v754, 28
        %v2271 = vpop.permute.xlu0 %2270
        %2272 = vrot.lane.b32.xlu0 %v756, 28
        %v2273 = vpop.permute.xlu0 %2272
        %2274 = vrot.lane.b32.xlu0 %v758, 28
        %v2275 = vpop.permute.xlu0 %2274
        %2276 = vrot.lane.b32.xlu0 %v760, 28
        %v2277 = vpop.permute.xlu0 %2276
        %2278 = vrot.lane.b32.xlu0 %v762, 28
        %v2279 = vpop.permute.xlu0 %2278
        %2280 = vrot.lane.b32.xlu0 %v764, 28
        %v2281 = vpop.permute.xlu0 %2280
        %2282 = vrot.lane.b32.xlu0 %v782, 28
        %v2283 = vpop.permute.xlu0 %2282
        %2284 = vrot.lane.b32.xlu0 %v784, 28
        %v2285 = vpop.permute.xlu0 %2284
        %2286 = vrot.lane.b32.xlu0 %v786, 28
        %v2287 = vpop.permute.xlu0 %2286
        %2288 = vrot.lane.b32.xlu0 %v788, 28
        %v2289 = vpop.permute.xlu0 %2288
        %2290 = vrot.lane.b32.xlu0 %v790, 28
        %v2291 = vpop.permute.xlu0 %2290
        %2292 = vrot.lane.b32.xlu0 %v792, 28
        %v2293 = vpop.permute.xlu0 %2292
        %2294 = vrot.lane.b32.xlu0 %v794, 28
        %v2295 = vpop.permute.xlu0 %2294
        %2296 = vrot.lane.b32.xlu0 %v796, 28
        %v2297 = vpop.permute.xlu0 %2296
        %2298 = vrot.lane.b32.xlu0 %v814, 28
        %v2299 = vpop.permute.xlu0 %2298
        %2300 = vrot.lane.b32.xlu0 %v816, 28
        %v2301 = vpop.permute.xlu0 %2300
        %2302 = vrot.lane.b32.xlu0 %v818, 28
        %v2303 = vpop.permute.xlu0 %2302
        %2304 = vrot.lane.b32.xlu0 %v820, 28
        %v2305 = vpop.permute.xlu0 %2304
        %2306 = vrot.lane.b32.xlu0 %v822, 28
        %v2307 = vpop.permute.xlu0 %2306
        %2308 = vrot.lane.b32.xlu0 %v824, 28
        %v2309 = vpop.permute.xlu0 %2308
        %2310 = vrot.lane.b32.xlu0 %v826, 28
        %v2311 = vpop.permute.xlu0 %2310
        %2312 = vrot.lane.b32.xlu0 %v828, 28
        %v2313 = vpop.permute.xlu0 %2312
        %2314 = vrot.lane.b32.xlu0 %v846, 28
        %v2315 = vpop.permute.xlu0 %2314
        %2316 = vrot.lane.b32.xlu0 %v848, 28
        %v2317 = vpop.permute.xlu0 %2316
        %2318 = vrot.lane.b32.xlu0 %v850, 28
        %v2319 = vpop.permute.xlu0 %2318
        %2320 = vrot.lane.b32.xlu0 %v852, 28
        %v2321 = vpop.permute.xlu0 %2320
        %2322 = vrot.lane.b32.xlu0 %v854, 28
        %v2323 = vpop.permute.xlu0 %2322
        %2324 = vrot.lane.b32.xlu0 %v856, 28
        %v2325 = vpop.permute.xlu0 %2324
        %2326 = vrot.lane.b32.xlu0 %v858, 28
        %v2327 = vpop.permute.xlu0 %2326
        %2328 = vrot.lane.b32.xlu0 %v860, 28
        %v2329 = vpop.permute.xlu0 %2328
        %2330 = vrot.lane.b32.xlu0 %v878, 28
        %v2331 = vpop.permute.xlu0 %2330
        %2332 = vrot.lane.b32.xlu0 %v880, 28
        %v2333 = vpop.permute.xlu0 %2332
        %2334 = vrot.lane.b32.xlu0 %v882, 28
        %v2335 = vpop.permute.xlu0 %2334
        %2336 = vrot.lane.b32.xlu0 %v884, 28
        %v2337 = vpop.permute.xlu0 %2336
        %2338 = vrot.lane.b32.xlu0 %v886, 28
        %v2339 = vpop.permute.xlu0 %2338
        %2340 = vrot.lane.b32.xlu0 %v888, 28
        %v2341 = vpop.permute.xlu0 %2340
        %2342 = vrot.lane.b32.xlu0 %v890, 28
        %v2343 = vpop.permute.xlu0 %2342
        %2344 = vrot.lane.b32.xlu0 %v892, 28
        %v2345 = vpop.permute.xlu0 %2344
        %2411 = vrot.lane.b32.xlu0 %v655, 32
        %v2412 = vpop.permute.xlu0 %2411
        %2413 = vrot.lane.b32.xlu0 %v657, 32
        %v2414 = vpop.permute.xlu0 %2413
        %2415 = vrot.lane.b32.xlu0 %v659, 32
        %v2416 = vpop.permute.xlu0 %2415
        %2417 = vrot.lane.b32.xlu0 %v661, 32
        %v2418 = vpop.permute.xlu0 %2417
        %2419 = vrot.lane.b32.xlu0 %v663, 32
        %v2420 = vpop.permute.xlu0 %2419
        %2421 = vrot.lane.b32.xlu0 %v665, 32
        %v2422 = vpop.permute.xlu0 %2421
        %2423 = vrot.lane.b32.xlu0 %v667, 32
        %v2424 = vpop.permute.xlu0 %2423
        %2425 = vrot.lane.b32.xlu0 %v669, 32
        %v2426 = vpop.permute.xlu0 %2425
        %2427 = vrot.lane.b32.xlu0 %v687, 32
        %v2428 = vpop.permute.xlu0 %2427
        %2429 = vrot.lane.b32.xlu0 %v689, 32
        %v2430 = vpop.permute.xlu0 %2429
        %2431 = vrot.lane.b32.xlu0 %v691, 32
        %v2432 = vpop.permute.xlu0 %2431
        %2433 = vrot.lane.b32.xlu0 %v693, 32
        %v2434 = vpop.permute.xlu0 %2433
        %2435 = vrot.lane.b32.xlu0 %v695, 32
        %v2436 = vpop.permute.xlu0 %2435
        %2437 = vrot.lane.b32.xlu0 %v697, 32
        %v2438 = vpop.permute.xlu0 %2437
        %2439 = vrot.lane.b32.xlu0 %v699, 32
        %v2440 = vpop.permute.xlu0 %2439
        %2441 = vrot.lane.b32.xlu0 %v701, 32
        %v2442 = vpop.permute.xlu0 %2441
        %2443 = vrot.lane.b32.xlu0 %v719, 32
        %v2444 = vpop.permute.xlu0 %2443
        %2445 = vrot.lane.b32.xlu0 %v721, 32
        %v2446 = vpop.permute.xlu0 %2445
        %2447 = vrot.lane.b32.xlu0 %v723, 32
        %v2448 = vpop.permute.xlu0 %2447
        %2449 = vrot.lane.b32.xlu0 %v725, 32
        %v2450 = vpop.permute.xlu0 %2449
        %2451 = vrot.lane.b32.xlu0 %v727, 32
        %v2452 = vpop.permute.xlu0 %2451
        %2453 = vrot.lane.b32.xlu0 %v729, 32
        %v2454 = vpop.permute.xlu0 %2453
        %2455 = vrot.lane.b32.xlu0 %v731, 32
        %v2456 = vpop.permute.xlu0 %2455
        %2457 = vrot.lane.b32.xlu0 %v733, 32
        %v2458 = vpop.permute.xlu0 %2457
        %2459 = vrot.lane.b32.xlu0 %v751, 32
        %v2460 = vpop.permute.xlu0 %2459
        %2461 = vrot.lane.b32.xlu0 %v753, 32
        %v2462 = vpop.permute.xlu0 %2461
        %2463 = vrot.lane.b32.xlu0 %v755, 32
        %v2464 = vpop.permute.xlu0 %2463
        %2465 = vrot.lane.b32.xlu0 %v757, 32
        %v2466 = vpop.permute.xlu0 %2465
        %2467 = vrot.lane.b32.xlu0 %v759, 32
        %v2468 = vpop.permute.xlu0 %2467
        %2469 = vrot.lane.b32.xlu0 %v761, 32
        %v2470 = vpop.permute.xlu0 %2469
        %2471 = vrot.lane.b32.xlu0 %v763, 32
        %v2472 = vpop.permute.xlu0 %2471
        %2473 = vrot.lane.b32.xlu0 %v765, 32
        %v2474 = vpop.permute.xlu0 %2473
        %2475 = vrot.lane.b32.xlu0 %v783, 32
        %v2476 = vpop.permute.xlu0 %2475
        %2477 = vrot.lane.b32.xlu0 %v785, 32
        %v2478 = vpop.permute.xlu0 %2477
        %2479 = vrot.lane.b32.xlu0 %v787, 32
        %v2480 = vpop.permute.xlu0 %2479
        %2481 = vrot.lane.b32.xlu0 %v789, 32
        %v2482 = vpop.permute.xlu0 %2481
        %2483 = vrot.lane.b32.xlu0 %v791, 32
        %v2484 = vpop.permute.xlu0 %2483
        %2485 = vrot.lane.b32.xlu0 %v793, 32
        %v2486 = vpop.permute.xlu0 %2485
        %2487 = vrot.lane.b32.xlu0 %v795, 32
        %v2488 = vpop.permute.xlu0 %2487
        %2489 = vrot.lane.b32.xlu0 %v797, 32
        %v2490 = vpop.permute.xlu0 %2489
        %2491 = vrot.lane.b32.xlu0 %v815, 32
        %v2492 = vpop.permute.xlu0 %2491
        %2493 = vrot.lane.b32.xlu0 %v817, 32
        %v2494 = vpop.permute.xlu0 %2493
        %2495 = vrot.lane.b32.xlu0 %v819, 32
        %v2496 = vpop.permute.xlu0 %2495
        %2497 = vrot.lane.b32.xlu0 %v821, 32
        %v2498 = vpop.permute.xlu0 %2497
        %2499 = vrot.lane.b32.xlu0 %v823, 32
        %v2500 = vpop.permute.xlu0 %2499
        %2501 = vrot.lane.b32.xlu0 %v825, 32
        %v2502 = vpop.permute.xlu0 %2501
        %2503 = vrot.lane.b32.xlu0 %v827, 32
        %v2504 = vpop.permute.xlu0 %2503
        %2505 = vrot.lane.b32.xlu0 %v829, 32
        %v2506 = vpop.permute.xlu0 %2505
        %2507 = vrot.lane.b32.xlu0 %v847, 32
        %v2508 = vpop.permute.xlu0 %2507
        %2509 = vrot.lane.b32.xlu0 %v849, 32
        %v2510 = vpop.permute.xlu0 %2509
        %2511 = vrot.lane.b32.xlu0 %v851, 32
        %v2512 = vpop.permute.xlu0 %2511
        %2513 = vrot.lane.b32.xlu0 %v853, 32
        %v2514 = vpop.permute.xlu0 %2513
        %2515 = vrot.lane.b32.xlu0 %v855, 32
        %v2516 = vpop.permute.xlu0 %2515
        %2517 = vrot.lane.b32.xlu0 %v857, 32
        %v2518 = vpop.permute.xlu0 %2517
        %2519 = vrot.lane.b32.xlu0 %v859, 32
        %v2520 = vpop.permute.xlu0 %2519
        %2521 = vrot.lane.b32.xlu0 %v861, 32
        %v2522 = vpop.permute.xlu0 %2521
        %2523 = vrot.lane.b32.xlu0 %v879, 32
        %v2524 = vpop.permute.xlu0 %2523
        %2525 = vrot.lane.b32.xlu0 %v881, 32
        %v2526 = vpop.permute.xlu0 %2525
        %2527 = vrot.lane.b32.xlu0 %v883, 32
        %v2528 = vpop.permute.xlu0 %2527
        %2529 = vrot.lane.b32.xlu0 %v885, 32
        %v2530 = vpop.permute.xlu0 %2529
        %2531 = vrot.lane.b32.xlu0 %v887, 32
        %v2532 = vpop.permute.xlu0 %2531
        %2533 = vrot.lane.b32.xlu0 %v889, 32
        %v2534 = vpop.permute.xlu0 %2533
        %2535 = vrot.lane.b32.xlu0 %v891, 32
        %v2536 = vpop.permute.xlu0 %2535
        %2537 = vrot.lane.b32.xlu0 %v893, 32
        %v2538 = vpop.permute.xlu0 %2537
        %vm2603 = vcmask 31744
        %v2604 = vsel %vm2603, 0.0, %v952
        %v2605 = vsel %vm2603, 0.0, %v954
        %v2606 = vsel %vm2603, %v655, %v956
        %v2607 = vsel %vm2603, %v657, %v958
        %v2608 = vsel %vm2603, %v659, %v960
        %v2609 = vsel %vm2603, %v661, %v962
        %v2610 = vsel %vm2603, %v663, %v964
        %v2611 = vsel %vm2603, %v665, %v966
        %v2612 = vsel %vm2603, %v667, %v968
        %v2613 = vsel %vm2603, 0.0, %v970
        %v2614 = vsel %vm2603, %v687, %v972
        %v2615 = vsel %vm2603, %v689, %v974
        %v2616 = vsel %vm2603, %v691, %v976
        %v2617 = vsel %vm2603, %v693, %v978
        %v2618 = vsel %vm2603, %v695, %v980
        %v2619 = vsel %vm2603, %v697, %v982
        %v2620 = vsel %vm2603, %v699, %v984
        %v2621 = vsel %vm2603, 0.0, %v986
        %v2622 = vsel %vm2603, %v719, %v988
        %v2623 = vsel %vm2603, %v721, %v990
        %v2624 = vsel %vm2603, %v723, %v992
        %v2625 = vsel %vm2603, %v725, %v994
        %v2626 = vsel %vm2603, %v727, %v996
        %v2627 = vsel %vm2603, %v729, %v998
        %v2628 = vsel %vm2603, %v731, %v1000
        %v2629 = vsel %vm2603, 0.0, %v1002
        %v2630 = vsel %vm2603, %v751, %v1004
        %v2631 = vsel %vm2603, %v753, %v1006
        %v2632 = vsel %vm2603, %v755, %v1008
        %v2633 = vsel %vm2603, %v757, %v1010
        %v2634 = vsel %vm2603, %v759, %v1012
        %v2635 = vsel %vm2603, %v761, %v1014
        %v2636 = vsel %vm2603, %v763, %v1016
        %v2637 = vsel %vm2603, 0.0, %v1018
        %v2638 = vsel %vm2603, %v783, %v1020
        %v2639 = vsel %vm2603, %v785, %v1022
        %v2640 = vsel %vm2603, %v787, %v1024
        %v2641 = vsel %vm2603, %v789, %v1026
        %v2642 = vsel %vm2603, %v791, %v1028
        %v2643 = vsel %vm2603, %v793, %v1030
        %v2644 = vsel %vm2603, %v795, %v1032
        %v2645 = vsel %vm2603, 0.0, %v1034
        %v2646 = vsel %vm2603, %v815, %v1036
        %v2647 = vsel %vm2603, %v817, %v1038
        %v2648 = vsel %vm2603, %v819, %v1040
        %v2649 = vsel %vm2603, %v821, %v1042
        %v2650 = vsel %vm2603, %v823, %v1044
        %v2651 = vsel %vm2603, %v825, %v1046
        %v2652 = vsel %vm2603, %v827, %v1048
        %v2653 = vsel %vm2603, 0.0, %v1050
        %v2654 = vsel %vm2603, %v847, %v1052
        %v2655 = vsel %vm2603, %v849, %v1054
        %v2656 = vsel %vm2603, %v851, %v1056
        %v2657 = vsel %vm2603, %v853, %v1058
        %v2658 = vsel %vm2603, %v855, %v1060
        %v2659 = vsel %vm2603, %v857, %v1062
        %v2660 = vsel %vm2603, %v859, %v1064
        %vm2661 = vcmask 64512
        %v2662 = vsel %vm2661, %v2604, %v1179
        %v2663 = vsel %vm2661, %v2605, %v1181
        %v2664 = vsel %vm2661, %v2606, %v1183
        %v2665 = vsel %vm2661, %v2607, %v1185
        %v2666 = vsel %vm2661, %v2608, %v1187
        %v2667 = vsel %vm2661, %v2609, %v1189
        %v2668 = vsel %vm2661, %v2610, %v1191
        %v2669 = vsel %vm2661, %v2611, %v1193
        %v2670 = vsel %vm2661, %v2612, %v1195
        %v2671 = vsel %vm2661, %v2613, %v1197
        %v2672 = vsel %vm2661, %v2614, %v1199
        %v2673 = vsel %vm2661, %v2615, %v1201
        %v2674 = vsel %vm2661, %v2616, %v1203
        %v2675 = vsel %vm2661, %v2617, %v1205
        %v2676 = vsel %vm2661, %v2618, %v1207
        %v2677 = vsel %vm2661, %v2619, %v1209
        %v2678 = vsel %vm2661, %v2620, %v1211
        %v2679 = vsel %vm2661, %v2621, %v1213
        %v2680 = vsel %vm2661, %v2622, %v1215
        %v2681 = vsel %vm2661, %v2623, %v1217
        %v2682 = vsel %vm2661, %v2624, %v1219
        %v2683 = vsel %vm2661, %v2625, %v1221
        %v2684 = vsel %vm2661, %v2626, %v1223
        %v2685 = vsel %vm2661, %v2627, %v1225
        %v2686 = vsel %vm2661, %v2628, %v1227
        %v2687 = vsel %vm2661, %v2629, %v1229
        %v2688 = vsel %vm2661, %v2630, %v1231
        %v2689 = vsel %vm2661, %v2631, %v1233
        %v2690 = vsel %vm2661, %v2632, %v1235
        %v2691 = vsel %vm2661, %v2633, %v1237
        %v2692 = vsel %vm2661, %v2634, %v1239
        %v2693 = vsel %vm2661, %v2635, %v1241
        %v2694 = vsel %vm2661, %v2636, %v1243
        %v2695 = vsel %vm2661, %v2637, %v1245
        %v2696 = vsel %vm2661, %v2638, %v1247
        %v2697 = vsel %vm2661, %v2639, %v1249
        %v2698 = vsel %vm2661, %v2640, %v1251
        %v2699 = vsel %vm2661, %v2641, %v1253
        %v2700 = vsel %vm2661, %v2642, %v1255
        %v2701 = vsel %vm2661, %v2643, %v1257
        %v2702 = vsel %vm2661, %v2644, %v1259
        %v2703 = vsel %vm2661, %v2645, %v1261
        %v2704 = vsel %vm2661, %v2646, %v1263
        %v2705 = vsel %vm2661, %v2647, %v1265
        %v2706 = vsel %vm2661, %v2648, %v1267
        %v2707 = vsel %vm2661, %v2649, %v1269
        %v2708 = vsel %vm2661, %v2650, %v1271
        %v2709 = vsel %vm2661, %v2651, %v1273
        %v2710 = vsel %vm2661, %v2652, %v1275
        %v2711 = vsel %vm2661, %v2653, %v1277
        %v2712 = vsel %vm2661, %v2654, %v1279
        %v2713 = vsel %vm2661, %v2655, %v1281
        %v2714 = vsel %vm2661, %v2656, %v1283
        %v2715 = vsel %vm2661, %v2657, %v1285
        %v2716 = vsel %vm2661, %v2658, %v1287
        %v2717 = vsel %vm2661, %v2659, %v1289
        %v2718 = vsel %vm2661, %v2660, %v1291
        %vm2719 = vcmask 97280
        %v2720 = vsel %vm2719, %v2662, %v1406
        %v2721 = vsel %vm2719, %v2662, %v1408
        %v2722 = vsel %vm2719, %v2662, %v1410
        %v2723 = vsel %vm2719, %v2662, %v1412
        %v2724 = vsel %vm2719, %v2662, %v1414
        %v2725 = vsel %vm2719, %v2662, %v1416
        %v2726 = vsel %vm2719, %v2662, %v1418
        %v2727 = vsel %vm2719, %v2662, %v1420
        %v2728 = vsel %vm2719, %v2663, %v1406
        %v2729 = vsel %vm2719, %v2664, %v1422
        %v2730 = vsel %vm2719, %v2665, %v1424
        %v2731 = vsel %vm2719, %v2666, %v1426
        %v2732 = vsel %vm2719, %v2667, %v1428
        %v2733 = vsel %vm2719, %v2668, %v1430
        %v2734 = vsel %vm2719, %v2669, %v1432
        %v2735 = vsel %vm2719, %v2670, %v1434
        %v2736 = vsel %vm2719, %v2671, %v1406
        %v2737 = vsel %vm2719, %v2672, %v1436
        %v2738 = vsel %vm2719, %v2673, %v1438
        %v2739 = vsel %vm2719, %v2674, %v1440
        %v2740 = vsel %vm2719, %v2675, %v1442
        %v2741 = vsel %vm2719, %v2676, %v1444
        %v2742 = vsel %vm2719, %v2677, %v1446
        %v2743 = vsel %vm2719, %v2678, %v1448
        %v2744 = vsel %vm2719, %v2679, %v1406
        %v2745 = vsel %vm2719, %v2680, %v1450
        %v2746 = vsel %vm2719, %v2681, %v1452
        %v2747 = vsel %vm2719, %v2682, %v1454
        %v2748 = vsel %vm2719, %v2683, %v1456
        %v2749 = vsel %vm2719, %v2684, %v1458
        %v2750 = vsel %vm2719, %v2685, %v1460
        %v2751 = vsel %vm2719, %v2686, %v1462
        %v2752 = vsel %vm2719, %v2687, %v1406
        %v2753 = vsel %vm2719, %v2688, %v1464
        %v2754 = vsel %vm2719, %v2689, %v1466
        %v2755 = vsel %vm2719, %v2690, %v1468
        %v2756 = vsel %vm2719, %v2691, %v1470
        %v2757 = vsel %vm2719, %v2692, %v1472
        %v2758 = vsel %vm2719, %v2693, %v1474
        %v2759 = vsel %vm2719, %v2694, %v1476
        %v2760 = vsel %vm2719, %v2695, %v1406
        %v2761 = vsel %vm2719, %v2696, %v1478
        %v2762 = vsel %vm2719, %v2697, %v1480
        %v2763 = vsel %vm2719, %v2698, %v1482
        %v2764 = vsel %vm2719, %v2699, %v1484
        %v2765 = vsel %vm2719, %v2700, %v1486
        %v2766 = vsel %vm2719, %v2701, %v1488
        %v2767 = vsel %vm2719, %v2702, %v1490
        %v2768 = vsel %vm2719, %v2703, %v1406
        %v2769 = vsel %vm2719, %v2704, %v1492
        %v2770 = vsel %vm2719, %v2705, %v1494
        %v2771 = vsel %vm2719, %v2706, %v1496
        %v2772 = vsel %vm2719, %v2707, %v1498
        %v2773 = vsel %vm2719, %v2708, %v1500
        %v2774 = vsel %vm2719, %v2709, %v1502
        %v2775 = vsel %vm2719, %v2710, %v1504
        %v2776 = vsel %vm2719, %v2711, %v1406
        %v2777 = vsel %vm2719, %v2712, %v1506
        %v2778 = vsel %vm2719, %v2713, %v1508
        %v2779 = vsel %vm2719, %v2714, %v1510
        %v2780 = vsel %vm2719, %v2715, %v1512
        %v2781 = vsel %vm2719, %v2716, %v1514
        %v2782 = vsel %vm2719, %v2717, %v1516
        %v2783 = vsel %vm2719, %v2718, %v1518
        %vm2784 = vcmask 130048
        %v2785 = vsel %vm2784, %v2720, %v1641
        %v2786 = vsel %vm2784, %v2721, %v1643
        %v2787 = vsel %vm2784, %v2722, %v1645
        %v2788 = vsel %vm2784, %v2723, %v1647
        %v2789 = vsel %vm2784, %v2724, %v1649
        %v2790 = vsel %vm2784, %v2725, %v1651
        %v2791 = vsel %vm2784, %v2726, %v1653
        %v2792 = vsel %vm2784, %v2727, %v1655
        %v2793 = vsel %vm2784, %v2728, %v1657
        %v2794 = vsel %vm2784, %v2729, %v1659
        %v2795 = vsel %vm2784, %v2730, %v1661
        %v2796 = vsel %vm2784, %v2731, %v1663
        %v2797 = vsel %vm2784, %v2732, %v1665
        %v2798 = vsel %vm2784, %v2733, %v1667
        %v2799 = vsel %vm2784, %v2734, %v1669
        %v2800 = vsel %vm2784, %v2735, %v1671
        %v2801 = vsel %vm2784, %v2736, %v1673
        %v2802 = vsel %vm2784, %v2737, %v1675
        %v2803 = vsel %vm2784, %v2738, %v1677
        %v2804 = vsel %vm2784, %v2739, %v1679
        %v2805 = vsel %vm2784, %v2740, %v1681
        %v2806 = vsel %vm2784, %v2741, %v1683
        %v2807 = vsel %vm2784, %v2742, %v1685
        %v2808 = vsel %vm2784, %v2743, %v1687
        %v2809 = vsel %vm2784, %v2744, %v1689
        %v2810 = vsel %vm2784, %v2745, %v1691
        %v2811 = vsel %vm2784, %v2746, %v1693
        %v2812 = vsel %vm2784, %v2747, %v1695
        %v2813 = vsel %vm2784, %v2748, %v1697
        %v2814 = vsel %vm2784, %v2749, %v1699
        %v2815 = vsel %vm2784, %v2750, %v1701
        %v2816 = vsel %vm2784, %v2751, %v1703
        %v2817 = vsel %vm2784, %v2752, %v1705
        %v2818 = vsel %vm2784, %v2753, %v1707
        %v2819 = vsel %vm2784, %v2754, %v1709
        %v2820 = vsel %vm2784, %v2755, %v1711
        %v2821 = vsel %vm2784, %v2756, %v1713
        %v2822 = vsel %vm2784, %v2757, %v1715
        %v2823 = vsel %vm2784, %v2758, %v1717
        %v2824 = vsel %vm2784, %v2759, %v1719
        %v2825 = vsel %vm2784, %v2760, %v1721
        %v2826 = vsel %vm2784, %v2761, %v1723
        %v2827 = vsel %vm2784, %v2762, %v1725
        %v2828 = vsel %vm2784, %v2763, %v1727
        %v2829 = vsel %vm2784, %v2764, %v1729
        %v2830 = vsel %vm2784, %v2765, %v1731
        %v2831 = vsel %vm2784, %v2766, %v1733
        %v2832 = vsel %vm2784, %v2767, %v1735
        %v2833 = vsel %vm2784, %v2768, %v1737
        %v2834 = vsel %vm2784, %v2769, %v1739
        %v2835 = vsel %vm2784, %v2770, %v1741
        %v2836 = vsel %vm2784, %v2771, %v1743
        %v2837 = vsel %vm2784, %v2772, %v1745
        %v2838 = vsel %vm2784, %v2773, %v1747
        %v2839 = vsel %vm2784, %v2774, %v1749
        %v2840 = vsel %vm2784, %v2775, %v1751
        %v2841 = vsel %vm2784, %v2776, %v1753
        %v2842 = vsel %vm2784, %v2777, %v1755
        %v2843 = vsel %vm2784, %v2778, %v1757
        %v2844 = vsel %vm2784, %v2779, %v1759
        %v2845 = vsel %vm2784, %v2780, %v1761
        %v2846 = vsel %vm2784, %v2781, %v1763
        %v2847 = vsel %vm2784, %v2782, %v1765
        %v2848 = vsel %vm2784, %v2783, %v1767
        %vm2849 = vcmask 162816
        %v2850 = vsel %vm2849, %v2785, %v1841
        %v2851 = vsel %vm2849, %v2786, %v1843
        %v2852 = vsel %vm2849, %v2787, %v1845
        %v2853 = vsel %vm2849, %v2788, %v1847
        %v2854 = vsel %vm2849, %v2789, %v1849
        %v2855 = vsel %vm2849, %v2790, %v1851
        %v2856 = vsel %vm2849, %v2791, %v1853
        %v2857 = vsel %vm2849, %v2792, %v1855
        %v2858 = vsel %vm2849, %v2793, %v1857
        %v2859 = vsel %vm2849, %v2794, %v1859
        %v2860 = vsel %vm2849, %v2795, %v1861
        %v2861 = vsel %vm2849, %v2796, %v1863
        %v2862 = vsel %vm2849, %v2797, %v1865
        %v2863 = vsel %vm2849, %v2798, %v1867
        %v2864 = vsel %vm2849, %v2799, %v1869
        %v2865 = vsel %vm2849, %v2800, %v1871
        %v2866 = vsel %vm2849, %v2801, %v1873
        %v2867 = vsel %vm2849, %v2802, %v1875
        %v2868 = vsel %vm2849, %v2803, %v1877
        %v2869 = vsel %vm2849, %v2804, %v1879
        %v2870 = vsel %vm2849, %v2805, %v1881
        %v2871 = vsel %vm2849, %v2806, %v1883
        %v2872 = vsel %vm2849, %v2807, %v1885
        %v2873 = vsel %vm2849, %v2808, %v1887
        %v2874 = vsel %vm2849, %v2809, %v1889
        %v2875 = vsel %vm2849, %v2810, %v1891
        %v2876 = vsel %vm2849, %v2811, %v1893
        %v2877 = vsel %vm2849, %v2812, %v1895
        %v2878 = vsel %vm2849, %v2813, %v1897
        %v2879 = vsel %vm2849, %v2814, %v1899
        %v2880 = vsel %vm2849, %v2815, %v1901
        %v2881 = vsel %vm2849, %v2816, %v1903
        %v2882 = vsel %vm2849, %v2817, %v1905
        %v2883 = vsel %vm2849, %v2818, %v1907
        %v2884 = vsel %vm2849, %v2819, %v1909
        %v2885 = vsel %vm2849, %v2820, %v1911
        %v2886 = vsel %vm2849, %v2821, %v1913
        %v2887 = vsel %vm2849, %v2822, %v1915
        %v2888 = vsel %vm2849, %v2823, %v1917
        %v2889 = vsel %vm2849, %v2824, %v1919
        %v2890 = vsel %vm2849, %v2825, %v1921
        %v2891 = vsel %vm2849, %v2826, %v1923
        %v2892 = vsel %vm2849, %v2827, %v1925
        %v2893 = vsel %vm2849, %v2828, %v1927
        %v2894 = vsel %vm2849, %v2829, %v1929
        %v2895 = vsel %vm2849, %v2830, %v1931
        %v2896 = vsel %vm2849, %v2831, %v1933
        %v2897 = vsel %vm2849, %v2832, %v1935
        %v2898 = vsel %vm2849, %v2833, %v1937
        %v2899 = vsel %vm2849, %v2834, %v1939
        %v2900 = vsel %vm2849, %v2835, %v1941
        %v2901 = vsel %vm2849, %v2836, %v1943
        %v2902 = vsel %vm2849, %v2837, %v1945
        %v2903 = vsel %vm2849, %v2838, %v1947
        %v2904 = vsel %vm2849, %v2839, %v1949
        %v2905 = vsel %vm2849, %v2840, %v1951
        %v2906 = vsel %vm2849, %v2841, %v1953
        %v2907 = vsel %vm2849, %v2842, %v1955
        %v2908 = vsel %vm2849, %v2843, %v1957
        %v2909 = vsel %vm2849, %v2844, %v1959
        %v2910 = vsel %vm2849, %v2845, %v1961
        %v2911 = vsel %vm2849, %v2846, %v1963
        %v2912 = vsel %vm2849, %v2847, %v1965
        %v2913 = vsel %vm2849, %v2848, %v1967
        %vm2914 = vcmask 195584
        %v2915 = vsel %vm2914, %v2850, %v2040
        %v2916 = vsel %vm2914, %v2851, %v2042
        %v2917 = vsel %vm2914, %v2852, %v2044
        %v2918 = vsel %vm2914, %v2853, %v2046
        %v2919 = vsel %vm2914, %v2854, %v2048
        %v2920 = vsel %vm2914, %v2855, %v2050
        %v2921 = vsel %vm2914, %v2856, %v2052
        %v2922 = vsel %vm2914, %v2857, %v2054
        %v2923 = vsel %vm2914, %v2858, %v2040
        %v2924 = vsel %vm2914, %v2859, %v2056
        %v2925 = vsel %vm2914, %v2860, %v2058
        %v2926 = vsel %vm2914, %v2861, %v2060
        %v2927 = vsel %vm2914, %v2862, %v2062
        %v2928 = vsel %vm2914, %v2863, %v2064
        %v2929 = vsel %vm2914, %v2864, %v2066
        %v2930 = vsel %vm2914, %v2865, %v2068
        %v2931 = vsel %vm2914, %v2866, %v2040
        %v2932 = vsel %vm2914, %v2867, %v2070
        %v2933 = vsel %vm2914, %v2868, %v2072
        %v2934 = vsel %vm2914, %v2869, %v2074
        %v2935 = vsel %vm2914, %v2870, %v2076
        %v2936 = vsel %vm2914, %v2871, %v2078
        %v2937 = vsel %vm2914, %v2872, %v2080
        %v2938 = vsel %vm2914, %v2873, %v2082
        %v2939 = vsel %vm2914, %v2874, %v2040
        %v2940 = vsel %vm2914, %v2875, %v2084
        %v2941 = vsel %vm2914, %v2876, %v2086
        %v2942 = vsel %vm2914, %v2877, %v2088
        %v2943 = vsel %vm2914, %v2878, %v2090
        %v2944 = vsel %vm2914, %v2879, %v2092
        %v2945 = vsel %vm2914, %v2880, %v2094
        %v2946 = vsel %vm2914, %v2881, %v2096
        %v2947 = vsel %vm2914, %v2882, %v2040
        %v2948 = vsel %vm2914, %v2883, %v2098
        %v2949 = vsel %vm2914, %v2884, %v2100
        %v2950 = vsel %vm2914, %v2885, %v2102
        %v2951 = vsel %vm2914, %v2886, %v2104
        %v2952 = vsel %vm2914, %v2887, %v2106
        %v2953 = vsel %vm2914, %v2888, %v2108
        %v2954 = vsel %vm2914, %v2889, %v2110
        %v2955 = vsel %vm2914, %v2890, %v2040
        %v2956 = vsel %vm2914, %v2891, %v2112
        %v2957 = vsel %vm2914, %v2892, %v2114
        %v2958 = vsel %vm2914, %v2893, %v2116
        %v2959 = vsel %vm2914, %v2894, %v2118
        %v2960 = vsel %vm2914, %v2895, %v2120
        %v2961 = vsel %vm2914, %v2896, %v2122
        %v2962 = vsel %vm2914, %v2897, %v2124
        %v2963 = vsel %vm2914, %v2898, %v2040
        %v2964 = vsel %vm2914, %v2899, %v2126
        %v2965 = vsel %vm2914, %v2900, %v2128
        %v2966 = vsel %vm2914, %v2901, %v2130
        %v2967 = vsel %vm2914, %v2902, %v2132
        %v2968 = vsel %vm2914, %v2903, %v2134
        %v2969 = vsel %vm2914, %v2904, %v2136
        %v2970 = vsel %vm2914, %v2905, %v2138
        %v2971 = vsel %vm2914, %v2906, %v2040
        %v2972 = vsel %vm2914, %v2907, %v2140
        %v2973 = vsel %vm2914, %v2908, %v2142
        %v2974 = vsel %vm2914, %v2909, %v2144
        %v2975 = vsel %vm2914, %v2910, %v2146
        %v2976 = vsel %vm2914, %v2911, %v2148
        %v2977 = vsel %vm2914, %v2912, %v2150
        %v2978 = vsel %vm2914, %v2913, %v2152
        %vm2979 = vcmask 228352
        %v2980 = vsel %vm2979, %v2915, %v2219
        %v2981 = vsel %vm2979, %v2916, %v2221
        %v2982 = vsel %vm2979, %v2917, %v2223
        %v2983 = vsel %vm2979, %v2918, %v2225
        %v2984 = vsel %vm2979, %v2919, %v2227
        %v2985 = vsel %vm2979, %v2920, %v2229
        %v2986 = vsel %vm2979, %v2921, %v2231
        %v2987 = vsel %vm2979, %v2922, %v2233
        %v2988 = vsel %vm2979, %v2923, %v2235
        %v2989 = vsel %vm2979, %v2924, %v2237
        %v2990 = vsel %vm2979, %v2925, %v2239
        %v2991 = vsel %vm2979, %v2926, %v2241
        %v2992 = vsel %vm2979, %v2927, %v2243
        %v2993 = vsel %vm2979, %v2928, %v2245
        %v2994 = vsel %vm2979, %v2929, %v2247
        %v2995 = vsel %vm2979, %v2930, %v2249
        %v2996 = vsel %vm2979, %v2931, %v2251
        %v2997 = vsel %vm2979, %v2932, %v2253
        %v2998 = vsel %vm2979, %v2933, %v2255
        %v2999 = vsel %vm2979, %v2934, %v2257
        %v3000 = vsel %vm2979, %v2935, %v2259
        %v3001 = vsel %vm2979, %v2936, %v2261
        %v3002 = vsel %vm2979, %v2937, %v2263
        %v3003 = vsel %vm2979, %v2938, %v2265
        %v3004 = vsel %vm2979, %v2939, %v2267
        %v3005 = vsel %vm2979, %v2940, %v2269
        %v3006 = vsel %vm2979, %v2941, %v2271
        %v3007 = vsel %vm2979, %v2942, %v2273
        %v3008 = vsel %vm2979, %v2943, %v2275
        %v3009 = vsel %vm2979, %v2944, %v2277
        %v3010 = vsel %vm2979, %v2945, %v2279
        %v3011 = vsel %vm2979, %v2946, %v2281
        %v3012 = vsel %vm2979, %v2947, %v2283
        %v3013 = vsel %vm2979, %v2948, %v2285
        %v3014 = vsel %vm2979, %v2949, %v2287
        %v3015 = vsel %vm2979, %v2950, %v2289
        %v3016 = vsel %vm2979, %v2951, %v2291
        %v3017 = vsel %vm2979, %v2952, %v2293
        %v3018 = vsel %vm2979, %v2953, %v2295
        %v3019 = vsel %vm2979, %v2954, %v2297
        %v3020 = vsel %vm2979, %v2955, %v2299
        %v3021 = vsel %vm2979, %v2956, %v2301
        %v3022 = vsel %vm2979, %v2957, %v2303
        %v3023 = vsel %vm2979, %v2958, %v2305
        %v3024 = vsel %vm2979, %v2959, %v2307
        %v3025 = vsel %vm2979, %v2960, %v2309
        %v3026 = vsel %vm2979, %v2961, %v2311
        %v3027 = vsel %vm2979, %v2962, %v2313
        %v3028 = vsel %vm2979, %v2963, %v2315
        %v3029 = vsel %vm2979, %v2964, %v2317
        %v3030 = vsel %vm2979, %v2965, %v2319
        %v3031 = vsel %vm2979, %v2966, %v2321
        %v3032 = vsel %vm2979, %v2967, %v2323
        %v3033 = vsel %vm2979, %v2968, %v2325
        %v3034 = vsel %vm2979, %v2969, %v2327
        %v3035 = vsel %vm2979, %v2970, %v2329
        %v3036 = vsel %vm2979, %v2971, %v2331
        %v3037 = vsel %vm2979, %v2972, %v2333
        %v3038 = vsel %vm2979, %v2973, %v2335
        %v3039 = vsel %vm2979, %v2974, %v2337
        %v3040 = vsel %vm2979, %v2975, %v2339
        %v3041 = vsel %vm2979, %v2976, %v2341
        %v3042 = vsel %vm2979, %v2977, %v2343
        %v3043 = vsel %vm2979, %v2978, %v2345
        %vm3044 = vcmask 261120
        %v3045 = vsel %vm3044, %v2980, %v2412
        %v3046 = vsel %vm3044, %v2981, %v2414
        %v3047 = vsel %vm3044, %v2982, %v2416
        %v3048 = vsel %vm3044, %v2983, %v2418
        %v3049 = vsel %vm3044, %v2984, %v2420
        %v3050 = vsel %vm3044, %v2985, %v2422
        %v3051 = vsel %vm3044, %v2986, %v2424
        %v3052 = vsel %vm3044, %v2987, %v2426
        %v3053 = vsel %vm3044, %v2988, %v2428
        %v3054 = vsel %vm3044, %v2989, %v2430
        %v3055 = vsel %vm3044, %v2990, %v2432
        %v3056 = vsel %vm3044, %v2991, %v2434
        %v3057 = vsel %vm3044, %v2992, %v2436
        %v3058 = vsel %vm3044, %v2993, %v2438
        %v3059 = vsel %vm3044, %v2994, %v2440
        %v3060 = vsel %vm3044, %v2995, %v2442
        %v3061 = vsel %vm3044, %v2996, %v2444
        %v3062 = vsel %vm3044, %v2997, %v2446
        %v3063 = vsel %vm3044, %v2998, %v2448
        %v3064 = vsel %vm3044, %v2999, %v2450
        %v3065 = vsel %vm3044, %v3000, %v2452
        %v3066 = vsel %vm3044, %v3001, %v2454
        %v3067 = vsel %vm3044, %v3002, %v2456
        %v3068 = vsel %vm3044, %v3003, %v2458
        %v3069 = vsel %vm3044, %v3004, %v2460
        %v3070 = vsel %vm3044, %v3005, %v2462
        %v3071 = vsel %vm3044, %v3006, %v2464
        %v3072 = vsel %vm3044, %v3007, %v2466
        %v3073 = vsel %vm3044, %v3008, %v2468
        %v3074 = vsel %vm3044, %v3009, %v2470
        %v3075 = vsel %vm3044, %v3010, %v2472
        %v3076 = vsel %vm3044, %v3011, %v2474
        %v3077 = vsel %vm3044, %v3012, %v2476
        %v3078 = vsel %vm3044, %v3013, %v2478
        %v3079 = vsel %vm3044, %v3014, %v2480
        %v3080 = vsel %vm3044, %v3015, %v2482
        %v3081 = vsel %vm3044, %v3016, %v2484
        %v3082 = vsel %vm3044, %v3017, %v2486
        %v3083 = vsel %vm3044, %v3018, %v2488
        %v3084 = vsel %vm3044, %v3019, %v2490
        %v3085 = vsel %vm3044, %v3020, %v2492
        %v3086 = vsel %vm3044, %v3021, %v2494
        %v3087 = vsel %vm3044, %v3022, %v2496
        %v3088 = vsel %vm3044, %v3023, %v2498
        %v3089 = vsel %vm3044, %v3024, %v2500
        %v3090 = vsel %vm3044, %v3025, %v2502
        %v3091 = vsel %vm3044, %v3026, %v2504
        %v3092 = vsel %vm3044, %v3027, %v2506
        %v3093 = vsel %vm3044, %v3028, %v2508
        %v3094 = vsel %vm3044, %v3029, %v2510
        %v3095 = vsel %vm3044, %v3030, %v2512
        %v3096 = vsel %vm3044, %v3031, %v2514
        %v3097 = vsel %vm3044, %v3032, %v2516
        %v3098 = vsel %vm3044, %v3033, %v2518
        %v3099 = vsel %vm3044, %v3034, %v2520
        %v3100 = vsel %vm3044, %v3035, %v2522
        %v3101 = vsel %vm3044, %v3036, %v2524
        %v3102 = vsel %vm3044, %v3037, %v2526
        %v3103 = vsel %vm3044, %v3038, %v2528
        %v3104 = vsel %vm3044, %v3039, %v2530
        %v3105 = vsel %vm3044, %v3040, %v2532
        %v3106 = vsel %vm3044, %v3041, %v2534
        %v3107 = vsel %vm3044, %v3042, %v2536
        %v3108 = vsel %vm3044, %v3043, %v2538
        %v3109 = vpack.c.bf16 %v3045, %v3045
        %v3110 = vpack.c.bf16 %v3046, %v3046
        %v3111 = vpack.c.bf16 %v3047, %v3047
        %v3112 = vpack.c.bf16 %v3048, %v3048
        %v3113 = vpack.c.bf16 %v3049, %v3049
        %v3114 = vpack.c.bf16 %v3050, %v3050
        %v3115 = vpack.c.bf16 %v3051, %v3051
        %v3116 = vpack.c.bf16 %v3052, %v3052
        %v3117 = vpack.c.bf16 %v3053, %v3053
        %v3118 = vpack.c.bf16 %v3054, %v3054
        %v3119 = vpack.c.bf16 %v3055, %v3055
        %v3120 = vpack.c.bf16 %v3056, %v3056
        %v3121 = vpack.c.bf16 %v3057, %v3057
        %v3122 = vpack.c.bf16 %v3058, %v3058
        %v3123 = vpack.c.bf16 %v3059, %v3059
        %v3124 = vpack.c.bf16 %v3060, %v3060
        %v3125 = vpack.c.bf16 %v3061, %v3061
        %v3126 = vpack.c.bf16 %v3062, %v3062
        %v3127 = vpack.c.bf16 %v3063, %v3063
        %v3128 = vpack.c.bf16 %v3064, %v3064
        %v3129 = vpack.c.bf16 %v3065, %v3065
        %v3130 = vpack.c.bf16 %v3066, %v3066
        %v3131 = vpack.c.bf16 %v3067, %v3067
        %v3132 = vpack.c.bf16 %v3068, %v3068
        %v3133 = vpack.c.bf16 %v3069, %v3069
        %v3134 = vpack.c.bf16 %v3070, %v3070
        %v3135 = vpack.c.bf16 %v3071, %v3071
        %v3136 = vpack.c.bf16 %v3072, %v3072
        %v3137 = vpack.c.bf16 %v3073, %v3073
        %v3138 = vpack.c.bf16 %v3074, %v3074
        %v3139 = vpack.c.bf16 %v3075, %v3075
        %v3140 = vpack.c.bf16 %v3076, %v3076
        %v3141 = vpack.c.bf16 %v3077, %v3077
        %v3142 = vpack.c.bf16 %v3078, %v3078
        %v3143 = vpack.c.bf16 %v3079, %v3079
        %v3144 = vpack.c.bf16 %v3080, %v3080
        %v3145 = vpack.c.bf16 %v3081, %v3081
        %v3146 = vpack.c.bf16 %v3082, %v3082
        %v3147 = vpack.c.bf16 %v3083, %v3083
        %v3148 = vpack.c.bf16 %v3084, %v3084
        %v3149 = vpack.c.bf16 %v3085, %v3085
        %v3150 = vpack.c.bf16 %v3086, %v3086
        %v3151 = vpack.c.bf16 %v3087, %v3087
        %v3152 = vpack.c.bf16 %v3088, %v3088
        %v3153 = vpack.c.bf16 %v3089, %v3089
        %v3154 = vpack.c.bf16 %v3090, %v3090
        %v3155 = vpack.c.bf16 %v3091, %v3091
        %v3156 = vpack.c.bf16 %v3092, %v3092
        %v3157 = vpack.c.bf16 %v3093, %v3093
        %v3158 = vpack.c.bf16 %v3094, %v3094
        %v3159 = vpack.c.bf16 %v3095, %v3095
        %v3160 = vpack.c.bf16 %v3096, %v3096
        %v3161 = vpack.c.bf16 %v3097, %v3097
        %v3162 = vpack.c.bf16 %v3098, %v3098
        %v3163 = vpack.c.bf16 %v3099, %v3099
        %v3164 = vpack.c.bf16 %v3100, %v3100
        %v3165 = vpack.c.bf16 %v3101, %v3101
        %v3166 = vpack.c.bf16 %v3102, %v3102
        %v3167 = vpack.c.bf16 %v3103, %v3103
        %v3168 = vpack.c.bf16 %v3104, %v3104
        %v3169 = vpack.c.bf16 %v3105, %v3105
        %v3170 = vpack.c.bf16 %v3106, %v3106
        %v3171 = vpack.c.bf16 %v3107, %v3107
        %v3172 = vpack.c.bf16 %v3108, %v3108
        %v3173 = vld [vmem:[%s1] sm:$0xf]
        %v3174 = vld [vmem:[%s1 + $0x4] sm:$0xf]
        %v3175 = vld [vmem:[%s1 + $0x8] sm:$0xf]
        %v3176 = vld [vmem:[%s1 + $0xc] sm:$0xf]
        %v3177 = vld [vmem:[%s1 + $0x10] sm:$0x3]
        %v3178 = vld [vmem:[%s2] sm:$0x1]
        %v3179 = vlaneseq
        %v3180 = vshrl.u32 %v3179, 7
        %v3181 = vsub.s32 0, %v3180
        %v3182 = vrot.slane %v3178, %v3181
        %v3247 = vunpack.c.l.b16 %v3109
        %v3248 = vunpack.c.l.b16 %v3110
        %v3249 = vunpack.c.l.b16 %v3111
        %v3250 = vunpack.c.l.b16 %v3112
        %v3251 = vunpack.c.l.b16 %v3113
        %v3252 = vunpack.c.l.b16 %v3114
        %v3253 = vunpack.c.l.b16 %v3115
        %v3254 = vunpack.c.l.b16 %v3116
        %v3255 = vunpack.c.l.b16 %v3117
        %v3256 = vunpack.c.l.b16 %v3118
        %v3257 = vunpack.c.l.b16 %v3119
        %v3258 = vunpack.c.l.b16 %v3120
        %v3259 = vunpack.c.l.b16 %v3121
        %v3260 = vunpack.c.l.b16 %v3122
        %v3261 = vunpack.c.l.b16 %v3123
        %v3262 = vunpack.c.l.b16 %v3124
        %v3263 = vunpack.c.l.b16 %v3125
        %v3264 = vunpack.c.l.b16 %v3126
        %v3265 = vunpack.c.l.b16 %v3127
        %v3266 = vunpack.c.l.b16 %v3128
        %v3267 = vunpack.c.l.b16 %v3129
        %v3268 = vunpack.c.l.b16 %v3130
        %v3269 = vunpack.c.l.b16 %v3131
        %v3270 = vunpack.c.l.b16 %v3132
        %v3271 = vunpack.c.l.b16 %v3133
        %v3272 = vunpack.c.l.b16 %v3134
        %v3273 = vunpack.c.l.b16 %v3135
        %v3274 = vunpack.c.l.b16 %v3136
        %v3275 = vunpack.c.l.b16 %v3137
        %v3276 = vunpack.c.l.b16 %v3138
        %v3277 = vunpack.c.l.b16 %v3139
        %v3278 = vunpack.c.l.b16 %v3140
        %v3279 = vunpack.c.l.b16 %v3141
        %v3280 = vunpack.c.l.b16 %v3142
        %v3281 = vunpack.c.l.b16 %v3143
        %v3282 = vunpack.c.l.b16 %v3144
        %v3283 = vunpack.c.l.b16 %v3145
        %v3284 = vunpack.c.l.b16 %v3146
        %v3285 = vunpack.c.l.b16 %v3147
        %v3286 = vunpack.c.l.b16 %v3148
        %v3287 = vunpack.c.l.b16 %v3149
        %v3288 = vunpack.c.l.b16 %v3150
        %v3289 = vunpack.c.l.b16 %v3151
        %v3290 = vunpack.c.l.b16 %v3152
        %v3291 = vunpack.c.l.b16 %v3153
        %v3292 = vunpack.c.l.b16 %v3154
        %v3293 = vunpack.c.l.b16 %v3155
        %v3294 = vunpack.c.l.b16 %v3156
        %v3295 = vunpack.c.l.b16 %v3157
        %v3296 = vunpack.c.l.b16 %v3158
        %v3297 = vunpack.c.l.b16 %v3159
        %v3298 = vunpack.c.l.b16 %v3160
        %v3299 = vunpack.c.l.b16 %v3161
        %v3300 = vunpack.c.l.b16 %v3162
        %v3301 = vunpack.c.l.b16 %v3163
        %v3302 = vunpack.c.l.b16 %v3164
        %v3303 = vunpack.c.l.b16 %v3165
        %v3304 = vunpack.c.l.b16 %v3166
        %v3305 = vunpack.c.l.b16 %v3167
        %v3306 = vunpack.c.l.b16 %v3168
        %v3307 = vunpack.c.l.b16 %v3169
        %v3308 = vunpack.c.l.b16 %v3170
        %v3309 = vunpack.c.l.b16 %v3171
        %v3310 = vunpack.c.l.b16 %v3172
        %v3311 = vrot.slane %v3248, 7
        %vm3312 = vcmask 1041409
        %v3313 = vsel %vm3312, %v3311, %v3247
        %v3314 = vrot.slane %v3249, 6
        %vm3315 = vcmask 1042434
        %v3316 = vsel %vm3315, %v3314, %v3313
        %v3317 = vrot.slane %v3250, 5
        %vm3318 = vcmask 1043459
        %v3319 = vsel %vm3318, %v3317, %v3316
        %v3320 = vrot.slane %v3251, 4
        %vm3321 = vcmask 1044484
        %v3322 = vsel %vm3321, %v3320, %v3319
        %v3323 = vrot.slane %v3252, 3
        %vm3324 = vcmask 1045509
        %v3325 = vsel %vm3324, %v3323, %v3322
        %v3326 = vrot.slane %v3253, 2
        %vm3327 = vcmask 1046534
        %v3328 = vsel %vm3327, %v3326, %v3325
        %v3329 = vrot.slane %v3254, 1
        %vm3330 = vcmask 1047559
        %v3331 = vsel %vm3330, %v3329, %v3328
        %v3332 = vrot.slane %v3256, 7
        %v3333 = vsel %vm3312, %v3332, %v3255
        %v3334 = vrot.slane %v3257, 6
        %v3335 = vsel %vm3315, %v3334, %v3333
        %v3336 = vrot.slane %v3258, 5
        %v3337 = vsel %vm3318, %v3336, %v3335
        %v3338 = vrot.slane %v3259, 4
        %v3339 = vsel %vm3321, %v3338, %v3337
        %v3340 = vrot.slane %v3260, 3
        %v3341 = vsel %vm3324, %v3340, %v3339
        %v3342 = vrot.slane %v3261, 2
        %v3343 = vsel %vm3327, %v3342, %v3341
        %v3344 = vrot.slane %v3262, 1
        %v3345 = vsel %vm3330, %v3344, %v3343
        %v3346 = vrot.slane %v3264, 7
        %v3347 = vsel %vm3312, %v3346, %v3263
        %v3348 = vrot.slane %v3265, 6
        %v3349 = vsel %vm3315, %v3348, %v3347
        %v3350 = vrot.slane %v3266, 5
        %v3351 = vsel %vm3318, %v3350, %v3349
        %v3352 = vrot.slane %v3267, 4
        %v3353 = vsel %vm3321, %v3352, %v3351
        %v3354 = vrot.slane %v3268, 3
        %v3355 = vsel %vm3324, %v3354, %v3353
        %v3356 = vrot.slane %v3269, 2
        %v3357 = vsel %vm3327, %v3356, %v3355
        %v3358 = vrot.slane %v3270, 1
        %v3359 = vsel %vm3330, %v3358, %v3357
        %v3360 = vrot.slane %v3272, 7
        %v3361 = vsel %vm3312, %v3360, %v3271
        %v3362 = vrot.slane %v3273, 6
        %v3363 = vsel %vm3315, %v3362, %v3361
        %v3364 = vrot.slane %v3274, 5
        %v3365 = vsel %vm3318, %v3364, %v3363
        %v3366 = vrot.slane %v3275, 4
        %v3367 = vsel %vm3321, %v3366, %v3365
        %v3368 = vrot.slane %v3276, 3
        %v3369 = vsel %vm3324, %v3368, %v3367
        %v3370 = vrot.slane %v3277, 2
        %v3371 = vsel %vm3327, %v3370, %v3369
        %v3372 = vrot.slane %v3278, 1
        %v3373 = vsel %vm3330, %v3372, %v3371
        %v3374 = vrot.slane %v3280, 7
        %v3375 = vsel %vm3312, %v3374, %v3279
        %v3376 = vrot.slane %v3281, 6
        %v3377 = vsel %vm3315, %v3376, %v3375
        %v3378 = vrot.slane %v3282, 5
        %v3379 = vsel %vm3318, %v3378, %v3377
        %v3380 = vrot.slane %v3283, 4
        %v3381 = vsel %vm3321, %v3380, %v3379
        %v3382 = vrot.slane %v3284, 3
        %v3383 = vsel %vm3324, %v3382, %v3381
        %v3384 = vrot.slane %v3285, 2
        %v3385 = vsel %vm3327, %v3384, %v3383
        %v3386 = vrot.slane %v3286, 1
        %v3387 = vsel %vm3330, %v3386, %v3385
        %v3388 = vrot.slane %v3288, 7
        %v3389 = vsel %vm3312, %v3388, %v3287
        %v3390 = vrot.slane %v3289, 6
        %v3391 = vsel %vm3315, %v3390, %v3389
        %v3392 = vrot.slane %v3290, 5
        %v3393 = vsel %vm3318, %v3392, %v3391
        %v3394 = vrot.slane %v3291, 4
        %v3395 = vsel %vm3321, %v3394, %v3393
        %v3396 = vrot.slane %v3292, 3
        %v3397 = vsel %vm3324, %v3396, %v3395
        %v3398 = vrot.slane %v3293, 2
        %v3399 = vsel %vm3327, %v3398, %v3397
        %v3400 = vrot.slane %v3294, 1
        %v3401 = vsel %vm3330, %v3400, %v3399
        %v3402 = vrot.slane %v3296, 7
        %v3403 = vsel %vm3312, %v3402, %v3295
        %v3404 = vrot.slane %v3297, 6
        %v3405 = vsel %vm3315, %v3404, %v3403
        %v3406 = vrot.slane %v3298, 5
        %v3407 = vsel %vm3318, %v3406, %v3405
        %v3408 = vrot.slane %v3299, 4
        %v3409 = vsel %vm3321, %v3408, %v3407
        %v3410 = vrot.slane %v3300, 3
        %v3411 = vsel %vm3324, %v3410, %v3409
        %v3412 = vrot.slane %v3301, 2
        %v3413 = vsel %vm3327, %v3412, %v3411
        %v3414 = vrot.slane %v3302, 1
        %v3415 = vsel %vm3330, %v3414, %v3413
        %v3416 = vrot.slane %v3304, 7
        %v3417 = vsel %vm3312, %v3416, %v3303
        %v3418 = vrot.slane %v3305, 6
        %v3419 = vsel %vm3315, %v3418, %v3417
        %v3420 = vrot.slane %v3306, 5
        %v3421 = vsel %vm3318, %v3420, %v3419
        %v3422 = vrot.slane %v3307, 4
        %v3423 = vsel %vm3321, %v3422, %v3421
        %v3424 = vrot.slane %v3308, 3
        %v3425 = vsel %vm3324, %v3424, %v3423
        %v3426 = vrot.slane %v3309, 2
        %v3427 = vsel %vm3327, %v3426, %v3425
        %v3428 = vrot.slane %v3310, 1
        %v3429 = vsel %vm3330, %v3428, %v3427
        %v3430 = vpack.c.b16 %v3345, %v3331
        %v3431 = vpack.c.b16 %v3373, %v3359
        %v3432 = vpack.c.b16 %v3401, %v3387
        %v3433 = vpack.c.b16 %v3429, %v3415
        %v3439 = vunpack.c.l.b16 %v3173
        %v3440 = vunpack.c.l.b16 %v3174
        %v3441 = vunpack.c.l.b16 %v3175
        %v3442 = vunpack.c.l.b16 %v3176
        %v3443 = vunpack.c.l.b16 %v3177
        %v3444 = vpack.c.b16 %v3440, %v3439
        %v3445 = vpack.c.b16 %v3442, %v3441
        %v3446 = vpack.c.b16 %v3443, %v3443
        %vm3449 = vcmask 293888
        %v3451 = vsel %vm3449, %v3430, 0
        %v3454 = vsel %vm3449, %v3431, 0
        %v3457 = vsel %vm3449, %v3432, 0
        %v3460 = vsel %vm3449, %v3433, 0
        %vm3462 = vcmask 1041408
        %v3464 = vsel %vm3462, %v3446, 0
        %3466 = vmatprep.subr.bf16.mxu0 0
        %3467 = vmatpush1.bf16.msra.mxu0 %v3444
        %3468 = vmatprep.subr.bf16.mxu0 0
        %3469 = vmatpush1.bf16.msra.mxu0 %v3445
        %3470 = vmatprep.subr.bf16.mxu0 0
        %3471 = vmatpush1.bf16.msra.mxu0 %v3464
        %3472 = vmatprep.subr.bf16.mxu0 0
        %3473 = vmatpush1.bf16.msra.mxu0 0
        %3474 = vmatprep.subr.bf16.mxu0 0
        %3475 = vmatpush1.bf16.msra.mxu0 0
        %3476 = vmatprep.subr.bf16.mxu0 0
        %3477 = vmatpush1.bf16.msra.mxu0 0
        %3478 = vmatprep.subr.bf16.mxu0 0
        %3479 = vmatpush1.bf16.msra.mxu0 0
        %3480 = vmatprep.subr.bf16.mxu0 0
        %3481 = vmatpush1.bf16.msra.mxu0 0
        %3482 = vmatprep.subr.bf16.mxu0 0
        %3483 = vmatpush1.bf16.msra.mxu0 0
        %3484 = vmatprep.subr.bf16.mxu0 0
        %3485 = vmatpush1.bf16.msra.mxu0 0
        %3486 = vmatprep.subr.bf16.mxu0 0
        %3487 = vmatpush1.bf16.msra.mxu0 0
        %3488 = vmatprep.subr.bf16.mxu0 0
        %3489 = vmatpush1.bf16.msra.mxu0 0
        %3490 = vmatprep.subr.bf16.mxu0 0
        %3491 = vmatpush1.bf16.msra.mxu0 0
        %3492 = vmatprep.subr.bf16.mxu0 0
        %3493 = vmatpush1.bf16.msra.mxu0 0
        %3494 = vmatprep.subr.bf16.mxu0 0
        %3495 = vmatpush1.bf16.msra.mxu0 0
        %3496 = vmatprep.subr.bf16.mxu0 0
        %3497 = vmatpush1.bf16.msra.mxu0 0
        %3498 = vmatprep.mubr.bf16.mxu0 0
        %3499 = vmatmul.mubr.bf16.gmra.mrb[0].mxu0 %v3451
        %v3500 = vpop.f32.mrb[0].mxu0
        %v3501 = vadd.f32 %v3182, %v3500
        %v3502 = vpop.f32.mrb[0].mxu0
        %v3503 = vpop.f32.mrb[0].mxu0
        %v3504 = vadd.f32 %v3182, %v3503
        %v3505 = vpop.f32.mrb[0].mxu0
        %3506 = vmatprep.mubr.bf16.mxu0 0
        %3507 = vmatmul.mubr.bf16.gmra.mrb[0].mxu0 %v3454
        %v3508 = vpop.f32.mrb[0].mxu0
        %v3509 = vadd.f32 %v3182, %v3508
        %v3510 = vpop.f32.mrb[0].mxu0
        %v3511 = vpop.f32.mrb[0].mxu0
        %v3512 = vadd.f32 %v3182, %v3511
        %v3513 = vpop.f32.mrb[0].mxu0
        %3514 = vmatprep.mubr.bf16.mxu0 0
        %3515 = vmatmul.mubr.bf16.gmra.mrb[0].mxu0 %v3457
        %v3516 = vpop.f32.mrb[0].mxu0
        %v3517 = vadd.f32 %v3182, %v3516
        %v3518 = vpop.f32.mrb[0].mxu0
        %v3519 = vpop.f32.mrb[0].mxu0
        %v3520 = vadd.f32 %v3182, %v3519
        %v3521 = vpop.f32.mrb[0].mxu0
        %3522 = vmatprep.mubr.bf16.mxu0 0
        %3523 = vmatmul.mubr.bf16.gmra.mrb[0].mxu0 %v3460
        %v3524 = vpop.f32.mrb[0].mxu0
        %v3525 = vadd.f32 %v3182, %v3524
        %v3526 = vpop.f32.mrb[0].mxu0
        %v3527 = vpop.f32.mrb[0].mxu0
        %v3528 = vadd.f32 %v3182, %v3527
        %v3529 = vpop.f32.mrb[0].mxu0
        %3530 = vdwg.mxu0
        %v3531 = vmul.f32 %v3501, 0.2
        %v3532 = vmul.f32 %v3504, 0.2
        %v3533 = vmul.f32 %v3509, 0.2
        %v3534 = vmul.f32 %v3512, 0.2
        %v3535 = vmul.f32 %v3517, 0.2
        %v3536 = vmul.f32 %v3520, 0.2
        %v3537 = vmul.f32 %v3525, 0.2
        %v3538 = vmul.f32 %v3528, 0.2
        %v3539 = vmax.f32 %v3501, %v3531
        %v3540 = vmax.f32 %v3504, %v3532
        %v3541 = vmax.f32 %v3509, %v3533
        %v3542 = vmax.f32 %v3512, %v3534
        %v3543 = vmax.f32 %v3517, %v3535
        %v3544 = vmax.f32 %v3520, %v3536
        %v3545 = vmax.f32 %v3525, %v3537
        %v3546 = vmax.f32 %v3528, %v3538
        %v3547 = vld [vmem:[%s2 + $0x1] sm:$0x1]
        %v3548 = vlaneseq
        %v3549 = vshrl.u32 %v3548, 7
        %v3550 = vsub.s32 0, %v3549
        %v3551 = vrot.slane %v3547, %v3550
        %v3552 = vmul.f32 %v3539, %v3551
        %v3553 = vmul.f32 %v3540, %v3551
        %v3554 = vmul.f32 %v3541, %v3551
        %v3555 = vmul.f32 %v3542, %v3551
        %v3556 = vmul.f32 %v3543, %v3551
        %v3557 = vmul.f32 %v3544, %v3551
        %v3558 = vmul.f32 %v3545, %v3551
        %v3559 = vmul.f32 %v3546, %v3551
        %v3560 = vld [vmem:[%s2 + $0x2] sm:$0x1]
        %v3561 = vlaneseq
        %v3562 = vshrl.u32 %v3561, 7
        %v3563 = vsub.s32 0, %v3562
        %v3564 = vrot.slane %v3560, %v3563
        %v3565 = vadd.f32 %v3552, %v3564
        %v3566 = vadd.f32 %v3553, %v3564
        %v3567 = vadd.f32 %v3554, %v3564
        %v3568 = vadd.f32 %v3555, %v3564
        %v3569 = vadd.f32 %v3556, %v3564
        %v3570 = vadd.f32 %v3557, %v3564
        %v3571 = vadd.f32 %v3558, %v3564
        %v3572 = vadd.f32 %v3559, %v3564
        %v3581 = vcombine.high %v3565, %v3565
        %v3583 = vunpack.c.l.s4 1966171168
        %v3584 = vunpack.c.0.s8 %v3583
        %v3585 = vlaneseq
        %v3586 = vshrl.u32 %v3585, 7
        %v3587 = vsub.s32 %v3584, %v3586
        %v3588 = vrot.slane %v3565, %v3587
        %v3590 = vunpack.c.l.s4 1966171168
        %v3591 = vunpack.c.0.s8 %v3590
        %v3592 = vlaneseq
        %v3593 = vshrl.u32 %v3592, 7
        %v3594 = vsub.s32 %v3591, %v3593
        %v3595 = vrot.slane %v3581, %v3594
        %v3596 = vcombine.high %v3588, %v3588
        %v3597 = vcombine.high %v3595, %v3595
        %v3599 = vunpack.c.l.s4 1966171168
        %v3600 = vunpack.c.0.s8 %v3599
        %v3601 = vlaneseq
        %v3602 = vshrl.u32 %v3601, 7
        %v3603 = vsub.s32 %v3600, %v3602
        %v3604 = vrot.slane %v3588, %v3603
        %v3606 = vunpack.c.l.s4 1966171168
        %v3607 = vunpack.c.0.s8 %v3606
        %v3608 = vlaneseq
        %v3609 = vshrl.u32 %v3608, 7
        %v3610 = vsub.s32 %v3607, %v3609
        %v3611 = vrot.slane %v3595, %v3610
        %v3613 = vunpack.c.l.s4 1966171168
        %v3614 = vunpack.c.0.s8 %v3613
        %v3615 = vlaneseq
        %v3616 = vshrl.u32 %v3615, 7
        %v3617 = vsub.s32 %v3614, %v3616
        %v3618 = vrot.slane %v3596, %v3617
        %v3620 = vunpack.c.l.s4 1966171168
        %v3621 = vunpack.c.0.s8 %v3620
        %v3622 = vlaneseq
        %v3623 = vshrl.u32 %v3622, 7
        %v3624 = vsub.s32 %v3621, %v3623
        %v3625 = vrot.slane %v3597, %v3624
        %v3626 = vcombine.high %v3604, %v3604
        %v3627 = vcombine.high %v3611, %v3611
        %v3628 = vcombine.high %v3618, %v3618
        %v3629 = vcombine.high %v3625, %v3625
        %v3630 = vcombine.high %v3566, %v3566
        %v3632 = vunpack.c.l.s4 1966171168
        %v3633 = vunpack.c.0.s8 %v3632
        %v3634 = vlaneseq
        %v3635 = vshrl.u32 %v3634, 7
        %v3636 = vsub.s32 %v3633, %v3635
        %v3637 = vrot.slane %v3566, %v3636
        %v3639 = vunpack.c.l.s4 1966171168
        %v3640 = vunpack.c.0.s8 %v3639
        %v3641 = vlaneseq
        %v3642 = vshrl.u32 %v3641, 7
        %v3643 = vsub.s32 %v3640, %v3642
        %v3644 = vrot.slane %v3630, %v3643
        %v3645 = vcombine.high %v3637, %v3637
        %v3646 = vcombine.high %v3644, %v3644
        %v3648 = vunpack.c.l.s4 1966171168
        %v3649 = vunpack.c.0.s8 %v3648
        %v3650 = vlaneseq
        %v3651 = vshrl.u32 %v3650, 7
        %v3652 = vsub.s32 %v3649, %v3651
        %v3653 = vrot.slane %v3637, %v3652
        %v3655 = vunpack.c.l.s4 1966171168
        %v3656 = vunpack.c.0.s8 %v3655
        %v3657 = vlaneseq
        %v3658 = vshrl.u32 %v3657, 7
        %v3659 = vsub.s32 %v3656, %v3658
        %v3660 = vrot.slane %v3644, %v3659
        %v3662 = vunpack.c.l.s4 1966171168
        %v3663 = vunpack.c.0.s8 %v3662
        %v3664 = vlaneseq
        %v3665 = vshrl.u32 %v3664, 7
        %v3666 = vsub.s32 %v3663, %v3665
        %v3667 = vrot.slane %v3645, %v3666
        %v3669 = vunpack.c.l.s4 1966171168
        %v3670 = vunpack.c.0.s8 %v3669
        %v3671 = vlaneseq
        %v3672 = vshrl.u32 %v3671, 7
        %v3673 = vsub.s32 %v3670, %v3672
        %v3674 = vrot.slane %v3646, %v3673
        %v3675 = vcombine.high %v3653, %v3653
        %v3676 = vcombine.high %v3660, %v3660
        %v3677 = vcombine.high %v3667, %v3667
        %v3678 = vcombine.high %v3674, %v3674
        %v3679 = vcombine.high %v3567, %v3567
        %v3681 = vunpack.c.l.s4 1966171168
        %v3682 = vunpack.c.0.s8 %v3681
        %v3683 = vlaneseq
        %v3684 = vshrl.u32 %v3683, 7
        %v3685 = vsub.s32 %v3682, %v3684
        %v3686 = vrot.slane %v3567, %v3685
        %v3688 = vunpack.c.l.s4 1966171168
        %v3689 = vunpack.c.0.s8 %v3688
        %v3690 = vlaneseq
        %v3691 = vshrl.u32 %v3690, 7
        %v3692 = vsub.s32 %v3689, %v3691
        %v3693 = vrot.slane %v3679, %v3692
        %v3694 = vcombine.high %v3686, %v3686
        %v3695 = vcombine.high %v3693, %v3693
        %v3697 = vunpack.c.l.s4 1966171168
        %v3698 = vunpack.c.0.s8 %v3697
        %v3699 = vlaneseq
        %v3700 = vshrl.u32 %v3699, 7
        %v3701 = vsub.s32 %v3698, %v3700
        %v3702 = vrot.slane %v3686, %v3701
        %v3704 = vunpack.c.l.s4 1966171168
        %v3705 = vunpack.c.0.s8 %v3704
        %v3706 = vlaneseq
        %v3707 = vshrl.u32 %v3706, 7
        %v3708 = vsub.s32 %v3705, %v3707
        %v3709 = vrot.slane %v3693, %v3708
        %v3711 = vunpack.c.l.s4 1966171168
        %v3712 = vunpack.c.0.s8 %v3711
        %v3713 = vlaneseq
        %v3714 = vshrl.u32 %v3713, 7
        %v3715 = vsub.s32 %v3712, %v3714
        %v3716 = vrot.slane %v3694, %v3715
        %v3718 = vunpack.c.l.s4 1966171168
        %v3719 = vunpack.c.0.s8 %v3718
        %v3720 = vlaneseq
        %v3721 = vshrl.u32 %v3720, 7
        %v3722 = vsub.s32 %v3719, %v3721
        %v3723 = vrot.slane %v3695, %v3722
        %v3724 = vcombine.high %v3702, %v3702
        %v3725 = vcombine.high %v3709, %v3709
        %v3726 = vcombine.high %v3716, %v3716
        %v3727 = vcombine.high %v3723, %v3723
        %v3728 = vcombine.high %v3568, %v3568
        %v3730 = vunpack.c.l.s4 1966171168
        %v3731 = vunpack.c.0.s8 %v3730
        %v3732 = vlaneseq
        %v3733 = vshrl.u32 %v3732, 7
        %v3734 = vsub.s32 %v3731, %v3733
        %v3735 = vrot.slane %v3568, %v3734
        %v3737 = vunpack.c.l.s4 1966171168
        %v3738 = vunpack.c.0.s8 %v3737
        %v3739 = vlaneseq
        %v3740 = vshrl.u32 %v3739, 7
        %v3741 = vsub.s32 %v3738, %v3740
        %v3742 = vrot.slane %v3728, %v3741
        %v3743 = vcombine.high %v3735, %v3735
        %v3744 = vcombine.high %v3742, %v3742
        %v3746 = vunpack.c.l.s4 1966171168
        %v3747 = vunpack.c.0.s8 %v3746
        %v3748 = vlaneseq
        %v3749 = vshrl.u32 %v3748, 7
        %v3750 = vsub.s32 %v3747, %v3749
        %v3751 = vrot.slane %v3735, %v3750
        %v3753 = vunpack.c.l.s4 1966171168
        %v3754 = vunpack.c.0.s8 %v3753
        %v3755 = vlaneseq
        %v3756 = vshrl.u32 %v3755, 7
        %v3757 = vsub.s32 %v3754, %v3756
        %v3758 = vrot.slane %v3742, %v3757
        %v3760 = vunpack.c.l.s4 1966171168
        %v3761 = vunpack.c.0.s8 %v3760
        %v3762 = vlaneseq
        %v3763 = vshrl.u32 %v3762, 7
        %v3764 = vsub.s32 %v3761, %v3763
        %v3765 = vrot.slane %v3743, %v3764
        %v3767 = vunpack.c.l.s4 1966171168
        %v3768 = vunpack.c.0.s8 %v3767
        %v3769 = vlaneseq
        %v3770 = vshrl.u32 %v3769, 7
        %v3771 = vsub.s32 %v3768, %v3770
        %v3772 = vrot.slane %v3744, %v3771
        %v3773 = vcombine.high %v3751, %v3751
        %v3774 = vcombine.high %v3758, %v3758
        %v3775 = vcombine.high %v3765, %v3765
        %v3776 = vcombine.high %v3772, %v3772
        %v3777 = vcombine.high %v3569, %v3569
        %v3779 = vunpack.c.l.s4 1966171168
        %v3780 = vunpack.c.0.s8 %v3779
        %v3781 = vlaneseq
        %v3782 = vshrl.u32 %v3781, 7
        %v3783 = vsub.s32 %v3780, %v3782
        %v3784 = vrot.slane %v3569, %v3783
        %v3786 = vunpack.c.l.s4 1966171168
        %v3787 = vunpack.c.0.s8 %v3786
        %v3788 = vlaneseq
        %v3789 = vshrl.u32 %v3788, 7
        %v3790 = vsub.s32 %v3787, %v3789
        %v3791 = vrot.slane %v3777, %v3790
        %v3792 = vcombine.high %v3784, %v3784
        %v3793 = vcombine.high %v3791, %v3791
        %v3795 = vunpack.c.l.s4 1966171168
        %v3796 = vunpack.c.0.s8 %v3795
        %v3797 = vlaneseq
        %v3798 = vshrl.u32 %v3797, 7
        %v3799 = vsub.s32 %v3796, %v3798
        %v3800 = vrot.slane %v3784, %v3799
        %v3802 = vunpack.c.l.s4 1966171168
        %v3803 = vunpack.c.0.s8 %v3802
        %v3804 = vlaneseq
        %v3805 = vshrl.u32 %v3804, 7
        %v3806 = vsub.s32 %v3803, %v3805
        %v3807 = vrot.slane %v3791, %v3806
        %v3809 = vunpack.c.l.s4 1966171168
        %v3810 = vunpack.c.0.s8 %v3809
        %v3811 = vlaneseq
        %v3812 = vshrl.u32 %v3811, 7
        %v3813 = vsub.s32 %v3810, %v3812
        %v3814 = vrot.slane %v3792, %v3813
        %v3816 = vunpack.c.l.s4 1966171168
        %v3817 = vunpack.c.0.s8 %v3816
        %v3818 = vlaneseq
        %v3819 = vshrl.u32 %v3818, 7
        %v3820 = vsub.s32 %v3817, %v3819
        %v3821 = vrot.slane %v3793, %v3820
        %v3822 = vcombine.high %v3800, %v3800
        %v3823 = vcombine.high %v3807, %v3807
        %v3824 = vcombine.high %v3814, %v3814
        %v3825 = vcombine.high %v3821, %v3821
        %v3826 = vcombine.high %v3570, %v3570
        %v3828 = vunpack.c.l.s4 1966171168
        %v3829 = vunpack.c.0.s8 %v3828
        %v3830 = vlaneseq
        %v3831 = vshrl.u32 %v3830, 7
        %v3832 = vsub.s32 %v3829, %v3831
        %v3833 = vrot.slane %v3570, %v3832
        %v3835 = vunpack.c.l.s4 1966171168
        %v3836 = vunpack.c.0.s8 %v3835
        %v3837 = vlaneseq
        %v3838 = vshrl.u32 %v3837, 7
        %v3839 = vsub.s32 %v3836, %v3838
        %v3840 = vrot.slane %v3826, %v3839
        %v3841 = vcombine.high %v3833, %v3833
        %v3842 = vcombine.high %v3840, %v3840
        %v3844 = vunpack.c.l.s4 1966171168
        %v3845 = vunpack.c.0.s8 %v3844
        %v3846 = vlaneseq
        %v3847 = vshrl.u32 %v3846, 7
        %v3848 = vsub.s32 %v3845, %v3847
        %v3849 = vrot.slane %v3833, %v3848
        %v3851 = vunpack.c.l.s4 1966171168
        %v3852 = vunpack.c.0.s8 %v3851
        %v3853 = vlaneseq
        %v3854 = vshrl.u32 %v3853, 7
        %v3855 = vsub.s32 %v3852, %v3854
        %v3856 = vrot.slane %v3840, %v3855
        %v3858 = vunpack.c.l.s4 1966171168
        %v3859 = vunpack.c.0.s8 %v3858
        %v3860 = vlaneseq
        %v3861 = vshrl.u32 %v3860, 7
        %v3862 = vsub.s32 %v3859, %v3861
        %v3863 = vrot.slane %v3841, %v3862
        %v3865 = vunpack.c.l.s4 1966171168
        %v3866 = vunpack.c.0.s8 %v3865
        %v3867 = vlaneseq
        %v3868 = vshrl.u32 %v3867, 7
        %v3869 = vsub.s32 %v3866, %v3868
        %v3870 = vrot.slane %v3842, %v3869
        %v3871 = vcombine.high %v3849, %v3849
        %v3872 = vcombine.high %v3856, %v3856
        %v3873 = vcombine.high %v3863, %v3863
        %v3874 = vcombine.high %v3870, %v3870
        %v3875 = vcombine.high %v3571, %v3571
        %v3877 = vunpack.c.l.s4 1966171168
        %v3878 = vunpack.c.0.s8 %v3877
        %v3879 = vlaneseq
        %v3880 = vshrl.u32 %v3879, 7
        %v3881 = vsub.s32 %v3878, %v3880
        %v3882 = vrot.slane %v3571, %v3881
        %v3884 = vunpack.c.l.s4 1966171168
        %v3885 = vunpack.c.0.s8 %v3884
        %v3886 = vlaneseq
        %v3887 = vshrl.u32 %v3886, 7
        %v3888 = vsub.s32 %v3885, %v3887
        %v3889 = vrot.slane %v3875, %v3888
        %v3890 = vcombine.high %v3882, %v3882
        %v3891 = vcombine.high %v3889, %v3889
        %v3893 = vunpack.c.l.s4 1966171168
        %v3894 = vunpack.c.0.s8 %v3893
        %v3895 = vlaneseq
        %v3896 = vshrl.u32 %v3895, 7
        %v3897 = vsub.s32 %v3894, %v3896
        %v3898 = vrot.slane %v3882, %v3897
        %v3900 = vunpack.c.l.s4 1966171168
        %v3901 = vunpack.c.0.s8 %v3900
        %v3902 = vlaneseq
        %v3903 = vshrl.u32 %v3902, 7
        %v3904 = vsub.s32 %v3901, %v3903
        %v3905 = vrot.slane %v3889, %v3904
        %v3907 = vunpack.c.l.s4 1966171168
        %v3908 = vunpack.c.0.s8 %v3907
        %v3909 = vlaneseq
        %v3910 = vshrl.u32 %v3909, 7
        %v3911 = vsub.s32 %v3908, %v3910
        %v3912 = vrot.slane %v3890, %v3911
        %v3914 = vunpack.c.l.s4 1966171168
        %v3915 = vunpack.c.0.s8 %v3914
        %v3916 = vlaneseq
        %v3917 = vshrl.u32 %v3916, 7
        %v3918 = vsub.s32 %v3915, %v3917
        %v3919 = vrot.slane %v3891, %v3918
        %v3920 = vcombine.high %v3898, %v3898
        %v3921 = vcombine.high %v3905, %v3905
        %v3922 = vcombine.high %v3912, %v3912
        %v3923 = vcombine.high %v3919, %v3919
        %v3924 = vcombine.high %v3572, %v3572
        %v3926 = vunpack.c.l.s4 1966171168
        %v3927 = vunpack.c.0.s8 %v3926
        %v3928 = vlaneseq
        %v3929 = vshrl.u32 %v3928, 7
        %v3930 = vsub.s32 %v3927, %v3929
        %v3931 = vrot.slane %v3572, %v3930
        %v3933 = vunpack.c.l.s4 1966171168
        %v3934 = vunpack.c.0.s8 %v3933
        %v3935 = vlaneseq
        %v3936 = vshrl.u32 %v3935, 7
        %v3937 = vsub.s32 %v3934, %v3936
        %v3938 = vrot.slane %v3924, %v3937
        %v3939 = vcombine.high %v3931, %v3931
        %v3940 = vcombine.high %v3938, %v3938
        %v3942 = vunpack.c.l.s4 1966171168
        %v3943 = vunpack.c.0.s8 %v3942
        %v3944 = vlaneseq
        %v3945 = vshrl.u32 %v3944, 7
        %v3946 = vsub.s32 %v3943, %v3945
        %v3947 = vrot.slane %v3931, %v3946
        %v3949 = vunpack.c.l.s4 1966171168
        %v3950 = vunpack.c.0.s8 %v3949
        %v3951 = vlaneseq
        %v3952 = vshrl.u32 %v3951, 7
        %v3953 = vsub.s32 %v3950, %v3952
        %v3954 = vrot.slane %v3938, %v3953
        %v3956 = vunpack.c.l.s4 1966171168
        %v3957 = vunpack.c.0.s8 %v3956
        %v3958 = vlaneseq
        %v3959 = vshrl.u32 %v3958, 7
        %v3960 = vsub.s32 %v3957, %v3959
        %v3961 = vrot.slane %v3939, %v3960
        %v3963 = vunpack.c.l.s4 1966171168
        %v3964 = vunpack.c.0.s8 %v3963
        %v3965 = vlaneseq
        %v3966 = vshrl.u32 %v3965, 7
        %v3967 = vsub.s32 %v3964, %v3966
        %v3968 = vrot.slane %v3940, %v3967
        %v3969 = vcombine.high %v3947, %v3947
        %v3970 = vcombine.high %v3954, %v3954
        %v3971 = vcombine.high %v3961, %v3961
        %v3972 = vcombine.high %v3968, %v3968
        %3989 = vrot.lane.b32.xlu0 0.0, 16
        %v3990 = vpop.permute.xlu0 %3989
        %3991 = vrot.lane.b32.xlu0 %v3653, 16
        %v3992 = vpop.permute.xlu0 %3991
        %3993 = vrot.lane.b32.xlu0 %v3675, 16
        %v3994 = vpop.permute.xlu0 %3993
        %3995 = vrot.lane.b32.xlu0 %v3660, 16
        %v3996 = vpop.permute.xlu0 %3995
        %3997 = vrot.lane.b32.xlu0 %v3676, 16
        %v3998 = vpop.permute.xlu0 %3997
        %3999 = vrot.lane.b32.xlu0 %v3751, 16
        %v4000 = vpop.permute.xlu0 %3999
        %4001 = vrot.lane.b32.xlu0 %v3773, 16
        %v4002 = vpop.permute.xlu0 %4001
        %4003 = vrot.lane.b32.xlu0 %v3758, 16
        %v4004 = vpop.permute.xlu0 %4003
        %4005 = vrot.lane.b32.xlu0 %v3774, 16
        %v4006 = vpop.permute.xlu0 %4005
        %4007 = vrot.lane.b32.xlu0 %v3849, 16
        %v4008 = vpop.permute.xlu0 %4007
        %4009 = vrot.lane.b32.xlu0 %v3871, 16
        %v4010 = vpop.permute.xlu0 %4009
        %4011 = vrot.lane.b32.xlu0 %v3856, 16
        %v4012 = vpop.permute.xlu0 %4011
        %4013 = vrot.lane.b32.xlu0 %v3872, 16
        %v4014 = vpop.permute.xlu0 %4013
        %4028 = vrot.lane.b32.xlu0 0.0, 32
        %v4029 = vpop.permute.xlu0 %4028
        %4030 = vrot.lane.b32.xlu0 %v3667, 32
        %v4031 = vpop.permute.xlu0 %4030
        %4032 = vrot.lane.b32.xlu0 %v3677, 32
        %v4033 = vpop.permute.xlu0 %4032
        %4034 = vrot.lane.b32.xlu0 %v3674, 32
        %v4035 = vpop.permute.xlu0 %4034
        %4036 = vrot.lane.b32.xlu0 %v3678, 32
        %v4037 = vpop.permute.xlu0 %4036
        %4038 = vrot.lane.b32.xlu0 %v3765, 32
        %v4039 = vpop.permute.xlu0 %4038
        %4040 = vrot.lane.b32.xlu0 %v3775, 32
        %v4041 = vpop.permute.xlu0 %4040
        %4042 = vrot.lane.b32.xlu0 %v3772, 32
        %v4043 = vpop.permute.xlu0 %4042
        %4044 = vrot.lane.b32.xlu0 %v3776, 32
        %v4045 = vpop.permute.xlu0 %4044
        %4046 = vrot.lane.b32.xlu0 %v3863, 32
        %v4047 = vpop.permute.xlu0 %4046
        %4048 = vrot.lane.b32.xlu0 %v3873, 32
        %v4049 = vpop.permute.xlu0 %4048
        %4050 = vrot.lane.b32.xlu0 %v3870, 32
        %v4051 = vpop.permute.xlu0 %4050
        %4052 = vrot.lane.b32.xlu0 %v3874, 32
        %v4053 = vpop.permute.xlu0 %4052
        %4067 = vrot.lane.b32.xlu0 0.0, 48
        %v4068 = vpop.permute.xlu0 %4067
        %4069 = vrot.lane.b32.xlu0 %v3618, 48
        %v4070 = vpop.permute.xlu0 %4069
        %4071 = vrot.lane.b32.xlu0 %v3628, 48
        %v4072 = vpop.permute.xlu0 %4071
        %4073 = vrot.lane.b32.xlu0 %v3625, 48
        %v4074 = vpop.permute.xlu0 %4073
        %4075 = vrot.lane.b32.xlu0 %v3716, 48
        %v4076 = vpop.permute.xlu0 %4075
        %4077 = vrot.lane.b32.xlu0 %v3726, 48
        %v4078 = vpop.permute.xlu0 %4077
        %4079 = vrot.lane.b32.xlu0 %v3723, 48
        %v4080 = vpop.permute.xlu0 %4079
        %4081 = vrot.lane.b32.xlu0 %v3814, 48
        %v4082 = vpop.permute.xlu0 %4081
        %4083 = vrot.lane.b32.xlu0 %v3824, 48
        %v4084 = vpop.permute.xlu0 %4083
        %4085 = vrot.lane.b32.xlu0 %v3821, 48
        %v4086 = vpop.permute.xlu0 %4085
        %4087 = vrot.lane.b32.xlu0 %v3912, 48
        %v4088 = vpop.permute.xlu0 %4087
        %4089 = vrot.lane.b32.xlu0 %v3922, 48
        %v4090 = vpop.permute.xlu0 %4089
        %4091 = vrot.lane.b32.xlu0 %v3919, 48
        %v4092 = vpop.permute.xlu0 %4091
        %4106 = vrot.lane.b32.xlu0 %v3604, 64
        %v4107 = vpop.permute.xlu0 %4106
        %4108 = vrot.lane.b32.xlu0 %v3626, 64
        %v4109 = vpop.permute.xlu0 %4108
        %4110 = vrot.lane.b32.xlu0 %v3611, 64
        %v4111 = vpop.permute.xlu0 %4110
        %4112 = vrot.lane.b32.xlu0 %v3627, 64
        %v4113 = vpop.permute.xlu0 %4112
        %4114 = vrot.lane.b32.xlu0 %v3702, 64
        %v4115 = vpop.permute.xlu0 %4114
        %4116 = vrot.lane.b32.xlu0 %v3724, 64
        %v4117 = vpop.permute.xlu0 %4116
        %4118 = vrot.lane.b32.xlu0 %v3709, 64
        %v4119 = vpop.permute.xlu0 %4118
        %4120 = vrot.lane.b32.xlu0 %v3725, 64
        %v4121 = vpop.permute.xlu0 %4120
        %4122 = vrot.lane.b32.xlu0 %v3800, 64
        %v4123 = vpop.permute.xlu0 %4122
        %4124 = vrot.lane.b32.xlu0 %v3822, 64
        %v4125 = vpop.permute.xlu0 %4124
        %4126 = vrot.lane.b32.xlu0 %v3807, 64
        %v4127 = vpop.permute.xlu0 %4126
        %4128 = vrot.lane.b32.xlu0 %v3823, 64
        %v4129 = vpop.permute.xlu0 %4128
        %4130 = vrot.lane.b32.xlu0 %v3898, 64
        %v4131 = vpop.permute.xlu0 %4130
        %4132 = vrot.lane.b32.xlu0 %v3920, 64
        %v4133 = vpop.permute.xlu0 %4132
        %4134 = vrot.lane.b32.xlu0 %v3905, 64
        %v4135 = vpop.permute.xlu0 %4134
        %4136 = vrot.lane.b32.xlu0 %v3921, 64
        %v4137 = vpop.permute.xlu0 %4136
        %4154 = vrot.lane.b32.xlu0 %v3618, 80
        %v4155 = vpop.permute.xlu0 %4154
        %4156 = vrot.lane.b32.xlu0 %v3628, 80
        %v4157 = vpop.permute.xlu0 %4156
        %4158 = vrot.lane.b32.xlu0 %v3625, 80
        %v4159 = vpop.permute.xlu0 %4158
        %4160 = vrot.lane.b32.xlu0 %v3629, 80
        %v4161 = vpop.permute.xlu0 %4160
        %4162 = vrot.lane.b32.xlu0 %v3716, 80
        %v4163 = vpop.permute.xlu0 %4162
        %4164 = vrot.lane.b32.xlu0 %v3726, 80
        %v4165 = vpop.permute.xlu0 %4164
        %4166 = vrot.lane.b32.xlu0 %v3723, 80
        %v4167 = vpop.permute.xlu0 %4166
        %4168 = vrot.lane.b32.xlu0 %v3727, 80
        %v4169 = vpop.permute.xlu0 %4168
        %4170 = vrot.lane.b32.xlu0 %v3814, 80
        %v4171 = vpop.permute.xlu0 %4170
        %4172 = vrot.lane.b32.xlu0 %v3824, 80
        %v4173 = vpop.permute.xlu0 %4172
        %4174 = vrot.lane.b32.xlu0 %v3821, 80
        %v4175 = vpop.permute.xlu0 %4174
        %4176 = vrot.lane.b32.xlu0 %v3825, 80
        %v4177 = vpop.permute.xlu0 %4176
        %4178 = vrot.lane.b32.xlu0 %v3912, 80
        %v4179 = vpop.permute.xlu0 %4178
        %4180 = vrot.lane.b32.xlu0 %v3922, 80
        %v4181 = vpop.permute.xlu0 %4180
        %4182 = vrot.lane.b32.xlu0 %v3919, 80
        %v4183 = vpop.permute.xlu0 %4182
        %4184 = vrot.lane.b32.xlu0 %v3923, 80
        %v4185 = vpop.permute.xlu0 %4184
        %4202 = vrot.lane.b32.xlu0 0.0, 96
        %v4203 = vpop.permute.xlu0 %4202
        %4204 = vrot.lane.b32.xlu0 %v3667, 96
        %v4205 = vpop.permute.xlu0 %4204
        %4206 = vrot.lane.b32.xlu0 %v3677, 96
        %v4207 = vpop.permute.xlu0 %4206
        %4208 = vrot.lane.b32.xlu0 %v3674, 96
        %v4209 = vpop.permute.xlu0 %4208
        %4210 = vrot.lane.b32.xlu0 %v3765, 96
        %v4211 = vpop.permute.xlu0 %4210
        %4212 = vrot.lane.b32.xlu0 %v3775, 96
        %v4213 = vpop.permute.xlu0 %4212
        %4214 = vrot.lane.b32.xlu0 %v3772, 96
        %v4215 = vpop.permute.xlu0 %4214
        %4216 = vrot.lane.b32.xlu0 %v3863, 96
        %v4217 = vpop.permute.xlu0 %4216
        %4218 = vrot.lane.b32.xlu0 %v3873, 96
        %v4219 = vpop.permute.xlu0 %4218
        %4220 = vrot.lane.b32.xlu0 %v3870, 96
        %v4221 = vpop.permute.xlu0 %4220
        %4222 = vrot.lane.b32.xlu0 %v3961, 96
        %v4223 = vpop.permute.xlu0 %4222
        %4224 = vrot.lane.b32.xlu0 %v3971, 96
        %v4225 = vpop.permute.xlu0 %4224
        %4226 = vrot.lane.b32.xlu0 %v3968, 96
        %v4227 = vpop.permute.xlu0 %4226
        %4241 = vrot.lane.b32.xlu0 %v3653, 112
        %v4242 = vpop.permute.xlu0 %4241
        %4243 = vrot.lane.b32.xlu0 %v3675, 112
        %v4244 = vpop.permute.xlu0 %4243
        %4245 = vrot.lane.b32.xlu0 %v3660, 112
        %v4246 = vpop.permute.xlu0 %4245
        %4247 = vrot.lane.b32.xlu0 %v3676, 112
        %v4248 = vpop.permute.xlu0 %4247
        %4249 = vrot.lane.b32.xlu0 %v3751, 112
        %v4250 = vpop.permute.xlu0 %4249
        %4251 = vrot.lane.b32.xlu0 %v3773, 112
        %v4252 = vpop.permute.xlu0 %4251
        %4253 = vrot.lane.b32.xlu0 %v3758, 112
        %v4254 = vpop.permute.xlu0 %4253
        %4255 = vrot.lane.b32.xlu0 %v3774, 112
        %v4256 = vpop.permute.xlu0 %4255
        %4257 = vrot.lane.b32.xlu0 %v3849, 112
        %v4258 = vpop.permute.xlu0 %4257
        %4259 = vrot.lane.b32.xlu0 %v3871, 112
        %v4260 = vpop.permute.xlu0 %4259
        %4261 = vrot.lane.b32.xlu0 %v3856, 112
        %v4262 = vpop.permute.xlu0 %4261
        %4263 = vrot.lane.b32.xlu0 %v3872, 112
        %v4264 = vpop.permute.xlu0 %4263
        %4265 = vrot.lane.b32.xlu0 %v3947, 112
        %v4266 = vpop.permute.xlu0 %4265
        %4267 = vrot.lane.b32.xlu0 %v3969, 112
        %v4268 = vpop.permute.xlu0 %4267
        %4269 = vrot.lane.b32.xlu0 %v3954, 112
        %v4270 = vpop.permute.xlu0 %4269
        %4271 = vrot.lane.b32.xlu0 %v3970, 112
        %v4272 = vpop.permute.xlu0 %4271
        %v4289 = vsel %vm2784, 0.0, %v3990
        %v4290 = vsel %vm2784, 0.0, %v3992
        %v4291 = vsel %vm2784, %v3667, %v3994
        %v4292 = vsel %vm2784, %v3677, %v3996
        %v4293 = vsel %vm2784, %v3674, %v3998
        %v4294 = vsel %vm2784, 0.0, %v4000
        %v4295 = vsel %vm2784, %v3765, %v4002
        %v4296 = vsel %vm2784, %v3775, %v4004
        %v4297 = vsel %vm2784, %v3772, %v4006
        %v4298 = vsel %vm2784, 0.0, %v4008
        %v4299 = vsel %vm2784, %v3863, %v4010
        %v4300 = vsel %vm2784, %v3873, %v4012
        %v4301 = vsel %vm2784, %v3870, %v4014
        %v4302 = vsel %vm3044, %v4289, %v4029
        %v4303 = vsel %vm3044, %v4290, %v4031
        %v4304 = vsel %vm3044, %v4291, %v4033
        %v4305 = vsel %vm3044, %v4292, %v4035
        %v4306 = vsel %vm3044, %v4293, %v4037
        %v4307 = vsel %vm3044, %v4294, %v4039
        %v4308 = vsel %vm3044, %v4295, %v4041
        %v4309 = vsel %vm3044, %v4296, %v4043
        %v4310 = vsel %vm3044, %v4297, %v4045
        %v4311 = vsel %vm3044, %v4298, %v4047
        %v4312 = vsel %vm3044, %v4299, %v4049
        %v4313 = vsel %vm3044, %v4300, %v4051
        %v4314 = vsel %vm3044, %v4301, %v4053
        %vm4315 = vcmask 392192
        %v4316 = vsel %vm4315, %v4302, %v4068
        %v4317 = vsel %vm4315, %v4302, %v4070
        %v4318 = vsel %vm4315, %v4302, %v4072
        %v4319 = vsel %vm4315, %v4302, %v4074
        %v4320 = vsel %vm4315, %v4303, %v4068
        %v4321 = vsel %vm4315, %v4304, %v4076
        %v4322 = vsel %vm4315, %v4305, %v4078
        %v4323 = vsel %vm4315, %v4306, %v4080
        %v4324 = vsel %vm4315, %v4307, %v4068
        %v4325 = vsel %vm4315, %v4308, %v4082
        %v4326 = vsel %vm4315, %v4309, %v4084
        %v4327 = vsel %vm4315, %v4310, %v4086
        %v4328 = vsel %vm4315, %v4311, %v4068
        %v4329 = vsel %vm4315, %v4312, %v4088
        %v4330 = vsel %vm4315, %v4313, %v4090
        %v4331 = vsel %vm4315, %v4314, %v4092
        %vm4332 = vcmask 523264
        %v4333 = vsel %vm4332, %v4316, %v4107
        %v4334 = vsel %vm4332, %v4317, %v4109
        %v4335 = vsel %vm4332, %v4318, %v4111
        %v4336 = vsel %vm4332, %v4319, %v4113
        %v4337 = vsel %vm4332, %v4320, %v4115
        %v4338 = vsel %vm4332, %v4321, %v4117
        %v4339 = vsel %vm4332, %v4322, %v4119
        %v4340 = vsel %vm4332, %v4323, %v4121
        %v4341 = vsel %vm4332, %v4324, %v4123
        %v4342 = vsel %vm4332, %v4325, %v4125
        %v4343 = vsel %vm4332, %v4326, %v4127
        %v4344 = vsel %vm4332, %v4327, %v4129
        %v4345 = vsel %vm4332, %v4328, %v4131
        %v4346 = vsel %vm4332, %v4329, %v4133
        %v4347 = vsel %vm4332, %v4330, %v4135
        %v4348 = vsel %vm4332, %v4331, %v4137
        %vm4349 = vcmask 654336
        %v4350 = vsel %vm4349, %v4333, %v4155
        %v4351 = vsel %vm4349, %v4334, %v4157
        %v4352 = vsel %vm4349, %v4335, %v4159
        %v4353 = vsel %vm4349, %v4336, %v4161
        %v4354 = vsel %vm4349, %v4337, %v4163
        %v4355 = vsel %vm4349, %v4338, %v4165
        %v4356 = vsel %vm4349, %v4339, %v4167
        %v4357 = vsel %vm4349, %v4340, %v4169
        %v4358 = vsel %vm4349, %v4341, %v4171
        %v4359 = vsel %vm4349, %v4342, %v4173
        %v4360 = vsel %vm4349, %v4343, %v4175
        %v4361 = vsel %vm4349, %v4344, %v4177
        %v4362 = vsel %vm4349, %v4345, %v4179
        %v4363 = vsel %vm4349, %v4346, %v4181
        %v4364 = vsel %vm4349, %v4347, %v4183
        %v4365 = vsel %vm4349, %v4348, %v4185
        %vm4366 = vcmask 785408
        %v4367 = vsel %vm4366, %v4350, %v4203
        %v4368 = vsel %vm4366, %v4351, %v4205
        %v4369 = vsel %vm4366, %v4352, %v4207
        %v4370 = vsel %vm4366, %v4353, %v4209
        %v4371 = vsel %vm4366, %v4354, %v4203
        %v4372 = vsel %vm4366, %v4355, %v4211
        %v4373 = vsel %vm4366, %v4356, %v4213
        %v4374 = vsel %vm4366, %v4357, %v4215
        %v4375 = vsel %vm4366, %v4358, %v4203
        %v4376 = vsel %vm4366, %v4359, %v4217
        %v4377 = vsel %vm4366, %v4360, %v4219
        %v4378 = vsel %vm4366, %v4361, %v4221
        %v4379 = vsel %vm4366, %v4362, %v4203
        %v4380 = vsel %vm4366, %v4363, %v4223
        %v4381 = vsel %vm4366, %v4364, %v4225
        %v4382 = vsel %vm4366, %v4365, %v4227
        %vm4383 = vcmask 916480
        %v4384 = vsel %vm4383, %v4367, %v4242
        %v4385 = vsel %vm4383, %v4368, %v4244
        %v4386 = vsel %vm4383, %v4369, %v4246
        %v4387 = vsel %vm4383, %v4370, %v4248
        %v4388 = vsel %vm4383, %v4371, %v4250
        %v4389 = vsel %vm4383, %v4372, %v4252
        %v4390 = vsel %vm4383, %v4373, %v4254
        %v4391 = vsel %vm4383, %v4374, %v4256
        %v4392 = vsel %vm4383, %v4375, %v4258
        %v4393 = vsel %vm4383, %v4376, %v4260
        %v4394 = vsel %vm4383, %v4377, %v4262
        %v4395 = vsel %vm4383, %v4378, %v4264
        %v4396 = vsel %vm4383, %v4379, %v4266
        %v4397 = vsel %vm4383, %v4380, %v4268
        %v4398 = vsel %vm4383, %v4381, %v4270
        %v4399 = vsel %vm4383, %v4382, %v4272
        %v4400 = vpack.c.bf16 %v4384, %v4384
        %v4401 = vpack.c.bf16 %v3667, %v3667
        %v4402 = vpack.c.bf16 %v4385, %v4385
        %v4403 = vpack.c.bf16 %v3677, %v3677
        %v4404 = vpack.c.bf16 %v4386, %v4386
        %v4405 = vpack.c.bf16 %v3674, %v3674
        %v4406 = vpack.c.bf16 %v4387, %v4387
        %v4407 = vpack.c.bf16 %v3678, %v3678
        %v4408 = vpack.c.bf16 %v4388, %v4388
        %v4409 = vpack.c.bf16 %v3765, %v3765
        %v4410 = vpack.c.bf16 %v4389, %v4389
        %v4411 = vpack.c.bf16 %v3775, %v3775
        %v4412 = vpack.c.bf16 %v4390, %v4390
        %v4413 = vpack.c.bf16 %v3772, %v3772
        %v4414 = vpack.c.bf16 %v4391, %v4391
        %v4415 = vpack.c.bf16 %v3776, %v3776
        %v4416 = vpack.c.bf16 %v4392, %v4392
        %v4417 = vpack.c.bf16 %v3863, %v3863
        %v4418 = vpack.c.bf16 %v4393, %v4393
        %v4419 = vpack.c.bf16 %v3873, %v3873
        %v4420 = vpack.c.bf16 %v4394, %v4394
        %v4421 = vpack.c.bf16 %v3870, %v3870
        %v4422 = vpack.c.bf16 %v4395, %v4395
        %v4423 = vpack.c.bf16 %v3874, %v3874
        %v4424 = vpack.c.bf16 %v4396, %v4396
        %v4425 = vpack.c.bf16 %v3961, %v3961
        %v4426 = vpack.c.bf16 %v4397, %v4397
        %v4427 = vpack.c.bf16 %v3971, %v3971
        %v4428 = vpack.c.bf16 %v4398, %v4398
        %v4429 = vpack.c.bf16 %v3968, %v3968
        %v4430 = vpack.c.bf16 %v4399, %v4399
        %v4431 = vpack.c.bf16 %v3972, %v3972
        %v4432 = vld [vmem:[%s3] sm:$0xf]
        %v4433 = vld [vmem:[%s3 + $0x4] sm:$0xf]
        %v4434 = vld [vmem:[%s3 + $0x8] sm:$0xf]
        %v4435 = vld [vmem:[%s3 + $0xc] sm:$0xf]
        %v4436 = vld [vmem:[%s3 + $0x10] sm:$0xf]
        %v4437 = vld [vmem:[%s3 + $0x14] sm:$0xf]
        %v4438 = vld [vmem:[%s3 + $0x18] sm:$0xf]
        %v4439 = vld [vmem:[%s3 + $0x1c] sm:$0xf]
        %v4440 = vld [vmem:[%s3 + $0x20] sm:$0xf]
        %v4441 = vld [vmem:[%s3 + $0x24] sm:$0xf]
        %v4442 = vld [vmem:[%s3 + $0x28] sm:$0xf]
        %v4443 = vld [vmem:[%s3 + $0x2c] sm:$0xf]
        %v4444 = vld [vmem:[%s3 + $0x30] sm:$0xf]
        %v4445 = vld [vmem:[%s3 + $0x34] sm:$0xf]
        %v4446 = vld [vmem:[%s3 + $0x38] sm:$0xf]
        %v4447 = vld [vmem:[%s3 + $0x3c] sm:$0xf]
        %v4448 = vld [vmem:[%s3 + $0x40] sm:$0xf]
        %v4449 = vld [vmem:[%s3 + $0x44] sm:$0xf]
        %v4450 = vld [vmem:[%s4] sm:$0x1]
        %v4451 = vlaneseq
        %v4452 = vshrl.u32 %v4451, 7
        %v4453 = vsub.s32 0, %v4452
        %v4454 = vrot.slane %v4450, %v4453
        %v4487 = vunpack.c.l.b16 %v4400
        %v4488 = vunpack.c.l.b16 %v4401
        %v4489 = vunpack.c.l.b16 %v4402
        %v4490 = vunpack.c.l.b16 %v4403
        %v4491 = vunpack.c.l.b16 %v4404
        %v4492 = vunpack.c.l.b16 %v4405
        %v4493 = vunpack.c.l.b16 %v4406
        %v4494 = vunpack.c.l.b16 %v4407
        %v4495 = vunpack.c.l.b16 %v4408
        %v4496 = vunpack.c.l.b16 %v4409
        %v4497 = vunpack.c.l.b16 %v4410
        %v4498 = vunpack.c.l.b16 %v4411
        %v4499 = vunpack.c.l.b16 %v4412
        %v4500 = vunpack.c.l.b16 %v4413
        %v4501 = vunpack.c.l.b16 %v4414
        %v4502 = vunpack.c.l.b16 %v4415
        %v4503 = vunpack.c.l.b16 %v4416
        %v4504 = vunpack.c.l.b16 %v4417
        %v4505 = vunpack.c.l.b16 %v4418
        %v4506 = vunpack.c.l.b16 %v4419
        %v4507 = vunpack.c.l.b16 %v4420
        %v4508 = vunpack.c.l.b16 %v4421
        %v4509 = vunpack.c.l.b16 %v4422
        %v4510 = vunpack.c.l.b16 %v4423
        %v4511 = vunpack.c.l.b16 %v4424
        %v4512 = vunpack.c.l.b16 %v4425
        %v4513 = vunpack.c.l.b16 %v4426
        %v4514 = vunpack.c.l.b16 %v4427
        %v4515 = vunpack.c.l.b16 %v4428
        %v4516 = vunpack.c.l.b16 %v4429
        %v4517 = vunpack.c.l.b16 %v4430
        %v4518 = vunpack.c.l.b16 %v4431
        %v4519 = vrot.slane %v4489, 7
        %v4520 = vsel %vm3312, %v4519, %v4487
        %v4521 = vrot.slane %v4491, 6
        %v4522 = vsel %vm3315, %v4521, %v4520
        %v4523 = vrot.slane %v4493, 5
        %v4524 = vsel %vm3318, %v4523, %v4522
        %v4525 = vrot.slane %v4495, 4
        %v4526 = vsel %vm3321, %v4525, %v4524
        %v4527 = vrot.slane %v4497, 3
        %v4528 = vsel %vm3324, %v4527, %v4526
        %v4529 = vrot.slane %v4499, 2
        %v4530 = vsel %vm3327, %v4529, %v4528
        %v4531 = vrot.slane %v4501, 1
        %v4532 = vsel %vm3330, %v4531, %v4530
        %v4533 = vrot.slane %v4490, 7
        %v4534 = vsel %vm3312, %v4533, %v4488
        %v4535 = vrot.slane %v4492, 6
        %v4536 = vsel %vm3315, %v4535, %v4534
        %v4537 = vrot.slane %v4494, 5
        %v4538 = vsel %vm3318, %v4537, %v4536
        %v4539 = vrot.slane %v4496, 4
        %v4540 = vsel %vm3321, %v4539, %v4538
        %v4541 = vrot.slane %v4498, 3
        %v4542 = vsel %vm3324, %v4541, %v4540
        %v4543 = vrot.slane %v4500, 2
        %v4544 = vsel %vm3327, %v4543, %v4542
        %v4545 = vrot.slane %v4502, 1
        %v4546 = vsel %vm3330, %v4545, %v4544
        %v4547 = vrot.slane %v4505, 7
        %v4548 = vsel %vm3312, %v4547, %v4503
        %v4549 = vrot.slane %v4507, 6
        %v4550 = vsel %vm3315, %v4549, %v4548
        %v4551 = vrot.slane %v4509, 5
        %v4552 = vsel %vm3318, %v4551, %v4550
        %v4553 = vrot.slane %v4511, 4
        %v4554 = vsel %vm3321, %v4553, %v4552
        %v4555 = vrot.slane %v4513, 3
        %v4556 = vsel %vm3324, %v4555, %v4554
        %v4557 = vrot.slane %v4515, 2
        %v4558 = vsel %vm3327, %v4557, %v4556
        %v4559 = vrot.slane %v4517, 1
        %v4560 = vsel %vm3330, %v4559, %v4558
        %v4561 = vrot.slane %v4506, 7
        %v4562 = vsel %vm3312, %v4561, %v4504
        %v4563 = vrot.slane %v4508, 6
        %v4564 = vsel %vm3315, %v4563, %v4562
        %v4565 = vrot.slane %v4510, 5
        %v4566 = vsel %vm3318, %v4565, %v4564
        %v4567 = vrot.slane %v4512, 4
        %v4568 = vsel %vm3321, %v4567, %v4566
        %v4569 = vrot.slane %v4514, 3
        %v4570 = vsel %vm3324, %v4569, %v4568
        %v4571 = vrot.slane %v4516, 2
        %v4572 = vsel %vm3327, %v4571, %v4570
        %v4573 = vrot.slane %v4518, 1
        %v4574 = vsel %vm3330, %v4573, %v4572
        %v4575 = vpack.c.b16 %v4560, %v4532
        %v4576 = vpack.c.b16 %v4574, %v4546
        %v4596 = vunpack.c.l.b16 %v4432
        %v4597 = vunpack.c.l.b16 %v4433
        %v4598 = vunpack.c.l.b16 %v4434
        %v4599 = vunpack.c.l.b16 %v4435
        %v4600 = vunpack.c.l.b16 %v4436
        %v4601 = vunpack.c.l.b16 %v4437
        %v4602 = vunpack.c.l.b16 %v4438
        %v4603 = vunpack.c.l.b16 %v4439
        %v4604 = vunpack.c.l.b16 %v4440
        %v4605 = vunpack.c.l.b16 %v4441
        %v4606 = vunpack.c.l.b16 %v4442
        %v4607 = vunpack.c.l.b16 %v4443
        %v4608 = vunpack.c.l.b16 %v4444
        %v4609 = vunpack.c.l.b16 %v4445
        %v4610 = vunpack.c.l.b16 %v4446
        %v4611 = vunpack.c.l.b16 %v4447
        %v4612 = vunpack.c.l.b16 %v4448
        %v4613 = vunpack.c.l.b16 %v4449
        %v4614 = vpack.c.b16 %v4597, %v4596
        %v4615 = vpack.c.b16 %v4599, %v4598
        %v4616 = vpack.c.b16 %v4601, %v4600
        %v4617 = vpack.c.b16 %v4603, %v4602
        %v4618 = vpack.c.b16 %v4605, %v4604
        %v4619 = vpack.c.b16 %v4607, %v4606
        %v4620 = vpack.c.b16 %v4609, %v4608
        %v4621 = vpack.c.b16 %v4611, %v4610
        %v4622 = vpack.c.b16 %v4613, %v4612
        %v4633 = vsel %vm2784, %v4576, 0
        %4635 = vmatprep.subr.bf16.mxu0 0
        %4636 = vmatpush1.bf16.msra.mxu0 %v4614
        %4637 = vmatprep.subr.bf16.mxu0 0
        %4638 = vmatpush1.bf16.msra.mxu0 %v4615
        %4639 = vmatprep.subr.bf16.mxu0 0
        %4640 = vmatpush1.bf16.msra.mxu0 %v4616
        %4641 = vmatprep.subr.bf16.mxu0 0
        %4642 = vmatpush1.bf16.msra.mxu0 %v4617
        %4643 = vmatprep.subr.bf16.mxu0 0
        %4644 = vmatpush1.bf16.msra.mxu0 %v4618
        %4645 = vmatprep.subr.bf16.mxu0 0
        %4646 = vmatpush1.bf16.msra.mxu0 %v4619
        %4647 = vmatprep.subr.bf16.mxu0 0
        %4648 = vmatpush1.bf16.msra.mxu0 %v4620
        %4649 = vmatprep.subr.bf16.mxu0 0
        %4650 = vmatpush1.bf16.msra.mxu0 %v4621
        %4651 = vmatprep.subr.bf16.mxu0 0
        %4652 = vmatpush1.bf16.msra.mxu0 %v4622
        %4653 = vmatprep.subr.bf16.mxu0 0
        %4654 = vmatpush1.bf16.msra.mxu0 0
        %4655 = vmatprep.subr.bf16.mxu0 0
        %4656 = vmatpush1.bf16.msra.mxu0 0
        %4657 = vmatprep.subr.bf16.mxu0 0
        %4658 = vmatpush1.bf16.msra.mxu0 0
        %4659 = vmatprep.subr.bf16.mxu0 0
        %4660 = vmatpush1.bf16.msra.mxu0 0
        %4661 = vmatprep.subr.bf16.mxu0 0
        %4662 = vmatpush1.bf16.msra.mxu0 0
        %4663 = vmatprep.subr.bf16.mxu0 0
        %4664 = vmatpush1.bf16.msra.mxu0 0
        %4665 = vmatprep.subr.bf16.mxu0 0
        %4666 = vmatpush1.bf16.msra.mxu0 0
        %4667 = vmatprep.mubr.bf16.mxu0 %v4633
        %4668 = vmatmul.mubr.bf16.gmra.mrb[0].mxu0 %v4575
        %v4669 = vpop.f32.mrb[0].mxu0
        %v4670 = vadd.f32 %v4454, %v4669
        %v4671 = vpop.f32.mrb[0].mxu0
        %v4672 = vpop.f32.mrb[0].mxu0
        %v4673 = vadd.f32 %v4454, %v4672
        %v4674 = vpop.f32.mrb[0].mxu0
        %4675 = vdwg.mxu0
        %v4676 = vmul.f32 %v4670, 0.2
        %v4677 = vmul.f32 %v4673, 0.2
        %v4678 = vmax.f32 %v4670, %v4676
        %v4679 = vmax.f32 %v4673, %v4677
        %v4680 = vld [vmem:[%s4 + $0x1] sm:$0x1]
        %v4681 = vlaneseq
        %v4682 = vshrl.u32 %v4681, 7
        %v4683 = vsub.s32 0, %v4682
        %v4684 = vrot.slane %v4680, %v4683
        %v4685 = vmul.f32 %v4678, %v4684
        %v4686 = vmul.f32 %v4679, %v4684
        %v4687 = vld [vmem:[%s4 + $0x2] sm:$0x1]
        %v4688 = vlaneseq
        %v4689 = vshrl.u32 %v4688, 7
        %v4690 = vsub.s32 0, %v4689
        %v4691 = vrot.slane %v4687, %v4690
        %v4692 = vadd.f32 %v4685, %v4691
        %v4693 = vadd.f32 %v4686, %v4691
        %v4696 = vcombine.high %v4692, %v4692
        %v4698 = vunpack.c.l.s4 1966171168
        %v4699 = vunpack.c.0.s8 %v4698
        %v4700 = vlaneseq
        %v4701 = vshrl.u32 %v4700, 7
        %v4702 = vsub.s32 %v4699, %v4701
        %v4703 = vrot.slane %v4692, %v4702
        %v4705 = vunpack.c.l.s4 1966171168
        %v4706 = vunpack.c.0.s8 %v4705
        %v4707 = vlaneseq
        %v4708 = vshrl.u32 %v4707, 7
        %v4709 = vsub.s32 %v4706, %v4708
        %v4710 = vrot.slane %v4696, %v4709
        %v4711 = vcombine.high %v4703, %v4703
        %v4712 = vcombine.high %v4710, %v4710
        %v4714 = vunpack.c.l.s4 1966171168
        %v4715 = vunpack.c.0.s8 %v4714
        %v4716 = vlaneseq
        %v4717 = vshrl.u32 %v4716, 7
        %v4718 = vsub.s32 %v4715, %v4717
        %v4719 = vrot.slane %v4703, %v4718
        %v4721 = vunpack.c.l.s4 1966171168
        %v4722 = vunpack.c.0.s8 %v4721
        %v4723 = vlaneseq
        %v4724 = vshrl.u32 %v4723, 7
        %v4725 = vsub.s32 %v4722, %v4724
        %v4726 = vrot.slane %v4710, %v4725
        %v4728 = vunpack.c.l.s4 1966171168
        %v4729 = vunpack.c.0.s8 %v4728
        %v4730 = vlaneseq
        %v4731 = vshrl.u32 %v4730, 7
        %v4732 = vsub.s32 %v4729, %v4731
        %v4733 = vrot.slane %v4711, %v4732
        %v4735 = vunpack.c.l.s4 1966171168
        %v4736 = vunpack.c.0.s8 %v4735
        %v4737 = vlaneseq
        %v4738 = vshrl.u32 %v4737, 7
        %v4739 = vsub.s32 %v4736, %v4738
        %v4740 = vrot.slane %v4712, %v4739
        %v4741 = vcombine.high %v4719, %v4719
        %v4742 = vcombine.high %v4726, %v4726
        %v4743 = vcombine.high %v4733, %v4733
        %v4744 = vcombine.high %v4740, %v4740
        %v4745 = vcombine.high %v4693, %v4693
        %v4747 = vunpack.c.l.s4 1966171168
        %v4748 = vunpack.c.0.s8 %v4747
        %v4749 = vlaneseq
        %v4750 = vshrl.u32 %v4749, 7
        %v4751 = vsub.s32 %v4748, %v4750
        %v4752 = vrot.slane %v4693, %v4751
        %v4754 = vunpack.c.l.s4 1966171168
        %v4755 = vunpack.c.0.s8 %v4754
        %v4756 = vlaneseq
        %v4757 = vshrl.u32 %v4756, 7
        %v4758 = vsub.s32 %v4755, %v4757
        %v4759 = vrot.slane %v4745, %v4758
        %v4760 = vcombine.high %v4752, %v4752
        %v4761 = vcombine.high %v4759, %v4759
        %v4763 = vunpack.c.l.s4 1966171168
        %v4764 = vunpack.c.0.s8 %v4763
        %v4765 = vlaneseq
        %v4766 = vshrl.u32 %v4765, 7
        %v4767 = vsub.s32 %v4764, %v4766
        %v4768 = vrot.slane %v4752, %v4767
        %v4770 = vunpack.c.l.s4 1966171168
        %v4771 = vunpack.c.0.s8 %v4770
        %v4772 = vlaneseq
        %v4773 = vshrl.u32 %v4772, 7
        %v4774 = vsub.s32 %v4771, %v4773
        %v4775 = vrot.slane %v4759, %v4774
        %v4777 = vunpack.c.l.s4 1966171168
        %v4778 = vunpack.c.0.s8 %v4777
        %v4779 = vlaneseq
        %v4780 = vshrl.u32 %v4779, 7
        %v4781 = vsub.s32 %v4778, %v4780
        %v4782 = vrot.slane %v4760, %v4781
        %v4784 = vunpack.c.l.s4 1966171168
        %v4785 = vunpack.c.0.s8 %v4784
        %v4786 = vlaneseq
        %v4787 = vshrl.u32 %v4786, 7
        %v4788 = vsub.s32 %v4785, %v4787
        %v4789 = vrot.slane %v4761, %v4788
        %v4790 = vcombine.high %v4768, %v4768
        %v4791 = vcombine.high %v4775, %v4775
        %v4792 = vcombine.high %v4782, %v4782
        %v4793 = vcombine.high %v4789, %v4789
        %4802 = vrot.lane.b32.xlu0 %v4726, 32
        %v4803 = vpop.permute.xlu0 %4802
        %4804 = vrot.lane.b32.xlu0 %v4742, 32
        %v4805 = vpop.permute.xlu0 %4804
        %4808 = vrot.lane.b32.xlu0 0.0, 64
        %v4809 = vpop.permute.xlu0 %4808
        %4810 = vrot.lane.b32.xlu0 %v4740, 64
        %v4811 = vpop.permute.xlu0 %4810
        %4812 = vrot.lane.b32.xlu0 %v4744, 64
        %v4813 = vpop.permute.xlu0 %4812
        %4817 = vrot.lane.b32.xlu0 %v4733, 96
        %v4818 = vpop.permute.xlu0 %4817
        %4819 = vrot.lane.b32.xlu0 %v4782, 96
        %v4820 = vpop.permute.xlu0 %4819
        %4823 = vrot.lane.b32.xlu0 %v4733, 32
        %v4824 = vpop.permute.xlu0 %4823
        %4825 = vrot.lane.b32.xlu0 %v4743, 32
        %v4826 = vpop.permute.xlu0 %4825
        %4827 = vrot.lane.b32.xlu0 %v4782, 32
        %v4828 = vpop.permute.xlu0 %4827
        %4829 = vrot.lane.b32.xlu0 %v4792, 32
        %v4830 = vpop.permute.xlu0 %4829
        %4835 = vrot.lane.b32.xlu0 %v4789, 64
        %v4836 = vpop.permute.xlu0 %4835
        %4838 = vrot.lane.b32.xlu0 %v4726, 96
        %v4839 = vpop.permute.xlu0 %4838
        %4840 = vrot.lane.b32.xlu0 %v4742, 96
        %v4841 = vpop.permute.xlu0 %4840
        %4842 = vrot.lane.b32.xlu0 %v4775, 96
        %v4843 = vpop.permute.xlu0 %4842
        %4844 = vrot.lane.b32.xlu0 %v4791, 96
        %v4845 = vpop.permute.xlu0 %4844
        %v4850 = vsel %vm3044, 0.0, %v4029
        %v4851 = vsel %vm3044, 0.0, %v4803
        %v4852 = vsel %vm3044, %v4740, %v4805
        %v4853 = vsel %vm4332, %v4850, %v4809
        %v4854 = vsel %vm4332, %v4851, %v4811
        %v4855 = vsel %vm4332, %v4852, %v4813
        %v4856 = vsel %vm4366, %v4853, %v4203
        %v4857 = vsel %vm4366, %v4853, %v4818
        %v4858 = vsel %vm4366, %v4854, %v4203
        %v4859 = vsel %vm4366, %v4855, %v4820
        %v4860 = vsel %vm3044, %v4719, %v4824
        %v4861 = vsel %vm3044, %v4741, %v4826
        %v4862 = vsel %vm3044, %v4768, %v4828
        %v4863 = vsel %vm3044, %v4790, %v4830
        %v4864 = vsel %vm4332, %v4860, %v4809
        %v4865 = vsel %vm4332, %v4861, %v4811
        %v4866 = vsel %vm4332, %v4862, %v4809
        %v4867 = vsel %vm4332, %v4863, %v4836
        %v4868 = vsel %vm4366, %v4864, %v4839
        %v4869 = vsel %vm4366, %v4865, %v4841
        %v4870 = vsel %vm4366, %v4866, %v4843
        %v4871 = vsel %vm4366, %v4867, %v4845
        %v4872 = vpack.c.bf16 %v4856, %v4856
        %v4873 = vpack.c.bf16 %v4868, %v4868
        %v4874 = vpack.c.bf16 %v4740, %v4740
        %v4875 = vpack.c.bf16 %v4857, %v4857
        %v4876 = vpack.c.bf16 %v4869, %v4869
        %v4877 = vpack.c.bf16 %v4744, %v4744
        %v4878 = vpack.c.bf16 %v4858, %v4858
        %v4879 = vpack.c.bf16 %v4870, %v4870
        %v4880 = vpack.c.bf16 %v4789, %v4789
        %v4881 = vpack.c.bf16 %v4859, %v4859
        %v4882 = vpack.c.bf16 %v4871, %v4871
        %v4883 = vpack.c.bf16 %v4793, %v4793
        %v4884 = vld [vmem:[%s5] sm:$0xf]
        %v4885 = vld [vmem:[%s5 + $0x4] sm:$0xf]
        %v4886 = vld [vmem:[%s5 + $0x8] sm:$0xf]
        %v4887 = vld [vmem:[%s5 + $0xc] sm:$0xf]
        %v4888 = vld [vmem:[%s5 + $0x10] sm:$0xf]
        %v4889 = vld [vmem:[%s5 + $0x14] sm:$0xf]
        %v4890 = vld [vmem:[%s5 + $0x18] sm:$0xf]
        %v4891 = vld [vmem:[%s5 + $0x1c] sm:$0xf]
        %v4892 = vld [vmem:[%s5 + $0x20] sm:$0xf]
        %v4893 = vld [vmem:[%s5 + $0x24] sm:$0xf]
        %v4894 = vld [vmem:[%s5 + $0x28] sm:$0xf]
        %v4895 = vld [vmem:[%s5 + $0x2c] sm:$0xf]
        %v4896 = vld [vmem:[%s5 + $0x30] sm:$0xf]
        %v4897 = vld [vmem:[%s5 + $0x34] sm:$0xf]
        %v4898 = vld [vmem:[%s5 + $0x38] sm:$0xf]
        %v4899 = vld [vmem:[%s5 + $0x3c] sm:$0xf]
        %v4900 = vld [vmem:[%s5 + $0x40] sm:$0xf]
        %v4901 = vld [vmem:[%s5 + $0x44] sm:$0xf]
        %v4902 = vld [vmem:[%s5 + $0x48] sm:$0xf]
        %v4903 = vld [vmem:[%s5 + $0x4c] sm:$0xf]
        %v4904 = vld [vmem:[%s5 + $0x50] sm:$0xf]
        %v4905 = vld [vmem:[%s5 + $0x54] sm:$0xf]
        %v4906 = vld [vmem:[%s5 + $0x58] sm:$0xf]
        %v4907 = vld [vmem:[%s5 + $0x5c] sm:$0xf]
        %v4908 = vld [vmem:[%s5 + $0x60] sm:$0xf]
        %v4909 = vld [vmem:[%s5 + $0x64] sm:$0xf]
        %v4910 = vld [vmem:[%s5 + $0x68] sm:$0xf]
        %v4911 = vld [vmem:[%s5 + $0x6c] sm:$0xf]
        %v4912 = vld [vmem:[%s5 + $0x70] sm:$0xf]
        %v4913 = vld [vmem:[%s5 + $0x74] sm:$0xf]
        %v4914 = vld [vmem:[%s5 + $0x78] sm:$0xf]
        %v4915 = vld [vmem:[%s5 + $0x7c] sm:$0xf]
        %v4916 = vld [vmem:[%s5 + $0x80] sm:$0xf]
        %v4917 = vld [vmem:[%s5 + $0x84] sm:$0xf]
        %v4918 = vld [vmem:[%s5 + $0x88] sm:$0xf]
        %v4919 = vld [vmem:[%s5 + $0x8c] sm:$0xf]
        %v4920 = vld [vmem:[%s6] sm:$0x1]
        %v4921 = vlaneseq
        %v4922 = vshrl.u32 %v4921, 7
        %v4923 = vsub.s32 0, %v4922
        %v4924 = vrot.slane %v4920, %v4923
        %v4937 = vunpack.c.l.b16 %v4872
        %v4938 = vunpack.c.l.b16 %v4873
        %v4939 = vunpack.c.l.b16 %v4874
        %v4940 = vunpack.c.l.b16 %v4875
        %v4941 = vunpack.c.l.b16 %v4876
        %v4942 = vunpack.c.l.b16 %v4877
        %v4943 = vunpack.c.l.b16 %v4878
        %v4944 = vunpack.c.l.b16 %v4879
        %v4945 = vunpack.c.l.b16 %v4880
        %v4946 = vunpack.c.l.b16 %v4881
        %v4947 = vunpack.c.l.b16 %v4882
        %v4948 = vunpack.c.l.b16 %v4883
        %v4949 = vrot.slane %v4940, 7
        %v4950 = vsel %vm3312, %v4949, %v4937
        %v4951 = vrot.slane %v4943, 6
        %v4952 = vsel %vm3315, %v4951, %v4950
        %v4953 = vrot.slane %v4946, 5
        %v4954 = vsel %vm3318, %v4953, %v4952
        %v4955 = vrot.slane %v4941, 7
        %v4956 = vsel %vm3312, %v4955, %v4938
        %v4957 = vrot.slane %v4944, 6
        %v4958 = vsel %vm3315, %v4957, %v4956
        %v4959 = vrot.slane %v4947, 5
        %v4960 = vsel %vm3318, %v4959, %v4958
        %v4961 = vrot.slane %v4942, 7
        %v4962 = vsel %vm3312, %v4961, %v4939
        %v4963 = vrot.slane %v4945, 6
        %v4964 = vsel %vm3315, %v4963, %v4962
        %v4965 = vrot.slane %v4948, 5
        %v4966 = vsel %vm3318, %v4965, %v4964
        %v4967 = vpack.c.b16 %v4954, %v4954
        %v4968 = vpack.c.b16 %v4960, %v4960
        %v4969 = vpack.c.b16 %v4966, %v4966
        %v5008 = vunpack.c.l.b16 %v4884
        %v5009 = vunpack.c.l.b16 %v4885
        %v5010 = vunpack.c.l.b16 %v4886
        %v5011 = vunpack.c.l.b16 %v4887
        %v5012 = vunpack.c.l.b16 %v4888
        %v5013 = vunpack.c.l.b16 %v4889
        %v5014 = vunpack.c.l.b16 %v4890
        %v5015 = vunpack.c.l.b16 %v4891
        %v5016 = vunpack.c.l.b16 %v4892
        %v5017 = vunpack.c.l.b16 %v4893
        %v5018 = vunpack.c.l.b16 %v4894
        %v5019 = vunpack.c.l.b16 %v4895
        %v5020 = vunpack.c.l.b16 %v4896
        %v5021 = vunpack.c.l.b16 %v4897
        %v5022 = vunpack.c.l.b16 %v4898
        %v5023 = vunpack.c.l.b16 %v4899
        %v5024 = vunpack.c.l.b16 %v4900
        %v5025 = vunpack.c.l.b16 %v4901
        %v5026 = vunpack.c.l.b16 %v4902
        %v5027 = vunpack.c.l.b16 %v4903
        %v5028 = vunpack.c.l.b16 %v4904
        %v5029 = vunpack.c.l.b16 %v4905
        %v5030 = vunpack.c.l.b16 %v4906
        %v5031 = vunpack.c.l.b16 %v4907
        %v5032 = vunpack.c.l.b16 %v4908
        %v5033 = vunpack.c.l.b16 %v4909
        %v5034 = vunpack.c.l.b16 %v4910
        %v5035 = vunpack.c.l.b16 %v4911
        %v5036 = vunpack.c.l.b16 %v4912
        %v5037 = vunpack.c.l.b16 %v4913
        %v5038 = vunpack.c.l.b16 %v4914
        %v5039 = vunpack.c.l.b16 %v4915
        %v5040 = vunpack.c.l.b16 %v4916
        %v5041 = vunpack.c.l.b16 %v4917
        %v5042 = vunpack.c.l.b16 %v4918
        %v5043 = vunpack.c.l.b16 %v4919
        %v5044 = vpack.c.b16 %v5009, %v5008
        %v5045 = vpack.c.b16 %v5011, %v5010
        %v5046 = vpack.c.b16 %v5013, %v5012
        %v5047 = vpack.c.b16 %v5015, %v5014
        %v5048 = vpack.c.b16 %v5017, %v5016
        %v5049 = vpack.c.b16 %v5019, %v5018
        %v5050 = vpack.c.b16 %v5021, %v5020
        %v5051 = vpack.c.b16 %v5023, %v5022
        %v5052 = vpack.c.b16 %v5025, %v5024
        %v5053 = vpack.c.b16 %v5027, %v5026
        %v5054 = vpack.c.b16 %v5029, %v5028
        %v5055 = vpack.c.b16 %v5031, %v5030
        %v5056 = vpack.c.b16 %v5033, %v5032
        %v5057 = vpack.c.b16 %v5035, %v5034
        %v5058 = vpack.c.b16 %v5037, %v5036
        %v5059 = vpack.c.b16 %v5039, %v5038
        %v5060 = vpack.c.b16 %v5041, %v5040
        %v5061 = vpack.c.b16 %v5043, %v5042
        %v5081 = vsel %vm3044, %v4969, 0
        %5083 = vmatprep.subr.bf16.mxu0 0
        %5084 = vmatpush1.bf16.msra.mxu0 %v5044
        %5085 = vmatprep.subr.bf16.mxu0 0
        %5086 = vmatpush1.bf16.msra.mxu0 %v5045
        %5087 = vmatprep.subr.bf16.mxu0 0
        %5088 = vmatpush1.bf16.msra.mxu0 %v5046
        %5089 = vmatprep.subr.bf16.mxu0 0
        %5090 = vmatpush1.bf16.msra.mxu0 %v5047
        %5091 = vmatprep.subr.bf16.mxu0 0
        %5092 = vmatpush1.bf16.msra.mxu0 %v5048
        %5093 = vmatprep.subr.bf16.mxu0 0
        %5094 = vmatpush1.bf16.msra.mxu0 %v5049
        %5095 = vmatprep.subr.bf16.mxu0 0
        %5096 = vmatpush1.bf16.msra.mxu0 %v5050
        %5097 = vmatprep.subr.bf16.mxu0 0
        %5098 = vmatpush1.bf16.msra.mxu0 %v5051
        %5099 = vmatprep.subr.bf16.mxu0 0
        %5100 = vmatpush1.bf16.msra.mxu0 %v5052
        %5101 = vmatprep.subr.bf16.mxu0 0
        %5102 = vmatpush1.bf16.msra.mxu0 %v5053
        %5103 = vmatprep.subr.bf16.mxu0 0
        %5104 = vmatpush1.bf16.msra.mxu0 %v5054
        %5105 = vmatprep.subr.bf16.mxu0 0
        %5106 = vmatpush1.bf16.msra.mxu0 %v5055
        %5107 = vmatprep.subr.bf16.mxu0 0
        %5108 = vmatpush1.bf16.msra.mxu0 %v5056
        %5109 = vmatprep.subr.bf16.mxu0 0
        %5110 = vmatpush1.bf16.msra.mxu0 %v5057
        %5111 = vmatprep.subr.bf16.mxu0 0
        %5112 = vmatpush1.bf16.msra.mxu0 %v5058
        %5113 = vmatprep.subr.bf16.mxu0 0
        %5114 = vmatpush1.bf16.msra.mxu0 %v5059
        %5115 = vmatprep.mubr.bf16.mxu0 %v4968
        %5116 = vmatmul.mubr.bf16.gmra.mrb[0].mxu0 %v4967
        %v5117 = vpop.f32.mrb[0].mxu0
        %v5118 = vadd.f32 %v4924, %v5117
        %v5119 = vpop.f32.mrb[0].mxu0
        %v5120 = vpop.f32.mrb[0].mxu0
        %v5121 = vpop.f32.mrb[0].mxu0
        %5122 = vdwg.mxu0
        %5123 = vmatprep.subr.bf16.mxu0 0
        %5124 = vmatpush1.bf16.msra.mxu0 %v5060
        %5125 = vmatprep.subr.bf16.mxu0 0
        %5126 = vmatpush1.bf16.msra.mxu0 %v5061
        %5127 = vmatprep.subr.bf16.mxu0 0
        %5128 = vmatpush1.bf16.msra.mxu0 0
        %5129 = vmatprep.subr.bf16.mxu0 0
        %5130 = vmatpush1.bf16.msra.mxu0 0
        %5131 = vmatprep.subr.bf16.mxu0 0
        %5132 = vmatpush1.bf16.msra.mxu0 0
        %5133 = vmatprep.subr.bf16.mxu0 0
        %5134 = vmatpush1.bf16.msra.mxu0 0
        %5135 = vmatprep.subr.bf16.mxu0 0
        %5136 = vmatpush1.bf16.msra.mxu0 0
        %5137 = vmatprep.subr.bf16.mxu0 0
        %5138 = vmatpush1.bf16.msra.mxu0 0
        %5139 = vmatprep.subr.bf16.mxu0 0
        %5140 = vmatpush1.bf16.msra.mxu0 0
        %5141 = vmatprep.subr.bf16.mxu0 0
        %5142 = vmatpush1.bf16.msra.mxu0 0
        %5143 = vmatprep.subr.bf16.mxu0 0
        %5144 = vmatpush1.bf16.msra.mxu0 0
        %5145 = vmatprep.subr.bf16.mxu0 0
        %5146 = vmatpush1.bf16.msra.mxu0 0
        %5147 = vmatprep.subr.bf16.mxu0 0
        %5148 = vmatpush1.bf16.msra.mxu0 0
        %5149 = vmatprep.subr.bf16.mxu0 0
        %5150 = vmatpush1.bf16.msra.mxu0 0
        %5151 = vmatprep.subr.bf16.mxu0 0
        %5152 = vmatpush1.bf16.msra.mxu0 0
        %5153 = vmatprep.subr.bf16.mxu0 0
        %5154 = vmatpush1.bf16.msra.mxu0 0
        %5155 = vmatprep.mubr.bf16.mxu0 0
        %5156 = vmatmul.mubr.bf16.gmra.mrb[0].mxu0 %v5081
        %v5157 = vpop.f32.mrb[0].mxu0
        %v5158 = vadd.f32 %v5118, %v5157
        %v5159 = vpop.f32.mrb[0].mxu0
        %v5160 = vpop.f32.mrb[0].mxu0
        %v5161 = vpop.f32.mrb[0].mxu0
        %5162 = vdwg.mxu0
        %v5163 = vmul.f32 %v5158, 0.2
        %v5164 = vmax.f32 %v5158, %v5163
        %v5165 = vld [vmem:[%s6 + $0x1] sm:$0x1]
        %v5166 = vlaneseq
        %v5167 = vshrl.u32 %v5166, 7
        %v5168 = vsub.s32 0, %v5167
        %v5169 = vrot.slane %v5165, %v5168
        %v5170 = vmul.f32 %v5164, %v5169
        %v5171 = vld [vmem:[%s6 + $0x2] sm:$0x1]
        %v5172 = vlaneseq
        %v5173 = vshrl.u32 %v5172, 7
        %v5174 = vsub.s32 0, %v5173
        %v5175 = vrot.slane %v5171, %v5174
        %v5176 = vadd.f32 %v5170, %v5175
        %v5179 = vunpack.c.l.s4 1966171168
        %v5180 = vunpack.c.0.s8 %v5179
        %v5181 = vlaneseq
        %v5182 = vshrl.u32 %v5181, 7
        %v5183 = vsub.s32 %v5180, %v5182
        %v5184 = vrot.slane %v5176, %v5183
        %v5185 = vcombine.high %v5184, %v5184
        %v5187 = vunpack.c.l.s4 1966171168
        %v5188 = vunpack.c.0.s8 %v5187
        %v5189 = vlaneseq
        %v5190 = vshrl.u32 %v5189, 7
        %v5191 = vsub.s32 %v5188, %v5190
        %v5192 = vrot.slane %v5184, %v5191
        %v5194 = vunpack.c.l.s4 1966171168
        %v5195 = vunpack.c.0.s8 %v5194
        %v5196 = vlaneseq
        %v5197 = vshrl.u32 %v5196, 7
        %v5198 = vsub.s32 %v5195, %v5197
        %v5199 = vrot.slane %v5185, %v5198
        %v5200 = vcombine.high %v5192, %v5192
        %v5201 = vcombine.high %v5199, %v5199
        %5204 = vrot.lane.b32.xlu0 %v5199, 64
        %v5205 = vpop.permute.xlu0 %5204
        %5207 = vrot.lane.b32.xlu0 %v5200, 64
        %v5208 = vpop.permute.xlu0 %5207
        %v5210 = vsel %vm4332, 0.0, %v4809
        %v5211 = vsel %vm4332, %v5192, %v5205
        %v5212 = vsel %vm4332, 0.0, %v5208
        %v5213 = vpack.c.bf16 %v5210, %v5210
        %v5214 = vpack.c.bf16 %v5211, %v5211
        %v5215 = vpack.c.bf16 %v5212, %v5212
        %v5216 = vpack.c.bf16 %v5201, %v5201
        %v5217 = vld [vmem:[%s7] sm:$0xf]
        %v5218 = vld [vmem:[%s7 + $0x4] sm:$0xf]
        %v5219 = vld [vmem:[%s7 + $0x8] sm:$0xf]
        %v5220 = vld [vmem:[%s7 + $0xc] sm:$0xf]
        %v5221 = vld [vmem:[%s7 + $0x10] sm:$0xf]
        %v5222 = vld [vmem:[%s7 + $0x14] sm:$0xf]
        %v5223 = vld [vmem:[%s7 + $0x18] sm:$0xf]
        %v5224 = vld [vmem:[%s7 + $0x1c] sm:$0xf]
        %v5225 = vld [vmem:[%s7 + $0x20] sm:$0xf]
        %v5226 = vld [vmem:[%s7 + $0x24] sm:$0xf]
        %v5227 = vld [vmem:[%s7 + $0x28] sm:$0xf]
        %v5228 = vld [vmem:[%s7 + $0x2c] sm:$0xf]
        %v5229 = vld [vmem:[%s7 + $0x30] sm:$0xf]
        %v5230 = vld [vmem:[%s7 + $0x34] sm:$0xf]
        %v5231 = vld [vmem:[%s7 + $0x38] sm:$0xf]
        %v5232 = vld [vmem:[%s7 + $0x3c] sm:$0xf]
        %v5233 = vld [vmem:[%s7 + $0x40] sm:$0xf]
        %v5234 = vld [vmem:[%s7 + $0x44] sm:$0xf]
        %v5235 = vld [vmem:[%s7 + $0x48] sm:$0xf]
        %v5236 = vld [vmem:[%s7 + $0x4c] sm:$0xf]
        %v5237 = vld [vmem:[%s7 + $0x50] sm:$0xf]
        %v5238 = vld [vmem:[%s7 + $0x54] sm:$0xf]
        %v5239 = vld [vmem:[%s7 + $0x58] sm:$0xf]
        %v5240 = vld [vmem:[%s7 + $0x5c] sm:$0xf]
        %v5241 = vld [vmem:[%s7 + $0x60] sm:$0xf]
        %v5242 = vld [vmem:[%s7 + $0x64] sm:$0xf]
        %v5243 = vld [vmem:[%s7 + $0x68] sm:$0xf]
        %v5244 = vld [vmem:[%s7 + $0x6c] sm:$0xf]
        %v5245 = vld [vmem:[%s7 + $0x70] sm:$0xf]
        %v5246 = vld [vmem:[%s7 + $0x74] sm:$0xf]
        %v5247 = vld [vmem:[%s7 + $0x78] sm:$0xf]
        %v5248 = vld [vmem:[%s7 + $0x7c] sm:$0xf]
        %v5249 = vld [vmem:[%s7 + $0x80] sm:$0xf]
        %v5250 = vld [vmem:[%s7 + $0x84] sm:$0xf]
        %v5251 = vld [vmem:[%s7 + $0x88] sm:$0xf]
        %v5252 = vld [vmem:[%s7 + $0x8c] sm:$0xf]
        %v5253 = vld [vmem:[%s7 + $0x90] sm:$0xf]
        %v5254 = vld [vmem:[%s7 + $0x94] sm:$0xf]
        %v5255 = vld [vmem:[%s7 + $0x98] sm:$0xf]
        %v5256 = vld [vmem:[%s7 + $0x9c] sm:$0xf]
        %v5257 = vld [vmem:[%s7 + $0xa0] sm:$0xf]
        %v5258 = vld [vmem:[%s7 + $0xa4] sm:$0xf]
        %v5259 = vld [vmem:[%s7 + $0xa8] sm:$0xf]
        %v5260 = vld [vmem:[%s7 + $0xac] sm:$0xf]
        %v5261 = vld [vmem:[%s7 + $0xb0] sm:$0xf]
        %v5262 = vld [vmem:[%s7 + $0xb4] sm:$0xf]
        %v5263 = vld [vmem:[%s7 + $0xb8] sm:$0xf]
        %v5264 = vld [vmem:[%s7 + $0xbc] sm:$0xf]
        %v5265 = vld [vmem:[%s7 + $0xc0] sm:$0xf]
        %v5266 = vld [vmem:[%s7 + $0xc4] sm:$0xf]
        %v5267 = vld [vmem:[%s7 + $0xc8] sm:$0xf]
        %v5268 = vld [vmem:[%s7 + $0xcc] sm:$0xf]
        %v5269 = vld [vmem:[%s7 + $0xd0] sm:$0xf]
        %v5270 = vld [vmem:[%s7 + $0xd4] sm:$0xf]
        %v5271 = vld [vmem:[%s7 + $0xd8] sm:$0xf]
        %v5272 = vld [vmem:[%s7 + $0xdc] sm:$0xf]
        %v5273 = vld [vmem:[%s7 + $0xe0] sm:$0xf]
        %v5274 = vld [vmem:[%s7 + $0xe4] sm:$0xf]
        %v5275 = vld [vmem:[%s7 + $0xe8] sm:$0xf]
        %v5276 = vld [vmem:[%s7 + $0xec] sm:$0xf]
        %v5277 = vld [vmem:[%s7 + $0xf0] sm:$0xf]
        %v5278 = vld [vmem:[%s7 + $0xf4] sm:$0xf]
        %v5279 = vld [vmem:[%s7 + $0xf8] sm:$0xf]
        %v5280 = vld [vmem:[%s7 + $0xfc] sm:$0xf]
        %v5281 = vld [vmem:[%s7 + $0x100] sm:$0xf]
        %v5282 = vld [vmem:[%s7 + $0x104] sm:$0xf]
        %v5283 = vld [vmem:[%s7 + $0x108] sm:$0xf]
        %v5284 = vld [vmem:[%s7 + $0x10c] sm:$0xf]
        %v5285 = vld [vmem:[%s7 + $0x110] sm:$0xf]
        %v5286 = vld [vmem:[%s7 + $0x114] sm:$0xf]
        %v5287 = vld [vmem:[%s7 + $0x118] sm:$0xf]
        %v5288 = vld [vmem:[%s7 + $0x11c] sm:$0xf]
        %v5289 = vld [vmem:[%s8] sm:$0x1]
        %v5362 = vunpack.c.l.b16 %v5217
        %v5363 = vunpack.c.l.b16 %v5218
        %v5364 = vunpack.c.l.b16 %v5219
        %v5365 = vunpack.c.l.b16 %v5220
        %v5366 = vunpack.c.l.b16 %v5221
        %v5367 = vunpack.c.l.b16 %v5222
        %v5368 = vunpack.c.l.b16 %v5223
        %v5369 = vunpack.c.l.b16 %v5224
        %v5370 = vunpack.c.l.b16 %v5225
        %v5371 = vunpack.c.l.b16 %v5226
        %v5372 = vunpack.c.l.b16 %v5227
        %v5373 = vunpack.c.l.b16 %v5228
        %v5374 = vunpack.c.l.b16 %v5229
        %v5375 = vunpack.c.l.b16 %v5230
        %v5376 = vunpack.c.l.b16 %v5231
        %v5377 = vunpack.c.l.b16 %v5232
        %v5378 = vunpack.c.l.b16 %v5233
        %v5379 = vunpack.c.l.b16 %v5234
        %v5380 = vunpack.c.l.b16 %v5235
        %v5381 = vunpack.c.l.b16 %v5236
        %v5382 = vunpack.c.l.b16 %v5237
        %v5383 = vunpack.c.l.b16 %v5238
        %v5384 = vunpack.c.l.b16 %v5239
        %v5385 = vunpack.c.l.b16 %v5240
        %v5386 = vunpack.c.l.b16 %v5241
        %v5387 = vunpack.c.l.b16 %v5242
        %v5388 = vunpack.c.l.b16 %v5243
        %v5389 = vunpack.c.l.b16 %v5244
        %v5390 = vunpack.c.l.b16 %v5245
        %v5391 = vunpack.c.l.b16 %v5246
        %v5392 = vunpack.c.l.b16 %v5247
        %v5393 = vunpack.c.l.b16 %v5248
        %v5394 = vunpack.c.l.b16 %v5249
        %v5395 = vunpack.c.l.b16 %v5250
        %v5396 = vunpack.c.l.b16 %v5251
        %v5397 = vunpack.c.l.b16 %v5252
        %v5398 = vunpack.c.l.b16 %v5253
        %v5399 = vunpack.c.l.b16 %v5254
        %v5400 = vunpack.c.l.b16 %v5255
        %v5401 = vunpack.c.l.b16 %v5256
        %v5402 = vunpack.c.l.b16 %v5257
        %v5403 = vunpack.c.l.b16 %v5258
        %v5404 = vunpack.c.l.b16 %v5259
        %v5405 = vunpack.c.l.b16 %v5260
        %v5406 = vunpack.c.l.b16 %v5261
        %v5407 = vunpack.c.l.b16 %v5262
        %v5408 = vunpack.c.l.b16 %v5263
        %v5409 = vunpack.c.l.b16 %v5264
        %v5410 = vunpack.c.l.b16 %v5265
        %v5411 = vunpack.c.l.b16 %v5266
        %v5412 = vunpack.c.l.b16 %v5267
        %v5413 = vunpack.c.l.b16 %v5268
        %v5414 = vunpack.c.l.b16 %v5269
        %v5415 = vunpack.c.l.b16 %v5270
        %v5416 = vunpack.c.l.b16 %v5271
        %v5417 = vunpack.c.l.b16 %v5272
        %v5418 = vunpack.c.l.b16 %v5273
        %v5419 = vunpack.c.l.b16 %v5274
        %v5420 = vunpack.c.l.b16 %v5275
        %v5421 = vunpack.c.l.b16 %v5276
        %v5422 = vunpack.c.l.b16 %v5277
        %v5423 = vunpack.c.l.b16 %v5278
        %v5424 = vunpack.c.l.b16 %v5279
        %v5425 = vunpack.c.l.b16 %v5280
        %v5426 = vunpack.c.l.b16 %v5281
        %v5427 = vunpack.c.l.b16 %v5282
        %v5428 = vunpack.c.l.b16 %v5283
        %v5429 = vunpack.c.l.b16 %v5284
        %v5430 = vunpack.c.l.b16 %v5285
        %v5431 = vunpack.c.l.b16 %v5286
        %v5432 = vunpack.c.l.b16 %v5287
        %v5433 = vunpack.c.l.b16 %v5288
        %v5434 = vpack.c.b16 %v5363, %v5362
        %v5435 = vpack.c.b16 %v5365, %v5364
        %v5436 = vpack.c.b16 %v5367, %v5366
        %v5437 = vpack.c.b16 %v5369, %v5368
        %v5438 = vpack.c.b16 %v5371, %v5370
        %v5439 = vpack.c.b16 %v5373, %v5372
        %v5440 = vpack.c.b16 %v5375, %v5374
        %v5441 = vpack.c.b16 %v5377, %v5376
        %v5442 = vpack.c.b16 %v5379, %v5378
        %v5443 = vpack.c.b16 %v5381, %v5380
        %v5444 = vpack.c.b16 %v5383, %v5382
        %v5445 = vpack.c.b16 %v5385, %v5384
        %v5446 = vpack.c.b16 %v5387, %v5386
        %v5447 = vpack.c.b16 %v5389, %v5388
        %v5448 = vpack.c.b16 %v5391, %v5390
        %v5449 = vpack.c.b16 %v5393, %v5392
        %v5450 = vpack.c.b16 %v5395, %v5394
        %v5451 = vpack.c.b16 %v5397, %v5396
        %v5452 = vpack.c.b16 %v5399, %v5398
        %v5453 = vpack.c.b16 %v5401, %v5400
        %v5454 = vpack.c.b16 %v5403, %v5402
        %v5455 = vpack.c.b16 %v5405, %v5404
        %v5456 = vpack.c.b16 %v5407, %v5406
        %v5457 = vpack.c.b16 %v5409, %v5408
        %v5458 = vpack.c.b16 %v5411, %v5410
        %v5459 = vpack.c.b16 %v5413, %v5412
        %v5460 = vpack.c.b16 %v5415, %v5414
        %v5461 = vpack.c.b16 %v5417, %v5416
        %v5462 = vpack.c.b16 %v5419, %v5418
        %v5463 = vpack.c.b16 %v5421, %v5420
        %v5464 = vpack.c.b16 %v5423, %v5422
        %v5465 = vpack.c.b16 %v5425, %v5424
        %v5466 = vpack.c.b16 %v5427, %v5426
        %v5467 = vpack.c.b16 %v5429, %v5428
        %v5468 = vpack.c.b16 %v5431, %v5430
        %v5469 = vpack.c.b16 %v5433, %v5432
        %v5507 = vsel %vm4332, %v5216, 0
        %5509 = vmatprep.subr.bf16.mxu0 0
        %5510 = vmatpush1.bf16.msra.mxu0 %v5434
        %5511 = vmatprep.subr.bf16.mxu0 0
        %5512 = vmatpush1.bf16.msra.mxu0 %v5435
        %5513 = vmatprep.subr.bf16.mxu0 0
        %5514 = vmatpush1.bf16.msra.mxu0 %v5436
        %5515 = vmatprep.subr.bf16.mxu0 0
        %5516 = vmatpush1.bf16.msra.mxu0 %v5437
        %5517 = vmatprep.subr.bf16.mxu0 0
        %5518 = vmatpush1.bf16.msra.mxu0 %v5438
        %5519 = vmatprep.subr.bf16.mxu0 0
        %5520 = vmatpush1.bf16.msra.mxu0 %v5439
        %5521 = vmatprep.subr.bf16.mxu0 0
        %5522 = vmatpush1.bf16.msra.mxu0 %v5440
        %5523 = vmatprep.subr.bf16.mxu0 0
        %5524 = vmatpush1.bf16.msra.mxu0 %v5441
        %5525 = vmatprep.subr.bf16.mxu0 0
        %5526 = vmatpush1.bf16.msra.mxu0 %v5442
        %5527 = vmatprep.subr.bf16.mxu0 0
        %5528 = vmatpush1.bf16.msra.mxu0 %v5443
        %5529 = vmatprep.subr.bf16.mxu0 0
        %5530 = vmatpush1.bf16.msra.mxu0 %v5444
        %5531 = vmatprep.subr.bf16.mxu0 0
        %5532 = vmatpush1.bf16.msra.mxu0 %v5445
        %5533 = vmatprep.subr.bf16.mxu0 0
        %5534 = vmatpush1.bf16.msra.mxu0 %v5446
        %5535 = vmatprep.subr.bf16.mxu0 0
        %5536 = vmatpush1.bf16.msra.mxu0 %v5447
        %5537 = vmatprep.subr.bf16.mxu0 0
        %5538 = vmatpush1.bf16.msra.mxu0 %v5448
        %5539 = vmatprep.subr.bf16.mxu0 0
        %5540 = vmatpush1.bf16.msra.mxu0 %v5449
        %5541 = vmatprep.mubr.bf16.mxu0 %v5213
        %5542 = vmatmul.mubr.bf16.gmra.mrb[0].mxu0 %v5213
        %v5543 = vpop.f32.mrb[0].mxu0
        %v5544 = vadd.f32 %v5289, %v5543
        %v5545 = vpop.f32.mrb[0].mxu0
        %v5546 = vpop.f32.mrb[0].mxu0
        %v5547 = vpop.f32.mrb[0].mxu0
        %5548 = vdwg.mxu0
        %5549 = vmatprep.subr.bf16.mxu0 0
        %5550 = vmatpush1.bf16.msra.mxu0 %v5450
        %5551 = vmatprep.subr.bf16.mxu0 0
        %5552 = vmatpush1.bf16.msra.mxu0 %v5451
        %5553 = vmatprep.subr.bf16.mxu0 0
        %5554 = vmatpush1.bf16.msra.mxu0 %v5452
        %5555 = vmatprep.subr.bf16.mxu0 0
        %5556 = vmatpush1.bf16.msra.mxu0 %v5453
        %5557 = vmatprep.subr.bf16.mxu0 0
        %5558 = vmatpush1.bf16.msra.mxu0 %v5454
        %5559 = vmatprep.subr.bf16.mxu0 0
        %5560 = vmatpush1.bf16.msra.mxu0 %v5455
        %5561 = vmatprep.subr.bf16.mxu0 0
        %5562 = vmatpush1.bf16.msra.mxu0 %v5456
        %5563 = vmatprep.subr.bf16.mxu0 0
        %5564 = vmatpush1.bf16.msra.mxu0 %v5457
        %5565 = vmatprep.subr.bf16.mxu0 0
        %5566 = vmatpush1.bf16.msra.mxu0 %v5458
        %5567 = vmatprep.subr.bf16.mxu0 0
        %5568 = vmatpush1.bf16.msra.mxu0 %v5459
        %5569 = vmatprep.subr.bf16.mxu0 0
        %5570 = vmatpush1.bf16.msra.mxu0 %v5460
        %5571 = vmatprep.subr.bf16.mxu0 0
        %5572 = vmatpush1.bf16.msra.mxu0 %v5461
        %5573 = vmatprep.subr.bf16.mxu0 0
        %5574 = vmatpush1.bf16.msra.mxu0 %v5462
        %5575 = vmatprep.subr.bf16.mxu0 0
        %5576 = vmatpush1.bf16.msra.mxu0 %v5463
        %5577 = vmatprep.subr.bf16.mxu0 0
        %5578 = vmatpush1.bf16.msra.mxu0 %v5464
        %5579 = vmatprep.subr.bf16.mxu0 0
        %5580 = vmatpush1.bf16.msra.mxu0 %v5465
        %5581 = vmatprep.mubr.bf16.mxu0 %v5215
        %5582 = vmatmul.mubr.bf16.gmra.mrb[0].mxu0 %v5214
        %v5583 = vpop.f32.mrb[0].mxu0
        %v5584 = vadd.f32 %v5544, %v5583
        %v5585 = vpop.f32.mrb[0].mxu0
        %v5586 = vpop.f32.mrb[0].mxu0
        %v5587 = vpop.f32.mrb[0].mxu0
        %5588 = vdwg.mxu0
        %5589 = vmatprep.subr.bf16.mxu0 0
        %5590 = vmatpush1.bf16.msra.mxu0 %v5466
        %5591 = vmatprep.subr.bf16.mxu0 0
        %5592 = vmatpush1.bf16.msra.mxu0 %v5467
        %5593 = vmatprep.subr.bf16.mxu0 0
        %5594 = vmatpush1.bf16.msra.mxu0 %v5468
        %5595 = vmatprep.subr.bf16.mxu0 0
        %5596 = vmatpush1.bf16.msra.mxu0 %v5469
        %5597 = vmatprep.subr.bf16.mxu0 0
        %5598 = vmatpush1.bf16.msra.mxu0 0
        %5599 = vmatprep.subr.bf16.mxu0 0
        %5600 = vmatpush1.bf16.msra.mxu0 0
        %5601 = vmatprep.subr.bf16.mxu0 0
        %5602 = vmatpush1.bf16.msra.mxu0 0
        %5603 = vmatprep.subr.bf16.mxu0 0
        %5604 = vmatpush1.bf16.msra.mxu0 0
        %5605 = vmatprep.subr.bf16.mxu0 0
        %5606 = vmatpush1.bf16.msra.mxu0 0
        %5607 = vmatprep.subr.bf16.mxu0 0
        %5608 = vmatpush1.bf16.msra.mxu0 0
        %5609 = vmatprep.subr.bf16.mxu0 0
        %5610 = vmatpush1.bf16.msra.mxu0 0
        %5611 = vmatprep.subr.bf16.mxu0 0
        %5612 = vmatpush1.bf16.msra.mxu0 0
        %5613 = vmatprep.subr.bf16.mxu0 0
        %5614 = vmatpush1.bf16.msra.mxu0 0
        %5615 = vmatprep.subr.bf16.mxu0 0
        %5616 = vmatpush1.bf16.msra.mxu0 0
        %5617 = vmatprep.subr.bf16.mxu0 0
        %5618 = vmatpush1.bf16.msra.mxu0 0
        %5619 = vmatprep.subr.bf16.mxu0 0
        %5620 = vmatpush1.bf16.msra.mxu0 0
        %5621 = vmatprep.mubr.bf16.mxu0 0
        %5622 = vmatmul.mubr.bf16.gmra.mrb[0].mxu0 %v5507
        %v5623 = vpop.f32.mrb[0].mxu0
        %v5624 = vadd.f32 %v5584, %v5623
        %v5625 = vpop.f32.mrb[0].mxu0
        %v5626 = vpop.f32.mrb[0].mxu0
        %v5627 = vpop.f32.mrb[0].mxu0
        %5628 = vdwg.mxu0
        %v5629 = vmul.f32 %v5624, 0.2
        %v5630 = vmax.f32 %v5624, %v5629
        %v5631 = vld [vmem:[%s8 + $0x1] sm:$0x1]
        %v5632 = vmul.f32 %v5630, %v5631
        %v5633 = vld [vmem:[%s8 + $0x2] sm:$0x1]
        %v5634 = vadd.f32 %v5632, %v5633
        %v5635 = vpack.c.bf16 %v5634, %v5634
        %v5636 = vld [vmem:[%s9] sm:$0xf]
        %v5637 = vld [vmem:[%s9 + $0x4] sm:$0xf]
        %v5638 = vld [vmem:[%s9 + $0x8] sm:$0xf]
        %v5639 = vld [vmem:[%s9 + $0xc] sm:$0xf]
        %v5640 = vld [vmem:[%s9 + $0x10] sm:$0xf]
        %v5641 = vld [vmem:[%s9 + $0x14] sm:$0xf]
        %v5642 = vld [vmem:[%s9 + $0x18] sm:$0xf]
        %v5643 = vld [vmem:[%s9 + $0x1c] sm:$0xf]
        %v5644 = vld [vmem:[%s9 + $0x20] sm:$0xf]
        %v5645 = vld [vmem:[%s9 + $0x24] sm:$0xf]
        %v5646 = vld [vmem:[%s9 + $0x28] sm:$0xf]
        %v5647 = vld [vmem:[%s9 + $0x2c] sm:$0xf]
        %v5648 = vld [vmem:[%s9 + $0x30] sm:$0xf]
        %v5649 = vld [vmem:[%s9 + $0x34] sm:$0xf]
        %v5650 = vld [vmem:[%s9 + $0x38] sm:$0xf]
        %v5651 = vld [vmem:[%s9 + $0x3c] sm:$0xf]
        %v5652 = vld [vmem:[%s10] sm:$0x1]
        %v5669 = vunpack.c.l.b16 %v5636
        %v5670 = vunpack.c.l.b16 %v5637
        %v5671 = vunpack.c.l.b16 %v5638
        %v5672 = vunpack.c.l.b16 %v5639
        %v5673 = vunpack.c.l.b16 %v5640
        %v5674 = vunpack.c.l.b16 %v5641
        %v5675 = vunpack.c.l.b16 %v5642
        %v5676 = vunpack.c.l.b16 %v5643
        %v5677 = vunpack.c.l.b16 %v5644
        %v5678 = vunpack.c.l.b16 %v5645
        %v5679 = vunpack.c.l.b16 %v5646
        %v5680 = vunpack.c.l.b16 %v5647
        %v5681 = vunpack.c.l.b16 %v5648
        %v5682 = vunpack.c.l.b16 %v5649
        %v5683 = vunpack.c.l.b16 %v5650
        %v5684 = vunpack.c.l.b16 %v5651
        %v5685 = vpack.c.b16 %v5670, %v5669
        %v5686 = vpack.c.b16 %v5672, %v5671
        %v5687 = vpack.c.b16 %v5674, %v5673
        %v5688 = vpack.c.b16 %v5676, %v5675
        %v5689 = vpack.c.b16 %v5678, %v5677
        %v5690 = vpack.c.b16 %v5680, %v5679
        %v5691 = vpack.c.b16 %v5682, %v5681
        %v5692 = vpack.c.b16 %v5684, %v5683
        %5701 = vmatprep.subr.bf16.mxu0 0
        %5702 = vmatpush1.bf16.msra.mxu0 %v5685
        %5703 = vmatprep.subr.bf16.mxu0 0
        %5704 = vmatpush1.bf16.msra.mxu0 %v5686
        %5705 = vmatprep.subr.bf16.mxu0 0
        %5706 = vmatpush1.bf16.msra.mxu0 %v5687
        %5707 = vmatprep.subr.bf16.mxu0 0
        %5708 = vmatpush1.bf16.msra.mxu0 %v5688
        %5709 = vmatprep.subr.bf16.mxu0 0
        %5710 = vmatpush1.bf16.msra.mxu0 %v5689
        %5711 = vmatprep.subr.bf16.mxu0 0
        %5712 = vmatpush1.bf16.msra.mxu0 %v5690
        %5713 = vmatprep.subr.bf16.mxu0 0
        %5714 = vmatpush1.bf16.msra.mxu0 %v5691
        %5715 = vmatprep.subr.bf16.mxu0 0
        %5716 = vmatpush1.bf16.msra.mxu0 %v5692
        %5717 = vmatprep.subr.bf16.mxu0 0
        %5718 = vmatpush1.bf16.msra.mxu0 0
        %5719 = vmatprep.subr.bf16.mxu0 0
        %5720 = vmatpush1.bf16.msra.mxu0 0
        %5721 = vmatprep.subr.bf16.mxu0 0
        %5722 = vmatpush1.bf16.msra.mxu0 0
        %5723 = vmatprep.subr.bf16.mxu0 0
        %5724 = vmatpush1.bf16.msra.mxu0 0
        %5725 = vmatprep.subr.bf16.mxu0 0
        %5726 = vmatpush1.bf16.msra.mxu0 0
        %5727 = vmatprep.subr.bf16.mxu0 0
        %5728 = vmatpush1.bf16.msra.mxu0 0
        %5729 = vmatprep.subr.bf16.mxu0 0
        %5730 = vmatpush1.bf16.msra.mxu0 0
        %5731 = vmatprep.subr.bf16.mxu0 0
        %5732 = vmatpush1.bf16.msra.mxu0 0
        %5733 = vmatprep.mubr.bf16.mxu0 0
        %5734 = vmatmul.mubr.bf16.gmra.mrb[0].mxu0 %v5635
        %v5735 = vpop.f32.mrb[0].mxu0
        %v5736 = vadd.f32 %v5652, %v5735
        %v5737 = vpop.f32.mrb[0].mxu0
        %v5738 = vpop.f32.mrb[0].mxu0
        %v5739 = vpop.f32.mrb[0].mxu0
        %5740 = vdwg.mxu0
        %v5741 = vtanh.pop %v5736
        %vm5742 = vcmask 253952
        %5743 = vst.msk [vmem:[%s376] sm:$0x1] %vm5742, %v5741
        %s5744 = sand.u32 %s269, 1
        %s5745 = scalar_lea.sflag [#allocation3], %s5744
        %s5746 = sand.u32 %s269, 1
        %s5747 = scalar_lea.vmem [#allocation2], %s5746
        // Predicated region
        $region65: #{encoder_forward.1} parent=63 // pred_check
          %p5748 = pneg %p279
        $region66: #{encoder_forward.1} parent=63 // pred_check_branch
          %5750 = sbr.rel (%p5748) target = $region68
        $region67: #{encoder_forward.1} parent=63 // pred_region
          %s5752 = ssub.s32 16, 16
          %5753 = vsyncadd %s5745, %s5752
          %s5754 = smul.addr %s25, 16
          %s5755 = scalar_lea.hbm %s11, %s5754
          %s5757 = sshll.u32 %s5747, 4
          %s5758 = int_to_ptr.vmem [resolvable:$true] %s5757
          %5760 = dma.vmem_to_hbm [thread:$0]  %s5758, 16, %s5755, %s5745
        $region68: #{encoder_forward.1} parent=63 // pred_fallthru
          _
      $region64: #{encoder_forward.1} parent=5 // pred_fallthru
        _
      %p5761 = scmp.le.s32.totalorder 2, %s20
      // Predicated region
      $region69: #{encoder_forward.1} parent=5 // pred_check
        %p5762 = pneg %p5761
      $region70: #{encoder_forward.1} parent=5 // pred_check_branch
        %5764 = sbr.rel (%p5762) target = $region72
      $region71: #{encoder_forward.1} parent=5 // pred_region
        %s5765 = ssub.s32 %s20, 2
        // Predicated region
        $region73: #{encoder_forward.1} parent=71 // pred_check
          %p5766 = pneg %p285
        $region74: #{encoder_forward.1} parent=71 // pred_check_branch
          %5768 = sbr.rel (%p5766) target = $region76
        $region75: #{encoder_forward.1} parent=71 // pred_region
          %s5769 = sand.u32 %s270, 1
          %s5770 = scalar_lea.sflag [#allocation3], %s5769
          %s5771 = sand.u32 %s270, 1
          %s5772 = scalar_lea.vmem [#allocation2], %s5771
          %5773 = dma.done %s5770, 16
        $region76: #{encoder_forward.1} parent=71 // pred_fallthru
          _
      $region72: #{encoder_forward.1} parent=5 // pred_fallthru
        _
    $region6: #{encoder_forward.1} parent=1 // loop_footer
      %s24 = sadd.s32 1, %s20
    $region7: #{encoder_forward.1} parent=1 // loop_footer_branch
      %19 = sbr.rel target = $region3
    $region8: #{encoder_forward.1} parent=1 // loop_exit
      _
    %5774 = vsyncpa [#allocation3], 1
    %s5775 = scalar_lea.sflag [#allocation3], 1
    %5776 = vsyncpa %s5775, 1

</llo_original>
